<compile_context>
chip_gen: v7x
topology: tpu7x:2x2x1
jax: 0.10.0
libtpu: 0.0.40
codegen_flags: <defaults>
</compile_context>

<pallas_src>
import functools

import jax
import jax.numpy as jnp
from jax.experimental import pallas as pl
from jax.experimental.pallas import tpu as pltpu

HIDDEN = 768   # BERT hidden size (fixed by Linear(768, 256))
MID = 256
OUT = 1

_LANES = 128
_SUBLANES = 8

_TARGET_TILE_BYTES = 10 * 1024 * 1024   # per x buffer (double-buffered)
_VMEM_LIMIT_BYTES = 48 * 1024 * 1024    # safe under v7x's 64 MiB physical VMEM


def _round_up(n, m):
    return ((n + m - 1) // m) * m


def _cdiv(a, b):
    return (a + b - 1) // b


def _pick_tb(B):
    """Batch-tile rows: near-divisor of B (no fake padded full-length rows for
    B > 128) and >= 2 tiles whenever B >= 16 so the 'parallel' batch axis
    shards across v7x's two TensorCores (harmless on single-TC v5e/v6e)."""
    n_tiles = _cdiv(B, _LANES)            # keep tb <= 128
    if B >= 16:
        n_tiles = max(n_tiles, 2)
    tb = _round_up(_cdiv(B, n_tiles), _SUBLANES)
    return min(tb, _round_up(B, _SUBLANES))


def _pick_ts(S, tb, itemsize):
    """Sequence-tile rows: ~_TARGET_TILE_BYTES per x buffer, multiple of the
    dtype's sublane packing (16 for 2-byte dtypes, 8 for f32)."""
    sub = 16 if itemsize < 4 else _SUBLANES
    row_bytes = tb * HIDDEN * itemsize
    ts = max(sub, (_TARGET_TILE_BYTES // row_bytes) // sub * sub)
    return min(ts, _round_up(S, sub))


def _resident_spec(shape, single_buffer):
    """Constant index_map -> tensor stays resident in VMEM across grid steps.
    Optionally request a single pipeline buffer (it is never re-fetched)."""
    index_map = lambda b, s: (0,) * len(shape)
    if single_buffer and hasattr(pl, "Buffered"):
        return pl.BlockSpec(shape, index_map, pipeline_mode=pl.Buffered(1))
    return pl.BlockSpec(shape, index_map)


def salience_kernel(x_ref, w1_ref, b1_ref, w2_ref, b2_ref, o_ref, acc_ref, *,
                    inv_s, rem):
    s = pl.program_id(1)
    last = pl.num_programs(1) - 1

    @pl.when(s == 0)
    def _():
        acc_ref[...] = jnp.zeros_like(acc_ref)

    ts = x_ref.shape[1]
    if rem == ts:
        # All sequence tiles are full: running sum with f32 accumulation
        # (no explicit f32 copy of the whole (TB, TS, H) tile).
        acc_ref[...] += jnp.sum(x_ref[...], axis=1, dtype=jnp.float32)
    else:
        # Ragged final tile (no wrapper jnp.pad): only the first `rem` rows
        # are real data, so slice before summing — OOB block contents are
        # undefined on TPU and must not leak into the pooled mean.
        @pl.when(s != last)
        def _():
            acc_ref[...] += jnp.sum(x_ref[...], axis=1, dtype=jnp.float32)

        @pl.when(s == last)
        def _():
            acc_ref[...] += jnp.sum(x_ref[:, :rem, :], axis=1, dtype=jnp.float32)

    @pl.when(s == last)
    def _():
        # Mean over the TRUE sequence length.
        feats = acc_ref[...] * inv_s                          # (TB, H)

        # Linear(768 -> 256) + ReLU  (MXU, f32 accumulate).
        h = jnp.dot(feats, w1_ref[...], preferred_element_type=jnp.float32)
        h = jnp.maximum(h + b1_ref[...], 0.0)                 # (TB, 256)

        # Linear(256 -> 1): N=1 matmul would waste the MXU; do it as an
        # elementwise multiply + lane reduction (VPU/XLU) instead.
        logit = jnp.sum(h * w2_ref[...], axis=-1, keepdims=True) + b2_ref[...]
        score = jax.nn.sigmoid(logit)                         # (TB, 1)

        # Lane-dense (unmasked) store: broadcast score across 128 lanes.
        o_ref[...] = jnp.broadcast_to(score, o_ref.shape).astype(o_ref.dtype)


def salience_scorer(last_hidden_state, w1, b1, w2, b2, *, tb=None, ts=None):
    """last_hidden_state: (B, S, 768) float32/bfloat16 -> (B, 1) f32 scores."""
    B, S, H = last_hidden_state.shape
    assert H == HIDDEN and w1.shape == (HIDDEN, MID)
    assert w2.shape == (MID, OUT) and OUT == 1

    w1 = jnp.asarray(w1, jnp.float32)
    b1 = jnp.asarray(b1, jnp.float32).reshape(1, MID)
    w2_row = jnp.asarray(w2, jnp.float32).reshape(1, MID)     # (256,1) -> (1,256)
    b2 = jnp.asarray(b2, jnp.float32).reshape(1, OUT)

    itemsize = last_hidden_state.dtype.itemsize
    if tb is None:
        tb = _pick_tb(B)
    if ts is None:
        ts = _pick_ts(S, tb, itemsize)

    grid = (_cdiv(B, tb), _cdiv(S, ts))
    rem = S - (grid[1] - 1) * ts          # valid rows of the final seq tile

    # inv_s baked in statically: any change in S recompiles anyway (shapes are
    # static), so an SMEM scalar would not avoid recompilation here.
    kernel = functools.partial(salience_kernel, inv_s=float(1.0 / S), rem=rem)

    # Advisory cost model: this kernel is HBM-streaming-bound.
    cost = pl.CostEstimate(
        flops=2 * B * S * HIDDEN + 2 * B * HIDDEN * MID + 4 * B * MID,
        transcendentals=B,
        bytes_accessed=B * S * HIDDEN * itemsize
        + (HIDDEN * MID + 2 * MID + OUT) * 4
        + B * _LANES * 4,
    )

    def call(single_buffer_weights):
        in_specs = [
            # x: streamed (double-buffered) over (batch, seq) tiles.
            pl.BlockSpec((tb, ts, HIDDEN), lambda b, s: (b, s, 0)),
            # weights/biases: constant index_maps -> VMEM-resident.
            _resident_spec((HIDDEN, MID), single_buffer_weights),
            _resident_spec((1, MID), single_buffer_weights),
            _resident_spec((1, MID), single_buffer_weights),
            _resident_spec((1, OUT), single_buffer_weights),
        ]
        return pl.pallas_call(
            kernel,
            out_shape=jax.ShapeDtypeStruct((B, _LANES), jnp.float32),
            grid_spec=pltpu.PrefetchScalarGridSpec(
                num_scalar_prefetch=0,
                grid=grid,
                in_specs=in_specs,
                out_specs=pl.BlockSpec((tb, _LANES), lambda b, s: (b, 0)),
                scratch_shapes=[pltpu.VMEM((tb, HIDDEN), jnp.float32)],
            ),
            compiler_params=pltpu.CompilerParams(
                dimension_semantics=("parallel", "arbitrary"),
                vmem_limit_bytes=_VMEM_LIMIT_BYTES,
            ),
            cost_estimate=cost,
        )(last_hidden_state, w1, b1, w2_row, b2)

    try:
        out = call(True)
    except Exception:
        # pl.Buffered(1) single-buffering unsupported on this jax/Mosaic build;
        # fall back to default (double-buffered but still VMEM-resident) weights.
        out = call(False)

    return out[:B, :OUT]


def _reference(last_hidden_state, w1, b1, w2, b2):
    feats = jnp.mean(last_hidden_state.astype(jnp.float32), axis=1)
    h = jnp.maximum(feats @ w1 + b1.reshape(1, -1), 0.0)
    return jax.nn.sigmoid(h @ w2 + b2.reshape(1, -1))


if __name__ == "__main__":
    key = jax.random.PRNGKey(0)
    k_x, k_w1, k_b1, k_w2, k_b2 = jax.random.split(key, 5)

    B, S = 2, 8  # small batch / sequence length
    # Simulated BERT last_hidden_state (encoder output), streamed as bf16 to
    # halve HBM traffic for this bandwidth-bound kernel.
    x = jax.random.normal(k_x, (B, S, HIDDEN), dtype=jnp.float32).astype(jnp.bfloat16)

    # Classifier parameters (nn.Linear(768,256), nn.Linear(256,1)); weights
    # stored as [in, out] so the kernel computes y = x @ W + b.
    w1 = jax.random.normal(k_w1, (HIDDEN, MID), dtype=jnp.float32) * 0.02
    b1 = jax.random.normal(k_b1, (MID,), dtype=jnp.float32) * 0.02
    w2 = jax.random.normal(k_w2, (MID, OUT), dtype=jnp.float32) * 0.02
    b2 = jax.random.normal(k_b2, (OUT,), dtype=jnp.float32) * 0.02

    out = salience_scorer(x, w1, b1, w2, b2)
    out = jax.block_until_ready(out)

    ref = _reference(x, w1, b1, w2, b2)
    assert out.shape == (B, OUT), out.shape
    assert jnp.allclose(out, ref, atol=1e-4, rtol=1e-4), (out, ref)

    print("KERNEL_OK")
</pallas_src>

<mosaic_0001>
module attributes {stable_mosaic.version = 11 : i64} {
  func.func @salience_kernel(%arg0: i32, %arg1: i32, %arg2: memref<8x16x768xbf16, #tpu.memory_space<vmem>>, %arg3: memref<768x256xf32, #tpu.memory_space<vmem>>, %arg4: memref<1x256xf32, #tpu.memory_space<vmem>>, %arg5: memref<1x256xf32, #tpu.memory_space<vmem>>, %arg6: memref<1x1xf32, #tpu.memory_space<vmem>>, %arg7: memref<8x128xf32, #tpu.memory_space<vmem>>, %arg8: memref<8x768xf32, #tpu.memory_space<vmem>>) attributes {dimension_semantics = [#tpu.dimension_semantics<parallel>, #tpu.dimension_semantics<arbitrary>], iteration_bounds = array<i64: 1, 1>, scalar_prefetch = 0 : i64, scratch_operands = 1 : i64, tpu.core_type = #tpu.core_type<tc>, window_params = [{transform_indices = @transform_0, window_bounds = array<i64: 8, 16, 768>}, {pipeline_mode = #tpu.pipeline_mode<synchronous>, transform_indices = @transform_1, window_bounds = array<i64: 768, 256>}, {pipeline_mode = #tpu.pipeline_mode<synchronous>, transform_indices = @transform_2, window_bounds = array<i64: 1, 256>}, {pipeline_mode = #tpu.pipeline_mode<synchronous>, transform_indices = @transform_3, window_bounds = array<i64: 1, 256>}, {pipeline_mode = #tpu.pipeline_mode<synchronous>, transform_indices = @transform_4, window_bounds = array<i64: 1, 1>}, {transform_indices = @transform_5, window_bounds = array<i64: 8, 128>}]} {
    %c0_i32 = arith.constant 0 : i32
    %0 = arith.cmpi eq, %arg1, %c0_i32 : i32
    %1 = arith.extui %0 : i1 to i32
    %c0_i32_0 = arith.constant 0 : i32
    %2 = arith.cmpi ne, %1, %c0_i32_0 : i32
    scf.if %2 {
      %cst = arith.constant 0.000000e+00 : f32
      %12 = vector.broadcast %cst : f32 to vector<8x768xf32>
      %c0 = arith.constant 0 : index
      %c0_7 = arith.constant 0 : index
      %13 = vector.load %arg8[%c0, %c0_7] : memref<8x768xf32, #tpu.memory_space<vmem>>, vector<8x768xf32>
      tpu.vector_store %arg8[%c0, %c0_7], %12 {strides = array<i32>} : memref<8x768xf32, #tpu.memory_space<vmem>>, vector<8x768xf32>,
    } else {
    }
    %c0_i32_1 = arith.constant 0 : i32
    %3 = arith.cmpi ne, %arg1, %c0_i32_1 : i32
    %4 = arith.extui %3 : i1 to i32
    %c0_i32_2 = arith.constant 0 : i32
    %5 = arith.cmpi ne, %4, %c0_i32_2 : i32
    scf.if %5 {
      %c0 = arith.constant 0 : index
      %c0_7 = arith.constant 0 : index
      %12 = vector.load %arg8[%c0, %c0_7] : memref<8x768xf32, #tpu.memory_space<vmem>>, vector<8x768xf32>
      %c0_8 = arith.constant 0 : index
      %c0_9 = arith.constant 0 : index
      %c0_10 = arith.constant 0 : index
      %13 = vector.load %arg2[%c0_8, %c0_9, %c0_10] : memref<8x16x768xbf16, #tpu.memory_space<vmem>>, vector<8x16x768xbf16>
      %14 = arith.extf %13 : vector<8x16x768xbf16> to vector<8x16x768xf32>
      %cst = arith.constant dense<0.000000e+00> : vector<8x768xf32>
      %15 = vector.multi_reduction <add>, %14, %cst [1] : vector<8x16x768xf32> to vector<8x768xf32>
      %16 = arith.addf %12, %15 : vector<8x768xf32>
      %c0_11 = arith.constant 0 : index
      %c0_12 = arith.constant 0 : index
      %17 = vector.load %arg8[%c0_11, %c0_12] : memref<8x768xf32, #tpu.memory_space<vmem>>, vector<8x768xf32>
      tpu.vector_store %arg8[%c0_11, %c0_12], %16 {strides = array<i32>} : memref<8x768xf32, #tpu.memory_space<vmem>>, vector<8x768xf32>,
    } else {
    }
    %c0_i32_3 = arith.constant 0 : i32
    %6 = arith.cmpi eq, %arg1, %c0_i32_3 : i32
    %7 = arith.extui %6 : i1 to i32
    %c0_i32_4 = arith.constant 0 : i32
    %8 = arith.cmpi ne, %7, %c0_i32_4 : i32
    scf.if %8 {
      %c0 = arith.constant 0 : index
      %c0_7 = arith.constant 0 : index
      %12 = vector.load %arg8[%c0, %c0_7] : memref<8x768xf32, #tpu.memory_space<vmem>>, vector<8x768xf32>
      %c0_8 = arith.constant 0 : index
      %c0_9 = arith.constant 0 : index
      %c0_10 = arith.constant 0 : index
      %13 = vector.load %arg2[%c0_8, %c0_9, %c0_10] : memref<8x16x768xbf16, #tpu.memory_space<vmem>>, vector<8x8x768xbf16>
      %14 = arith.extf %13 : vector<8x8x768xbf16> to vector<8x8x768xf32>
      %cst = arith.constant dense<0.000000e+00> : vector<8x768xf32>
      %15 = vector.multi_reduction <add>, %14, %cst [1] : vector<8x8x768xf32> to vector<8x768xf32>
      %16 = arith.addf %12, %15 : vector<8x768xf32>
      %c0_11 = arith.constant 0 : index
      %c0_12 = arith.constant 0 : index
      %17 = vector.load %arg8[%c0_11, %c0_12] : memref<8x768xf32, #tpu.memory_space<vmem>>, vector<8x768xf32>
      tpu.vector_store %arg8[%c0_11, %c0_12], %16 {strides = array<i32>} : memref<8x768xf32, #tpu.memory_space<vmem>>, vector<8x768xf32>,
    } else {
    }
    %c0_i32_5 = arith.constant 0 : i32
    %9 = arith.cmpi eq, %arg1, %c0_i32_5 : i32
    %10 = arith.extui %9 : i1 to i32
    %c0_i32_6 = arith.constant 0 : i32
    %11 = arith.cmpi ne, %10, %c0_i32_6 : i32
    scf.if %11 {
      %c0 = arith.constant 0 : index
      %c0_7 = arith.constant 0 : index
      %12 = vector.load %arg8[%c0, %c0_7] : memref<8x768xf32, #tpu.memory_space<vmem>>, vector<8x768xf32>
      %cst = arith.constant 1.250000e-01 : f32
      %13 = vector.broadcast %cst : f32 to vector<8x768xf32>
      %14 = arith.mulf %12, %13 : vector<8x768xf32>
      %c0_8 = arith.constant 0 : index
      %c0_9 = arith.constant 0 : index
      %15 = vector.load %arg3[%c0_8, %c0_9] : memref<768x256xf32, #tpu.memory_space<vmem>>, vector<768x256xf32>
      %cst_10 = arith.constant dense<0.000000e+00> : vector<8x256xf32>
      %16 = tpu.matmul %14, %15, %cst_10 {dimension_numbers = #tpu.dot_dimension_numbers<[1], [0], [0], [1], [0, 0, 1, 1], [], []>} : vector<8x768xf32>, vector<768x256xf32>, vector<8x256xf32> -> vector<8x256xf32>
      %c0_11 = arith.constant 0 : index
      %c0_12 = arith.constant 0 : index
      %17 = vector.load %arg4[%c0_11, %c0_12] : memref<1x256xf32, #tpu.memory_space<vmem>>, vector<1x256xf32>
      %18 = vector.broadcast %17 : vector<1x256xf32> to vector<8x256xf32>
      %19 = arith.addf %16, %18 : vector<8x256xf32>
      %cst_13 = arith.constant 0.000000e+00 : f32
      %20 = vector.broadcast %cst_13 : f32 to vector<8x256xf32>
      %21 = arith.maximumf %19, %20 : vector<8x256xf32>
      %c0_14 = arith.constant 0 : index
      %c0_15 = arith.constant 0 : index
      %22 = vector.load %arg5[%c0_14, %c0_15] : memref<1x256xf32, #tpu.memory_space<vmem>>, vector<1x256xf32>
      %23 = vector.broadcast %22 : vector<1x256xf32> to vector<8x256xf32>
      %24 = arith.mulf %21, %23 : vector<8x256xf32>
      %cst_16 = arith.constant dense<0.000000e+00> : vector<8xf32>
      %25 = vector.multi_reduction <add>, %24, %cst_16 [1] : vector<8x256xf32> to vector<8xf32>
      %26 = vector.shape_cast %25 : vector<8xf32> to vector<8x1xf32>
      %c0_17 = arith.constant 0 : index
      %c0_18 = arith.constant 0 : index
      %27 = vector.load %arg6[%c0_17, %c0_18] : memref<1x1xf32, #tpu.memory_space<vmem>>, vector<1x1xf32>
      %28 = vector.broadcast %27 : vector<1x1xf32> to vector<8x1xf32>
      %29 = arith.addf %26, %28 : vector<8x1xf32>
      %30 = arith.negf %29 : vector<8x1xf32>
      %31 = math.exp %30 : vector<8x1xf32>
      %cst_19 = arith.constant 1.000000e+00 : f32
      %32 = vector.broadcast %cst_19 : f32 to vector<8x1xf32>
      %33 = arith.addf %32, %31 : vector<8x1xf32>
      %34 = arith.divf %32, %33 : vector<8x1xf32>
      %35 = vector.shape_cast %34 : vector<8x1xf32> to vector<8x1xf32>
      %36 = vector.broadcast %35 : vector<8x1xf32> to vector<8x128xf32>
      %c0_20 = arith.constant 0 : index
      %c0_21 = arith.constant 0 : index
      %37 = vector.load %arg7[%c0_20, %c0_21] : memref<8x128xf32, #tpu.memory_space<vmem>>, vector<8x128xf32>
      tpu.vector_store %arg7[%c0_20, %c0_21], %36 {strides = array<i32>} : memref<8x128xf32, #tpu.memory_space<vmem>>, vector<8x128xf32>,
    } else {
    }
    return
  }
  func.func @transform_0(%arg0: i32, %arg1: i32) -> (i32, i32, i32) {
    %c0_i32 = arith.constant 0 : i32
    %c0_i32_0 = arith.constant 0 : i32
    return %arg0, %arg1, %c0_i32 : i32, i32, i32
  }
  func.func @transform_1(%arg0: i32, %arg1: i32) -> (i32, i32) {
    %c0_i32 = arith.constant 0 : i32
    %c0_i32_0 = arith.constant 0 : i32
    %c0_i32_1 = arith.constant 0 : i32
    return %c0_i32, %c0_i32_0 : i32, i32
  }
  func.func @transform_2(%arg0: i32, %arg1: i32) -> (i32, i32) {
    %c0_i32 = arith.constant 0 : i32
    %c0_i32_0 = arith.constant 0 : i32
    %c0_i32_1 = arith.constant 0 : i32
    return %c0_i32, %c0_i32_0 : i32, i32
  }
  func.func @transform_3(%arg0: i32, %arg1: i32) -> (i32, i32) {
    %c0_i32 = arith.constant 0 : i32
    %c0_i32_0 = arith.constant 0 : i32
    %c0_i32_1 = arith.constant 0 : i32
    return %c0_i32, %c0_i32_0 : i32, i32
  }
  func.func @transform_4(%arg0: i32, %arg1: i32) -> (i32, i32) {
    %c0_i32 = arith.constant 0 : i32
    %c0_i32_0 = arith.constant 0 : i32
    %c0_i32_1 = arith.constant 0 : i32
    return %c0_i32, %c0_i32_0 : i32, i32
  }
  func.func @transform_5(%arg0: i32, %arg1: i32) -> (i32, i32) {
    %c0_i32 = arith.constant 0 : i32
    %c0_i32_0 = arith.constant 0 : i32
    return %arg0, %c0_i32 : i32, i32
  }
}

module attributes {stable_mosaic.version = 11 : i64} {
  func.func @salience_kernel(%arg0: i32, %arg1: i32, %arg2: memref<8x16x768xbf16, #tpu.memory_space<vmem>>, %arg3: memref<768x256xf32, #tpu.memory_space<vmem>>, %arg4: memref<1x256xf32, #tpu.memory_space<vmem>>, %arg5: memref<1x256xf32, #tpu.memory_space<vmem>>, %arg6: memref<1x1xf32, #tpu.memory_space<vmem>>, %arg7: memref<8x128xf32, #tpu.memory_space<vmem>>, %arg8: memref<8x768xf32, #tpu.memory_space<vmem>>) attributes {dimension_semantics = [#tpu.dimension_semantics<parallel>, #tpu.dimension_semantics<arbitrary>], iteration_bounds = array<i64: 1, 1>, scalar_prefetch = 0 : i64, scratch_operands = 1 : i64, tpu.core_type = #tpu.core_type<tc>, window_params = [{transform_indices = @transform_0, window_bounds = array<i64: 8, 16, 768>}, {pipeline_mode = #tpu.pipeline_mode<synchronous>, transform_indices = @transform_1, window_bounds = array<i64: 768, 256>}, {pipeline_mode = #tpu.pipeline_mode<synchronous>, transform_indices = @transform_2, window_bounds = array<i64: 1, 256>}, {pipeline_mode = #tpu.pipeline_mode<synchronous>, transform_indices = @transform_3, window_bounds = array<i64: 1, 256>}, {pipeline_mode = #tpu.pipeline_mode<synchronous>, transform_indices = @transform_4, window_bounds = array<i64: 1, 1>}, {transform_indices = @transform_5, window_bounds = array<i64: 8, 128>}]} {
    %c0_i32 = arith.constant 0 : i32
    %0 = arith.cmpi eq, %arg1, %c0_i32 : i32
    %1 = arith.extui %0 : i1 to i32
    %c0_i32_0 = arith.constant 0 : i32
    %2 = arith.cmpi ne, %1, %c0_i32_0 : i32
    scf.if %2 {
      %cst = arith.constant 0.000000e+00 : f32
      %12 = vector.broadcast %cst : f32 to vector<8x768xf32>
      %c0 = arith.constant 0 : index
      %c0_7 = arith.constant 0 : index
      %13 = vector.load %arg8[%c0, %c0_7] : memref<8x768xf32, #tpu.memory_space<vmem>>, vector<8x768xf32>
      tpu.vector_store %arg8[%c0, %c0_7], %12 {strides = array<i32>} : memref<8x768xf32, #tpu.memory_space<vmem>>, vector<8x768xf32>,
    } else {
    }
    %c0_i32_1 = arith.constant 0 : i32
    %3 = arith.cmpi ne, %arg1, %c0_i32_1 : i32
    %4 = arith.extui %3 : i1 to i32
    %c0_i32_2 = arith.constant 0 : i32
    %5 = arith.cmpi ne, %4, %c0_i32_2 : i32
    scf.if %5 {
      %c0 = arith.constant 0 : index
      %c0_7 = arith.constant 0 : index
      %12 = vector.load %arg8[%c0, %c0_7] : memref<8x768xf32, #tpu.memory_space<vmem>>, vector<8x768xf32>
      %c0_8 = arith.constant 0 : index
      %c0_9 = arith.constant 0 : index
      %c0_10 = arith.constant 0 : index
      %13 = vector.load %arg2[%c0_8, %c0_9, %c0_10] : memref<8x16x768xbf16, #tpu.memory_space<vmem>>, vector<8x16x768xbf16>
      %14 = arith.extf %13 : vector<8x16x768xbf16> to vector<8x16x768xf32>
      %cst = arith.constant dense<0.000000e+00> : vector<8x768xf32>
      %15 = vector.multi_reduction <add>, %14, %cst [1] : vector<8x16x768xf32> to vector<8x768xf32>
      %16 = arith.addf %12, %15 : vector<8x768xf32>
      %c0_11 = arith.constant 0 : index
      %c0_12 = arith.constant 0 : index
      %17 = vector.load %arg8[%c0_11, %c0_12] : memref<8x768xf32, #tpu.memory_space<vmem>>, vector<8x768xf32>
      tpu.vector_store %arg8[%c0_11, %c0_12], %16 {strides = array<i32>} : memref<8x768xf32, #tpu.memory_space<vmem>>, vector<8x768xf32>,
    } else {
    }
    %c0_i32_3 = arith.constant 0 : i32
    %6 = arith.cmpi eq, %arg1, %c0_i32_3 : i32
    %7 = arith.extui %6 : i1 to i32
    %c0_i32_4 = arith.constant 0 : i32
    %8 = arith.cmpi ne, %7, %c0_i32_4 : i32
    scf.if %8 {
      %c0 = arith.constant 0 : index
      %c0_7 = arith.constant 0 : index
      %12 = vector.load %arg8[%c0, %c0_7] : memref<8x768xf32, #tpu.memory_space<vmem>>, vector<8x768xf32>
      %c0_8 = arith.constant 0 : index
      %c0_9 = arith.constant 0 : index
      %c0_10 = arith.constant 0 : index
      %13 = vector.load %arg2[%c0_8, %c0_9, %c0_10] : memref<8x16x768xbf16, #tpu.memory_space<vmem>>, vector<8x8x768xbf16>
      %14 = arith.extf %13 : vector<8x8x768xbf16> to vector<8x8x768xf32>
      %cst = arith.constant dense<0.000000e+00> : vector<8x768xf32>
      %15 = vector.multi_reduction <add>, %14, %cst [1] : vector<8x8x768xf32> to vector<8x768xf32>
      %16 = arith.addf %12, %15 : vector<8x768xf32>
      %c0_11 = arith.constant 0 : index
      %c0_12 = arith.constant 0 : index
      %17 = vector.load %arg8[%c0_11, %c0_12] : memref<8x768xf32, #tpu.memory_space<vmem>>, vector<8x768xf32>
      tpu.vector_store %arg8[%c0_11, %c0_12], %16 {strides = array<i32>} : memref<8x768xf32, #tpu.memory_space<vmem>>, vector<8x768xf32>,
    } else {
    }
    %c0_i32_5 = arith.constant 0 : i32
    %9 = arith.cmpi eq, %arg1, %c0_i32_5 : i32
    %10 = arith.extui %9 : i1 to i32
    %c0_i32_6 = arith.constant 0 : i32
    %11 = arith.cmpi ne, %10, %c0_i32_6 : i32
    scf.if %11 {
      %c0 = arith.constant 0 : index
      %c0_7 = arith.constant 0 : index
      %12 = vector.load %arg8[%c0, %c0_7] : memref<8x768xf32, #tpu.memory_space<vmem>>, vector<8x768xf32>
      %cst = arith.constant 1.250000e-01 : f32
      %13 = vector.broadcast %cst : f32 to vector<8x768xf32>
      %14 = arith.mulf %12, %13 : vector<8x768xf32>
      %c0_8 = arith.constant 0 : index
      %c0_9 = arith.constant 0 : index
      %15 = vector.load %arg3[%c0_8, %c0_9] : memref<768x256xf32, #tpu.memory_space<vmem>>, vector<768x256xf32>
      %cst_10 = arith.constant dense<0.000000e+00> : vector<8x256xf32>
      %16 = tpu.matmul %14, %15, %cst_10 {dimension_numbers = #tpu.dot_dimension_numbers<[1], [0], [0], [1], [0, 0, 1, 1], [], []>} : vector<8x768xf32>, vector<768x256xf32>, vector<8x256xf32> -> vector<8x256xf32>
      %c0_11 = arith.constant 0 : index
      %c0_12 = arith.constant 0 : index
      %17 = vector.load %arg4[%c0_11, %c0_12] : memref<1x256xf32, #tpu.memory_space<vmem>>, vector<1x256xf32>
      %18 = vector.broadcast %17 : vector<1x256xf32> to vector<8x256xf32>
      %19 = arith.addf %16, %18 : vector<8x256xf32>
      %cst_13 = arith.constant 0.000000e+00 : f32
      %20 = vector.broadcast %cst_13 : f32 to vector<8x256xf32>
      %21 = arith.maximumf %19, %20 : vector<8x256xf32>
      %c0_14 = arith.constant 0 : index
      %c0_15 = arith.constant 0 : index
      %22 = vector.load %arg5[%c0_14, %c0_15] : memref<1x256xf32, #tpu.memory_space<vmem>>, vector<1x256xf32>
      %23 = vector.broadcast %22 : vector<1x256xf32> to vector<8x256xf32>
      %24 = arith.mulf %21, %23 : vector<8x256xf32>
      %cst_16 = arith.constant dense<0.000000e+00> : vector<8xf32>
      %25 = vector.multi_reduction <add>, %24, %cst_16 [1] : vector<8x256xf32> to vector<8xf32>
      %26 = vector.shape_cast %25 : vector<8xf32> to vector<8x1xf32>
      %c0_17 = arith.constant 0 : index
      %c0_18 = arith.constant 0 : index
      %27 = vector.load %arg6[%c0_17, %c0_18] : memref<1x1xf32, #tpu.memory_space<vmem>>, vector<1x1xf32>
      %28 = vector.broadcast %27 : vector<1x1xf32> to vector<8x1xf32>
      %29 = arith.addf %26, %28 : vector<8x1xf32>
      %30 = arith.negf %29 : vector<8x1xf32>
      %31 = math.exp %30 : vector<8x1xf32>
      %cst_19 = arith.constant 1.000000e+00 : f32
      %32 = vector.broadcast %cst_19 : f32 to vector<8x1xf32>
      %33 = arith.addf %32, %31 : vector<8x1xf32>
      %34 = arith.divf %32, %33 : vector<8x1xf32>
      %35 = vector.shape_cast %34 : vector<8x1xf32> to vector<8x1xf32>
      %36 = vector.broadcast %35 : vector<8x1xf32> to vector<8x128xf32>
      %c0_20 = arith.constant 0 : index
      %c0_21 = arith.constant 0 : index
      %37 = vector.load %arg7[%c0_20, %c0_21] : memref<8x128xf32, #tpu.memory_space<vmem>>, vector<8x128xf32>
      tpu.vector_store %arg7[%c0_20, %c0_21], %36 {strides = array<i32>} : memref<8x128xf32, #tpu.memory_space<vmem>>, vector<8x128xf32>,
    } else {
    }
    return
  }
  func.func @transform_0(%arg0: i32, %arg1: i32) -> (i32, i32, i32) {
    %c0_i32 = arith.constant 0 : i32
    %c0_i32_0 = arith.constant 0 : i32
    return %arg0, %arg1, %c0_i32 : i32, i32, i32
  }
  func.func @transform_1(%arg0: i32, %arg1: i32) -> (i32, i32) {
    %c0_i32 = arith.constant 0 : i32
    %c0_i32_0 = arith.constant 0 : i32
    %c0_i32_1 = arith.constant 0 : i32
    return %c0_i32, %c0_i32_0 : i32, i32
  }
  func.func @transform_2(%arg0: i32, %arg1: i32) -> (i32, i32) {
    %c0_i32 = arith.constant 0 : i32
    %c0_i32_0 = arith.constant 0 : i32
    %c0_i32_1 = arith.constant 0 : i32
    return %c0_i32, %c0_i32_0 : i32, i32
  }
  func.func @transform_3(%arg0: i32, %arg1: i32) -> (i32, i32) {
    %c0_i32 = arith.constant 0 : i32
    %c0_i32_0 = arith.constant 0 : i32
    %c0_i32_1 = arith.constant 0 : i32
    return %c0_i32, %c0_i32_0 : i32, i32
  }
  func.func @transform_4(%arg0: i32, %arg1: i32) -> (i32, i32) {
    %c0_i32 = arith.constant 0 : i32
    %c0_i32_0 = arith.constant 0 : i32
    %c0_i32_1 = arith.constant 0 : i32
    return %c0_i32, %c0_i32_0 : i32, i32
  }
  func.func @transform_5(%arg0: i32, %arg1: i32) -> (i32, i32) {
    %c0_i32 = arith.constant 0 : i32
    %c0_i32_0 = arith.constant 0 : i32
    return %arg0, %c0_i32 : i32, i32
  }
}

</mosaic_0001>

<llo_original>
// kernel: tpu_custom_call.1
$region0: #{tpu_custom_call.1}
  #allocation0 [shape = 'u32[]', space=smem, size = 0x4, offset = 0x4, fixed_abs, tag = 'smem constant byte address 0x4 - core index']
  #allocation1 [shape = 'u32[144,128]{1,0:T(1,128)}', space=vmem, size = 0x12000, scoped, tag = 'internal scratch']
  #allocation2 [shape = 'f32[8,768]{1,0:T(8,128)}', space=vmem, size = 0x6000, scoped, tag = 'scratch operand']
  #allocation3 [shape = 'f32[1,1]{1,0:T(1,128)S(1)}', space=vmem, size = 0x200, scoped, tag = 'scoped memory for tpu_custom_call.1']
  #allocation10 [shape = 's32[]', space=sflag, size = 0x4, offset = 0, fixed_abs, tag = 'sflag constant byte address 0x0 - dummy sync flag']
  %s0 = inlined_call_operand.hbm [shape: bf16[2,8,768], index: 0, kind: input, shape index: {}]
  %s1 = inlined_call_operand.hbm [shape: f32[768,256], index: 1, kind: input, shape index: {}]
  %s2 = inlined_call_operand.vmem [shape: f32[1,256], index: 2, kind: input, shape index: {}]
  %s3 = inlined_call_operand.vmem [shape: f32[1,256], index: 3, kind: input, shape index: {}]
  %s4 = inlined_call_operand.<no memory space> [shape: f32[1,1], index: 4, kind: input, shape index: {}]
  %s5 = inlined_call_operand.hbm [shape: f32[2,128], index: 5, kind: output, shape index: {}]
  %s6 = sld [smem:[#allocation0]]
  $region50: #{tpu_custom_call.1} parent=0
    _
  %s8 = ssub.s32 1, %s6
  %s9 = scalar_select 0, %s8, %s6
  %v10 = vstv %s4
  %11 = vst [vmem:[#allocation3] sm:$0x1] %v10
  $region1: #{tpu_custom_call.1} parent=0
    #allocation4 [shape = 'u8[196608]{0}', space=vmem, size = 0x30000, scoped, tag = 'input window, operand 0, single buffered']
    #allocation5 [shape = 's32[1]{0}', space=sflag, size = 0x4, scoped, tag = 'scoped memory for tpu_custom_call.1']
    #allocation6 [shape = 's32[1]{0}', space=sflag, size = 0x4, scoped, tag = 'scoped memory for tpu_custom_call.1']
    #allocation7 [shape = 'u8[786432]{0}', space=vmem, size = 0xc0000, scoped, tag = 'input window, operand 1, single buffered']
    #allocation8 [shape = 's32[1]{0}', space=sflag, size = 0x4, scoped, tag = 'scoped memory for tpu_custom_call.1']
    #allocation9 [shape = 'u8[4096]{0}', space=vmem, size = 0x1000, scoped, tag = 'output window, operand 0, single buffered']
    %12 = vsyncpa [#allocation5], 0
    %13 = vsyncpa [#allocation8], 0
    %14 = vsyncpa [#allocation6], 0
    // Predicated region
    $region2: #{tpu_custom_call.1} parent=1 // pred_check
      _
    $region3: #{tpu_custom_call.1} parent=1 // pred_check_branch
      %16 = sbr.rel (0) target = $region5
    $region4: #{tpu_custom_call.1} parent=1 // pred_region
      #allocation11 [shape = 'u32[6]{0}', space=smem, size = 0x18, scoped, tag = 'DMA stride descriptor']
      %s18 = ssub.s32 6144, 768
      %19 = vsyncadd [#allocation5], %s18
      %s21 = sshll.u32 1, 14
      %s22 = sxor.u32 4294967295, %s21
      %s24 = sld [smem:[#allocation0]]
      %s25 = sadd.s32 2, %s24
      %s27 = sshll.u32 7, 26
      %s28 = sxor.u32 4294967295, %s27
      %s29 = sand.u32 0, %s28
      %s30 = sshll.u32 %s25, 26
      %s31 = sor.u32 %s29, %s30
      %s32 = sshll.u32 [#allocation4], 4
      %s33 = int_to_ptr.vmem [resolvable:$true] %s32
      %39 = sst [smem:[#allocation11]] 384
      %s40 = scalar_lea.smem [#allocation11], 1
      %41 = sst [smem:[%s40]] 768
      %s42 = scalar_lea.smem [#allocation11], 2
      %43 = sst [smem:[%s42]] 1
      %s44 = scalar_lea.smem [#allocation11], 3
      %45 = sst [smem:[%s44]] 384
      %s46 = scalar_lea.smem [#allocation11], 4
      %47 = sst [smem:[%s46]] 384
      %s48 = scalar_lea.smem [#allocation11], 5
      %49 = sst [smem:[%s48]] 24
      %51 = dma.general %s0, 768, %s33, [#allocation5], [#allocation10], [#allocation11], %s31, 0
    $region5: #{tpu_custom_call.1} parent=1 // pred_fallthru
      _
    // Predicated region
    $region6: #{tpu_custom_call.1} parent=1 // pred_check
      _
    $region7: #{tpu_custom_call.1} parent=1 // pred_check_branch
      %53 = sbr.rel (0) target = $region9
    $region8: #{tpu_custom_call.1} parent=1 // pred_region
      %s55 = ssub.s32 24576, 24576
      %56 = vsyncadd [#allocation8], %s55
      %s57 = sshll.u32 [#allocation7], 4
      %s58 = int_to_ptr.vmem [resolvable:$true] %s57
      %63 = dma.hbm_to_vmem [thread:$0]  %s1, 24576, %s58, [#allocation8], 256, 256, 16
    $region9: #{tpu_custom_call.1} parent=1 // pred_fallthru
      _
    // Predicated region
    $region10: #{tpu_custom_call.1} parent=1 // pred_check
      _
    $region11: #{tpu_custom_call.1} parent=1 // pred_check_branch
      %65 = sbr.rel (0) target = $region13
    $region12: #{tpu_custom_call.1} parent=1 // pred_region
      _
    $region13: #{tpu_custom_call.1} parent=1 // pred_fallthru
      _
    // Predicated region
    $region14: #{tpu_custom_call.1} parent=1 // pred_check
      _
    $region15: #{tpu_custom_call.1} parent=1 // pred_check_branch
      %67 = sbr.rel (0) target = $region17
    $region16: #{tpu_custom_call.1} parent=1 // pred_region
      _
    $region17: #{tpu_custom_call.1} parent=1 // pred_fallthru
      _
    // Predicated region
    $region18: #{tpu_custom_call.1} parent=1 // pred_check
      _
    $region19: #{tpu_custom_call.1} parent=1 // pred_check_branch
      %69 = sbr.rel (0) target = $region21
    $region20: #{tpu_custom_call.1} parent=1 // pred_region
      _
    $region21: #{tpu_custom_call.1} parent=1 // pred_fallthru
      _
    // Predicated region
    $region22: #{tpu_custom_call.1} parent=1 // pred_check
      _
    $region23: #{tpu_custom_call.1} parent=1 // pred_check_branch
      %71 = sbr.rel (0) target = $region25
    $region24: #{tpu_custom_call.1} parent=1 // pred_region
      %72 = dma.done [#allocation5], 6144
    $region25: #{tpu_custom_call.1} parent=1 // pred_fallthru
      _
    // Predicated region
    $region26: #{tpu_custom_call.1} parent=1 // pred_check
      _
    $region27: #{tpu_custom_call.1} parent=1 // pred_check_branch
      %74 = sbr.rel (0) target = $region29
    $region28: #{tpu_custom_call.1} parent=1 // pred_region
      %75 = dma.done [#allocation8], 24576
    $region29: #{tpu_custom_call.1} parent=1 // pred_fallthru
      _
    %p76 = scmp.eq.s32.totalorder 0, 0
    // Predicated region
    $region30: #{tpu_custom_call.1} parent=1 // pred_check
      %p77 = pneg %p76
    $region31: #{tpu_custom_call.1} parent=1 // pred_check_branch
      %79 = sbr.rel (%p77) target = $region33
    $region32: #{tpu_custom_call.1} parent=1 // pred_region
      %80 = vst [vmem:[#allocation2] sm:$0xff] 0.0
      %81 = vst [vmem:[#allocation2 + $0x8] sm:$0xff] 0.0
      %82 = vst [vmem:[#allocation2 + $0x10] sm:$0xff] 0.0
      %83 = vst [vmem:[#allocation2 + $0x18] sm:$0xff] 0.0
      %84 = vst [vmem:[#allocation2 + $0x20] sm:$0xff] 0.0
      %85 = vst [vmem:[#allocation2 + $0x28] sm:$0xff] 0.0
    $region33: #{tpu_custom_call.1} parent=1 // pred_fallthru
      _
    %p86 = scmp.ne.s32.totalorder 0, 0
    // Predicated region
    $region34: #{tpu_custom_call.1} parent=1 // pred_check
      %p87 = pneg %p86
    $region35: #{tpu_custom_call.1} parent=1 // pred_check_branch
      %89 = sbr.rel (%p87) target = $region37
    $region36: #{tpu_custom_call.1} parent=1 // pred_region
      %v90 = vld [vmem:[#allocation2] sm:$0xff]
      %v91 = vld [vmem:[#allocation2 + $0x8] sm:$0xff]
      %v92 = vld [vmem:[#allocation2 + $0x10] sm:$0xff]
      %v93 = vld [vmem:[#allocation2 + $0x18] sm:$0xff]
      %v94 = vld [vmem:[#allocation2 + $0x20] sm:$0xff]
      %v95 = vld [vmem:[#allocation2 + $0x28] sm:$0xff]
      %v96 = vld [vmem:[#allocation4] sm:$0xff]
      %v97 = vld [vmem:[#allocation4 + $0x8] sm:$0xff]
      %v98 = vld [vmem:[#allocation4 + $0x10] sm:$0xff]
      %v99 = vld [vmem:[#allocation4 + $0x18] sm:$0xff]
      %v100 = vld [vmem:[#allocation4 + $0x20] sm:$0xff]
      %v101 = vld [vmem:[#allocation4 + $0x28] sm:$0xff]
      %v102 = vld [vmem:[#allocation4 + $0x30] sm:$0xff]
      %v103 = vld [vmem:[#allocation4 + $0x38] sm:$0xff]
      %v104 = vld [vmem:[#allocation4 + $0x40] sm:$0xff]
      %v105 = vld [vmem:[#allocation4 + $0x48] sm:$0xff]
      %v106 = vld [vmem:[#allocation4 + $0x50] sm:$0xff]
      %v107 = vld [vmem:[#allocation4 + $0x58] sm:$0xff]
      %v108 = vld [vmem:[#allocation4 + $0x60] sm:$0xff]
      %v109 = vld [vmem:[#allocation4 + $0x68] sm:$0xff]
      %v110 = vld [vmem:[#allocation4 + $0x70] sm:$0xff]
      %v111 = vld [vmem:[#allocation4 + $0x78] sm:$0xff]
      %v112 = vld [vmem:[#allocation4 + $0x80] sm:$0xff]
      %v113 = vld [vmem:[#allocation4 + $0x88] sm:$0xff]
      %v114 = vld [vmem:[#allocation4 + $0x90] sm:$0xff]
      %v115 = vld [vmem:[#allocation4 + $0x98] sm:$0xff]
      %v116 = vld [vmem:[#allocation4 + $0xa0] sm:$0xff]
      %v117 = vld [vmem:[#allocation4 + $0xa8] sm:$0xff]
      %v118 = vld [vmem:[#allocation4 + $0xb0] sm:$0xff]
      %v119 = vld [vmem:[#allocation4 + $0xb8] sm:$0xff]
      %v120 = vld [vmem:[#allocation4 + $0xc0] sm:$0xff]
      %v121 = vld [vmem:[#allocation4 + $0xc8] sm:$0xff]
      %v122 = vld [vmem:[#allocation4 + $0xd0] sm:$0xff]
      %v123 = vld [vmem:[#allocation4 + $0xd8] sm:$0xff]
      %v124 = vld [vmem:[#allocation4 + $0xe0] sm:$0xff]
      %v125 = vld [vmem:[#allocation4 + $0xe8] sm:$0xff]
      %v126 = vld [vmem:[#allocation4 + $0xf0] sm:$0xff]
      %v127 = vld [vmem:[#allocation4 + $0xf8] sm:$0xff]
      %v128 = vld [vmem:[#allocation4 + $0x100] sm:$0xff]
      %v129 = vld [vmem:[#allocation4 + $0x108] sm:$0xff]
      %v130 = vld [vmem:[#allocation4 + $0x110] sm:$0xff]
      %v131 = vld [vmem:[#allocation4 + $0x118] sm:$0xff]
      %v132 = vld [vmem:[#allocation4 + $0x120] sm:$0xff]
      %v133 = vld [vmem:[#allocation4 + $0x128] sm:$0xff]
      %v134 = vld [vmem:[#allocation4 + $0x130] sm:$0xff]
      %v135 = vld [vmem:[#allocation4 + $0x138] sm:$0xff]
      %v136 = vld [vmem:[#allocation4 + $0x140] sm:$0xff]
      %v137 = vld [vmem:[#allocation4 + $0x148] sm:$0xff]
      %v138 = vld [vmem:[#allocation4 + $0x150] sm:$0xff]
      %v139 = vld [vmem:[#allocation4 + $0x158] sm:$0xff]
      %v140 = vld [vmem:[#allocation4 + $0x160] sm:$0xff]
      %v141 = vld [vmem:[#allocation4 + $0x168] sm:$0xff]
      %v142 = vld [vmem:[#allocation4 + $0x170] sm:$0xff]
      %v143 = vld [vmem:[#allocation4 + $0x178] sm:$0xff]
      %v144 = vunpack.c.l.bf16 %v96
      %v145 = vunpack.c.h.bf16 %v96
      %v146 = vunpack.c.l.bf16 %v97
      %v147 = vunpack.c.h.bf16 %v97
      %v148 = vunpack.c.l.bf16 %v98
      %v149 = vunpack.c.h.bf16 %v98
      %v150 = vunpack.c.l.bf16 %v99
      %v151 = vunpack.c.h.bf16 %v99
      %v152 = vunpack.c.l.bf16 %v100
      %v153 = vunpack.c.h.bf16 %v100
      %v154 = vunpack.c.l.bf16 %v101
      %v155 = vunpack.c.h.bf16 %v101
      %v156 = vunpack.c.l.bf16 %v102
      %v157 = vunpack.c.h.bf16 %v102
      %v158 = vunpack.c.l.bf16 %v103
      %v159 = vunpack.c.h.bf16 %v103
      %v160 = vunpack.c.l.bf16 %v104
      %v161 = vunpack.c.h.bf16 %v104
      %v162 = vunpack.c.l.bf16 %v105
      %v163 = vunpack.c.h.bf16 %v105
      %v164 = vunpack.c.l.bf16 %v106
      %v165 = vunpack.c.h.bf16 %v106
      %v166 = vunpack.c.l.bf16 %v107
      %v167 = vunpack.c.h.bf16 %v107
      %v168 = vunpack.c.l.bf16 %v108
      %v169 = vunpack.c.h.bf16 %v108
      %v170 = vunpack.c.l.bf16 %v109
      %v171 = vunpack.c.h.bf16 %v109
      %v172 = vunpack.c.l.bf16 %v110
      %v173 = vunpack.c.h.bf16 %v110
      %v174 = vunpack.c.l.bf16 %v111
      %v175 = vunpack.c.h.bf16 %v111
      %v176 = vunpack.c.l.bf16 %v112
      %v177 = vunpack.c.h.bf16 %v112
      %v178 = vunpack.c.l.bf16 %v113
      %v179 = vunpack.c.h.bf16 %v113
      %v180 = vunpack.c.l.bf16 %v114
      %v181 = vunpack.c.h.bf16 %v114
      %v182 = vunpack.c.l.bf16 %v115
      %v183 = vunpack.c.h.bf16 %v115
      %v184 = vunpack.c.l.bf16 %v116
      %v185 = vunpack.c.h.bf16 %v116
      %v186 = vunpack.c.l.bf16 %v117
      %v187 = vunpack.c.h.bf16 %v117
      %v188 = vunpack.c.l.bf16 %v118
      %v189 = vunpack.c.h.bf16 %v118
      %v190 = vunpack.c.l.bf16 %v119
      %v191 = vunpack.c.h.bf16 %v119
      %v192 = vunpack.c.l.bf16 %v120
      %v193 = vunpack.c.h.bf16 %v120
      %v194 = vunpack.c.l.bf16 %v121
      %v195 = vunpack.c.h.bf16 %v121
      %v196 = vunpack.c.l.bf16 %v122
      %v197 = vunpack.c.h.bf16 %v122
      %v198 = vunpack.c.l.bf16 %v123
      %v199 = vunpack.c.h.bf16 %v123
      %v200 = vunpack.c.l.bf16 %v124
      %v201 = vunpack.c.h.bf16 %v124
      %v202 = vunpack.c.l.bf16 %v125
      %v203 = vunpack.c.h.bf16 %v125
      %v204 = vunpack.c.l.bf16 %v126
      %v205 = vunpack.c.h.bf16 %v126
      %v206 = vunpack.c.l.bf16 %v127
      %v207 = vunpack.c.h.bf16 %v127
      %v208 = vunpack.c.l.bf16 %v128
      %v209 = vunpack.c.h.bf16 %v128
      %v210 = vunpack.c.l.bf16 %v129
      %v211 = vunpack.c.h.bf16 %v129
      %v212 = vunpack.c.l.bf16 %v130
      %v213 = vunpack.c.h.bf16 %v130
      %v214 = vunpack.c.l.bf16 %v131
      %v215 = vunpack.c.h.bf16 %v131
      %v216 = vunpack.c.l.bf16 %v132
      %v217 = vunpack.c.h.bf16 %v132
      %v218 = vunpack.c.l.bf16 %v133
      %v219 = vunpack.c.h.bf16 %v133
      %v220 = vunpack.c.l.bf16 %v134
      %v221 = vunpack.c.h.bf16 %v134
      %v222 = vunpack.c.l.bf16 %v135
      %v223 = vunpack.c.h.bf16 %v135
      %v224 = vunpack.c.l.bf16 %v136
      %v225 = vunpack.c.h.bf16 %v136
      %v226 = vunpack.c.l.bf16 %v137
      %v227 = vunpack.c.h.bf16 %v137
      %v228 = vunpack.c.l.bf16 %v138
      %v229 = vunpack.c.h.bf16 %v138
      %v230 = vunpack.c.l.bf16 %v139
      %v231 = vunpack.c.h.bf16 %v139
      %v232 = vunpack.c.l.bf16 %v140
      %v233 = vunpack.c.h.bf16 %v140
      %v234 = vunpack.c.l.bf16 %v141
      %v235 = vunpack.c.h.bf16 %v141
      %v236 = vunpack.c.l.bf16 %v142
      %v237 = vunpack.c.h.bf16 %v142
      %v238 = vunpack.c.l.bf16 %v143
      %v239 = vunpack.c.h.bf16 %v143
      %v240 = vadd.f32 %v144, %v150
      %v241 = vrot.slane %v240, 4
      %v242 = vadd.f32 %v240, %v241
      %v243 = vrot.slane %v242, 2
      %v244 = vadd.f32 %v242, %v243
      %v245 = vrot.slane %v244, 1
      %v246 = vadd.f32 %v244, %v245
      %v247 = vadd.f32 %v145, %v151
      %v248 = vrot.slane %v247, 4
      %v249 = vadd.f32 %v247, %v248
      %v250 = vrot.slane %v249, 2
      %v251 = vadd.f32 %v249, %v250
      %v252 = vrot.slane %v251, 1
      %v253 = vadd.f32 %v251, %v252
      %v254 = vadd.f32 %v146, %v152
      %v255 = vrot.slane %v254, 4
      %v256 = vadd.f32 %v254, %v255
      %v257 = vrot.slane %v256, 2
      %v258 = vadd.f32 %v256, %v257
      %v259 = vrot.slane %v258, 1
      %v260 = vadd.f32 %v258, %v259
      %v261 = vadd.f32 %v147, %v153
      %v262 = vrot.slane %v261, 4
      %v263 = vadd.f32 %v261, %v262
      %v264 = vrot.slane %v263, 2
      %v265 = vadd.f32 %v263, %v264
      %v266 = vrot.slane %v265, 1
      %v267 = vadd.f32 %v265, %v266
      %v268 = vadd.f32 %v148, %v154
      %v269 = vrot.slane %v268, 4
      %v270 = vadd.f32 %v268, %v269
      %v271 = vrot.slane %v270, 2
      %v272 = vadd.f32 %v270, %v271
      %v273 = vrot.slane %v272, 1
      %v274 = vadd.f32 %v272, %v273
      %v275 = vadd.f32 %v149, %v155
      %v276 = vrot.slane %v275, 4
      %v277 = vadd.f32 %v275, %v276
      %v278 = vrot.slane %v277, 2
      %v279 = vadd.f32 %v277, %v278
      %v280 = vrot.slane %v279, 1
      %v281 = vadd.f32 %v279, %v280
      %v282 = vadd.f32 %v156, %v162
      %v283 = vrot.slane %v282, 4
      %v284 = vadd.f32 %v282, %v283
      %v285 = vrot.slane %v284, 2
      %v286 = vadd.f32 %v284, %v285
      %v287 = vrot.slane %v286, 1
      %v288 = vadd.f32 %v286, %v287
      %v289 = vadd.f32 %v157, %v163
      %v290 = vrot.slane %v289, 4
      %v291 = vadd.f32 %v289, %v290
      %v292 = vrot.slane %v291, 2
      %v293 = vadd.f32 %v291, %v292
      %v294 = vrot.slane %v293, 1
      %v295 = vadd.f32 %v293, %v294
      %v296 = vadd.f32 %v158, %v164
      %v297 = vrot.slane %v296, 4
      %v298 = vadd.f32 %v296, %v297
      %v299 = vrot.slane %v298, 2
      %v300 = vadd.f32 %v298, %v299
      %v301 = vrot.slane %v300, 1
      %v302 = vadd.f32 %v300, %v301
      %v303 = vadd.f32 %v159, %v165
      %v304 = vrot.slane %v303, 4
      %v305 = vadd.f32 %v303, %v304
      %v306 = vrot.slane %v305, 2
      %v307 = vadd.f32 %v305, %v306
      %v308 = vrot.slane %v307, 1
      %v309 = vadd.f32 %v307, %v308
      %v310 = vadd.f32 %v160, %v166
      %v311 = vrot.slane %v310, 4
      %v312 = vadd.f32 %v310, %v311
      %v313 = vrot.slane %v312, 2
      %v314 = vadd.f32 %v312, %v313
      %v315 = vrot.slane %v314, 1
      %v316 = vadd.f32 %v314, %v315
      %v317 = vadd.f32 %v161, %v167
      %v318 = vrot.slane %v317, 4
      %v319 = vadd.f32 %v317, %v318
      %v320 = vrot.slane %v319, 2
      %v321 = vadd.f32 %v319, %v320
      %v322 = vrot.slane %v321, 1
      %v323 = vadd.f32 %v321, %v322
      %v324 = vadd.f32 %v168, %v174
      %v325 = vrot.slane %v324, 4
      %v326 = vadd.f32 %v324, %v325
      %v327 = vrot.slane %v326, 2
      %v328 = vadd.f32 %v326, %v327
      %v329 = vrot.slane %v328, 1
      %v330 = vadd.f32 %v328, %v329
      %v331 = vadd.f32 %v169, %v175
      %v332 = vrot.slane %v331, 4
      %v333 = vadd.f32 %v331, %v332
      %v334 = vrot.slane %v333, 2
      %v335 = vadd.f32 %v333, %v334
      %v336 = vrot.slane %v335, 1
      %v337 = vadd.f32 %v335, %v336
      %v338 = vadd.f32 %v170, %v176
      %v339 = vrot.slane %v338, 4
      %v340 = vadd.f32 %v338, %v339
      %v341 = vrot.slane %v340, 2
      %v342 = vadd.f32 %v340, %v341
      %v343 = vrot.slane %v342, 1
      %v344 = vadd.f32 %v342, %v343
      %v345 = vadd.f32 %v171, %v177
      %v346 = vrot.slane %v345, 4
      %v347 = vadd.f32 %v345, %v346
      %v348 = vrot.slane %v347, 2
      %v349 = vadd.f32 %v347, %v348
      %v350 = vrot.slane %v349, 1
      %v351 = vadd.f32 %v349, %v350
      %v352 = vadd.f32 %v172, %v178
      %v353 = vrot.slane %v352, 4
      %v354 = vadd.f32 %v352, %v353
      %v355 = vrot.slane %v354, 2
      %v356 = vadd.f32 %v354, %v355
      %v357 = vrot.slane %v356, 1
      %v358 = vadd.f32 %v356, %v357
      %v359 = vadd.f32 %v173, %v179
      %v360 = vrot.slane %v359, 4
      %v361 = vadd.f32 %v359, %v360
      %v362 = vrot.slane %v361, 2
      %v363 = vadd.f32 %v361, %v362
      %v364 = vrot.slane %v363, 1
      %v365 = vadd.f32 %v363, %v364
      %v366 = vadd.f32 %v180, %v186
      %v367 = vrot.slane %v366, 4
      %v368 = vadd.f32 %v366, %v367
      %v369 = vrot.slane %v368, 2
      %v370 = vadd.f32 %v368, %v369
      %v371 = vrot.slane %v370, 1
      %v372 = vadd.f32 %v370, %v371
      %v373 = vadd.f32 %v181, %v187
      %v374 = vrot.slane %v373, 4
      %v375 = vadd.f32 %v373, %v374
      %v376 = vrot.slane %v375, 2
      %v377 = vadd.f32 %v375, %v376
      %v378 = vrot.slane %v377, 1
      %v379 = vadd.f32 %v377, %v378
      %v380 = vadd.f32 %v182, %v188
      %v381 = vrot.slane %v380, 4
      %v382 = vadd.f32 %v380, %v381
      %v383 = vrot.slane %v382, 2
      %v384 = vadd.f32 %v382, %v383
      %v385 = vrot.slane %v384, 1
      %v386 = vadd.f32 %v384, %v385
      %v387 = vadd.f32 %v183, %v189
      %v388 = vrot.slane %v387, 4
      %v389 = vadd.f32 %v387, %v388
      %v390 = vrot.slane %v389, 2
      %v391 = vadd.f32 %v389, %v390
      %v392 = vrot.slane %v391, 1
      %v393 = vadd.f32 %v391, %v392
      %v394 = vadd.f32 %v184, %v190
      %v395 = vrot.slane %v394, 4
      %v396 = vadd.f32 %v394, %v395
      %v397 = vrot.slane %v396, 2
      %v398 = vadd.f32 %v396, %v397
      %v399 = vrot.slane %v398, 1
      %v400 = vadd.f32 %v398, %v399
      %v401 = vadd.f32 %v185, %v191
      %v402 = vrot.slane %v401, 4
      %v403 = vadd.f32 %v401, %v402
      %v404 = vrot.slane %v403, 2
      %v405 = vadd.f32 %v403, %v404
      %v406 = vrot.slane %v405, 1
      %v407 = vadd.f32 %v405, %v406
      %v408 = vadd.f32 %v192, %v198
      %v409 = vrot.slane %v408, 4
      %v410 = vadd.f32 %v408, %v409
      %v411 = vrot.slane %v410, 2
      %v412 = vadd.f32 %v410, %v411
      %v413 = vrot.slane %v412, 1
      %v414 = vadd.f32 %v412, %v413
      %v415 = vadd.f32 %v193, %v199
      %v416 = vrot.slane %v415, 4
      %v417 = vadd.f32 %v415, %v416
      %v418 = vrot.slane %v417, 2
      %v419 = vadd.f32 %v417, %v418
      %v420 = vrot.slane %v419, 1
      %v421 = vadd.f32 %v419, %v420
      %v422 = vadd.f32 %v194, %v200
      %v423 = vrot.slane %v422, 4
      %v424 = vadd.f32 %v422, %v423
      %v425 = vrot.slane %v424, 2
      %v426 = vadd.f32 %v424, %v425
      %v427 = vrot.slane %v426, 1
      %v428 = vadd.f32 %v426, %v427
      %v429 = vadd.f32 %v195, %v201
      %v430 = vrot.slane %v429, 4
      %v431 = vadd.f32 %v429, %v430
      %v432 = vrot.slane %v431, 2
      %v433 = vadd.f32 %v431, %v432
      %v434 = vrot.slane %v433, 1
      %v435 = vadd.f32 %v433, %v434
      %v436 = vadd.f32 %v196, %v202
      %v437 = vrot.slane %v436, 4
      %v438 = vadd.f32 %v436, %v437
      %v439 = vrot.slane %v438, 2
      %v440 = vadd.f32 %v438, %v439
      %v441 = vrot.slane %v440, 1
      %v442 = vadd.f32 %v440, %v441
      %v443 = vadd.f32 %v197, %v203
      %v444 = vrot.slane %v443, 4
      %v445 = vadd.f32 %v443, %v444
      %v446 = vrot.slane %v445, 2
      %v447 = vadd.f32 %v445, %v446
      %v448 = vrot.slane %v447, 1
      %v449 = vadd.f32 %v447, %v448
      %v450 = vadd.f32 %v204, %v210
      %v451 = vrot.slane %v450, 4
      %v452 = vadd.f32 %v450, %v451
      %v453 = vrot.slane %v452, 2
      %v454 = vadd.f32 %v452, %v453
      %v455 = vrot.slane %v454, 1
      %v456 = vadd.f32 %v454, %v455
      %v457 = vadd.f32 %v205, %v211
      %v458 = vrot.slane %v457, 4
      %v459 = vadd.f32 %v457, %v458
      %v460 = vrot.slane %v459, 2
      %v461 = vadd.f32 %v459, %v460
      %v462 = vrot.slane %v461, 1
      %v463 = vadd.f32 %v461, %v462
      %v464 = vadd.f32 %v206, %v212
      %v465 = vrot.slane %v464, 4
      %v466 = vadd.f32 %v464, %v465
      %v467 = vrot.slane %v466, 2
      %v468 = vadd.f32 %v466, %v467
      %v469 = vrot.slane %v468, 1
      %v470 = vadd.f32 %v468, %v469
      %v471 = vadd.f32 %v207, %v213
      %v472 = vrot.slane %v471, 4
      %v473 = vadd.f32 %v471, %v472
      %v474 = vrot.slane %v473, 2
      %v475 = vadd.f32 %v473, %v474
      %v476 = vrot.slane %v475, 1
      %v477 = vadd.f32 %v475, %v476
      %v478 = vadd.f32 %v208, %v214
      %v479 = vrot.slane %v478, 4
      %v480 = vadd.f32 %v478, %v479
      %v481 = vrot.slane %v480, 2
      %v482 = vadd.f32 %v480, %v481
      %v483 = vrot.slane %v482, 1
      %v484 = vadd.f32 %v482, %v483
      %v485 = vadd.f32 %v209, %v215
      %v486 = vrot.slane %v485, 4
      %v487 = vadd.f32 %v485, %v486
      %v488 = vrot.slane %v487, 2
      %v489 = vadd.f32 %v487, %v488
      %v490 = vrot.slane %v489, 1
      %v491 = vadd.f32 %v489, %v490
      %v492 = vadd.f32 %v216, %v222
      %v493 = vrot.slane %v492, 4
      %v494 = vadd.f32 %v492, %v493
      %v495 = vrot.slane %v494, 2
      %v496 = vadd.f32 %v494, %v495
      %v497 = vrot.slane %v496, 1
      %v498 = vadd.f32 %v496, %v497
      %v499 = vadd.f32 %v217, %v223
      %v500 = vrot.slane %v499, 4
      %v501 = vadd.f32 %v499, %v500
      %v502 = vrot.slane %v501, 2
      %v503 = vadd.f32 %v501, %v502
      %v504 = vrot.slane %v503, 1
      %v505 = vadd.f32 %v503, %v504
      %v506 = vadd.f32 %v218, %v224
      %v507 = vrot.slane %v506, 4
      %v508 = vadd.f32 %v506, %v507
      %v509 = vrot.slane %v508, 2
      %v510 = vadd.f32 %v508, %v509
      %v511 = vrot.slane %v510, 1
      %v512 = vadd.f32 %v510, %v511
      %v513 = vadd.f32 %v219, %v225
      %v514 = vrot.slane %v513, 4
      %v515 = vadd.f32 %v513, %v514
      %v516 = vrot.slane %v515, 2
      %v517 = vadd.f32 %v515, %v516
      %v518 = vrot.slane %v517, 1
      %v519 = vadd.f32 %v517, %v518
      %v520 = vadd.f32 %v220, %v226
      %v521 = vrot.slane %v520, 4
      %v522 = vadd.f32 %v520, %v521
      %v523 = vrot.slane %v522, 2
      %v524 = vadd.f32 %v522, %v523
      %v525 = vrot.slane %v524, 1
      %v526 = vadd.f32 %v524, %v525
      %v527 = vadd.f32 %v221, %v227
      %v528 = vrot.slane %v527, 4
      %v529 = vadd.f32 %v527, %v528
      %v530 = vrot.slane %v529, 2
      %v531 = vadd.f32 %v529, %v530
      %v532 = vrot.slane %v531, 1
      %v533 = vadd.f32 %v531, %v532
      %v534 = vadd.f32 %v228, %v234
      %v535 = vrot.slane %v534, 4
      %v536 = vadd.f32 %v534, %v535
      %v537 = vrot.slane %v536, 2
      %v538 = vadd.f32 %v536, %v537
      %v539 = vrot.slane %v538, 1
      %v540 = vadd.f32 %v538, %v539
      %v541 = vadd.f32 %v229, %v235
      %v542 = vrot.slane %v541, 4
      %v543 = vadd.f32 %v541, %v542
      %v544 = vrot.slane %v543, 2
      %v545 = vadd.f32 %v543, %v544
      %v546 = vrot.slane %v545, 1
      %v547 = vadd.f32 %v545, %v546
      %v548 = vadd.f32 %v230, %v236
      %v549 = vrot.slane %v548, 4
      %v550 = vadd.f32 %v548, %v549
      %v551 = vrot.slane %v550, 2
      %v552 = vadd.f32 %v550, %v551
      %v553 = vrot.slane %v552, 1
      %v554 = vadd.f32 %v552, %v553
      %v555 = vadd.f32 %v231, %v237
      %v556 = vrot.slane %v555, 4
      %v557 = vadd.f32 %v555, %v556
      %v558 = vrot.slane %v557, 2
      %v559 = vadd.f32 %v557, %v558
      %v560 = vrot.slane %v559, 1
      %v561 = vadd.f32 %v559, %v560
      %v562 = vadd.f32 %v232, %v238
      %v563 = vrot.slane %v562, 4
      %v564 = vadd.f32 %v562, %v563
      %v565 = vrot.slane %v564, 2
      %v566 = vadd.f32 %v564, %v565
      %v567 = vrot.slane %v566, 1
      %v568 = vadd.f32 %v566, %v567
      %v569 = vadd.f32 %v233, %v239
      %v570 = vrot.slane %v569, 4
      %v571 = vadd.f32 %v569, %v570
      %v572 = vrot.slane %v571, 2
      %v573 = vadd.f32 %v571, %v572
      %v574 = vrot.slane %v573, 1
      %v575 = vadd.f32 %v573, %v574
      %vm624 = vcmask 1041409
      %v625 = vsel %vm624, %v288, %v246
      %vm626 = vcmask 1042434
      %v627 = vsel %vm626, %v330, %v625
      %vm628 = vcmask 1043459
      %v629 = vsel %vm628, %v372, %v627
      %vm630 = vcmask 1044484
      %v631 = vsel %vm630, %v414, %v629
      %vm632 = vcmask 1045509
      %v633 = vsel %vm632, %v456, %v631
      %vm634 = vcmask 1046534
      %v635 = vsel %vm634, %v498, %v633
      %vm636 = vcmask 1047559
      %v637 = vsel %vm636, %v540, %v635
      %v638 = vsel %vm624, %v295, %v253
      %v639 = vsel %vm626, %v337, %v638
      %v640 = vsel %vm628, %v379, %v639
      %v641 = vsel %vm630, %v421, %v640
      %v642 = vsel %vm632, %v463, %v641
      %v643 = vsel %vm634, %v505, %v642
      %v644 = vsel %vm636, %v547, %v643
      %v645 = vsel %vm624, %v302, %v260
      %v646 = vsel %vm626, %v344, %v645
      %v647 = vsel %vm628, %v386, %v646
      %v648 = vsel %vm630, %v428, %v647
      %v649 = vsel %vm632, %v470, %v648
      %v650 = vsel %vm634, %v512, %v649
      %v651 = vsel %vm636, %v554, %v650
      %v652 = vsel %vm624, %v309, %v267
      %v653 = vsel %vm626, %v351, %v652
      %v654 = vsel %vm628, %v393, %v653
      %v655 = vsel %vm630, %v435, %v654
      %v656 = vsel %vm632, %v477, %v655
      %v657 = vsel %vm634, %v519, %v656
      %v658 = vsel %vm636, %v561, %v657
      %v659 = vsel %vm624, %v316, %v274
      %v660 = vsel %vm626, %v358, %v659
      %v661 = vsel %vm628, %v400, %v660
      %v662 = vsel %vm630, %v442, %v661
      %v663 = vsel %vm632, %v484, %v662
      %v664 = vsel %vm634, %v526, %v663
      %v665 = vsel %vm636, %v568, %v664
      %v666 = vsel %vm624, %v323, %v281
      %v667 = vsel %vm626, %v365, %v666
      %v668 = vsel %vm628, %v407, %v667
      %v669 = vsel %vm630, %v449, %v668
      %v670 = vsel %vm632, %v491, %v669
      %v671 = vsel %vm634, %v533, %v670
      %v672 = vsel %vm636, %v575, %v671
      %v679 = vadd.f32 %v90, %v637
      %v680 = vadd.f32 %v91, %v644
      %v681 = vadd.f32 %v92, %v651
      %v682 = vadd.f32 %v93, %v658
      %v683 = vadd.f32 %v94, %v665
      %v684 = vadd.f32 %v95, %v672
      %685 = vst [vmem:[#allocation2] sm:$0xff] %v679
      %686 = vst [vmem:[#allocation2 + $0x8] sm:$0xff] %v680
      %687 = vst [vmem:[#allocation2 + $0x10] sm:$0xff] %v681
      %688 = vst [vmem:[#allocation2 + $0x18] sm:$0xff] %v682
      %689 = vst [vmem:[#allocation2 + $0x20] sm:$0xff] %v683
      %690 = vst [vmem:[#allocation2 + $0x28] sm:$0xff] %v684
    $region37: #{tpu_custom_call.1} parent=1 // pred_fallthru
      _
    // Predicated region
    $region38: #{tpu_custom_call.1} parent=1 // pred_check
      %p691 = pneg %p76
    $region39: #{tpu_custom_call.1} parent=1 // pred_check_branch
      %693 = sbr.rel (%p691) target = $region41
    $region40: #{tpu_custom_call.1} parent=1 // pred_region
      %v694 = vld [vmem:[#allocation2] sm:$0xff]
      %v695 = vld [vmem:[#allocation2 + $0x8] sm:$0xff]
      %v696 = vld [vmem:[#allocation2 + $0x10] sm:$0xff]
      %v697 = vld [vmem:[#allocation2 + $0x18] sm:$0xff]
      %v698 = vld [vmem:[#allocation2 + $0x20] sm:$0xff]
      %v699 = vld [vmem:[#allocation2 + $0x28] sm:$0xff]
      %v700 = vld [vmem:[#allocation4] sm:$0xff]
      %v701 = vld [vmem:[#allocation4 + $0x8] sm:$0xff]
      %v702 = vld [vmem:[#allocation4 + $0x10] sm:$0xff]
      %v703 = vld [vmem:[#allocation4 + $0x30] sm:$0xff]
      %v704 = vld [vmem:[#allocation4 + $0x38] sm:$0xff]
      %v705 = vld [vmem:[#allocation4 + $0x40] sm:$0xff]
      %v706 = vld [vmem:[#allocation4 + $0x60] sm:$0xff]
      %v707 = vld [vmem:[#allocation4 + $0x68] sm:$0xff]
      %v708 = vld [vmem:[#allocation4 + $0x70] sm:$0xff]
      %v709 = vld [vmem:[#allocation4 + $0x90] sm:$0xff]
      %v710 = vld [vmem:[#allocation4 + $0x98] sm:$0xff]
      %v711 = vld [vmem:[#allocation4 + $0xa0] sm:$0xff]
      %v712 = vld [vmem:[#allocation4 + $0xc0] sm:$0xff]
      %v713 = vld [vmem:[#allocation4 + $0xc8] sm:$0xff]
      %v714 = vld [vmem:[#allocation4 + $0xd0] sm:$0xff]
      %v715 = vld [vmem:[#allocation4 + $0xf0] sm:$0xff]
      %v716 = vld [vmem:[#allocation4 + $0xf8] sm:$0xff]
      %v717 = vld [vmem:[#allocation4 + $0x100] sm:$0xff]
      %v718 = vld [vmem:[#allocation4 + $0x120] sm:$0xff]
      %v719 = vld [vmem:[#allocation4 + $0x128] sm:$0xff]
      %v720 = vld [vmem:[#allocation4 + $0x130] sm:$0xff]
      %v721 = vld [vmem:[#allocation4 + $0x150] sm:$0xff]
      %v722 = vld [vmem:[#allocation4 + $0x158] sm:$0xff]
      %v723 = vld [vmem:[#allocation4 + $0x160] sm:$0xff]
      %v724 = vunpack.c.l.bf16 %v700
      %v725 = vunpack.c.h.bf16 %v700
      %v726 = vunpack.c.l.bf16 %v701
      %v727 = vunpack.c.h.bf16 %v701
      %v728 = vunpack.c.l.bf16 %v702
      %v729 = vunpack.c.h.bf16 %v702
      %v730 = vunpack.c.l.bf16 %v703
      %v731 = vunpack.c.h.bf16 %v703
      %v732 = vunpack.c.l.bf16 %v704
      %v733 = vunpack.c.h.bf16 %v704
      %v734 = vunpack.c.l.bf16 %v705
      %v735 = vunpack.c.h.bf16 %v705
      %v736 = vunpack.c.l.bf16 %v706
      %v737 = vunpack.c.h.bf16 %v706
      %v738 = vunpack.c.l.bf16 %v707
      %v739 = vunpack.c.h.bf16 %v707
      %v740 = vunpack.c.l.bf16 %v708
      %v741 = vunpack.c.h.bf16 %v708
      %v742 = vunpack.c.l.bf16 %v709
      %v743 = vunpack.c.h.bf16 %v709
      %v744 = vunpack.c.l.bf16 %v710
      %v745 = vunpack.c.h.bf16 %v710
      %v746 = vunpack.c.l.bf16 %v711
      %v747 = vunpack.c.h.bf16 %v711
      %v748 = vunpack.c.l.bf16 %v712
      %v749 = vunpack.c.h.bf16 %v712
      %v750 = vunpack.c.l.bf16 %v713
      %v751 = vunpack.c.h.bf16 %v713
      %v752 = vunpack.c.l.bf16 %v714
      %v753 = vunpack.c.h.bf16 %v714
      %v754 = vunpack.c.l.bf16 %v715
      %v755 = vunpack.c.h.bf16 %v715
      %v756 = vunpack.c.l.bf16 %v716
      %v757 = vunpack.c.h.bf16 %v716
      %v758 = vunpack.c.l.bf16 %v717
      %v759 = vunpack.c.h.bf16 %v717
      %v760 = vunpack.c.l.bf16 %v718
      %v761 = vunpack.c.h.bf16 %v718
      %v762 = vunpack.c.l.bf16 %v719
      %v763 = vunpack.c.h.bf16 %v719
      %v764 = vunpack.c.l.bf16 %v720
      %v765 = vunpack.c.h.bf16 %v720
      %v766 = vunpack.c.l.bf16 %v721
      %v767 = vunpack.c.h.bf16 %v721
      %v768 = vunpack.c.l.bf16 %v722
      %v769 = vunpack.c.h.bf16 %v722
      %v770 = vunpack.c.l.bf16 %v723
      %v771 = vunpack.c.h.bf16 %v723
      %v772 = vrot.slane %v724, 4
      %v773 = vadd.f32 %v724, %v772
      %v774 = vrot.slane %v773, 2
      %v775 = vadd.f32 %v773, %v774
      %v776 = vrot.slane %v775, 1
      %v777 = vadd.f32 %v775, %v776
      %v778 = vrot.slane %v725, 4
      %v779 = vadd.f32 %v725, %v778
      %v780 = vrot.slane %v779, 2
      %v781 = vadd.f32 %v779, %v780
      %v782 = vrot.slane %v781, 1
      %v783 = vadd.f32 %v781, %v782
      %v784 = vrot.slane %v726, 4
      %v785 = vadd.f32 %v726, %v784
      %v786 = vrot.slane %v785, 2
      %v787 = vadd.f32 %v785, %v786
      %v788 = vrot.slane %v787, 1
      %v789 = vadd.f32 %v787, %v788
      %v790 = vrot.slane %v727, 4
      %v791 = vadd.f32 %v727, %v790
      %v792 = vrot.slane %v791, 2
      %v793 = vadd.f32 %v791, %v792
      %v794 = vrot.slane %v793, 1
      %v795 = vadd.f32 %v793, %v794
      %v796 = vrot.slane %v728, 4
      %v797 = vadd.f32 %v728, %v796
      %v798 = vrot.slane %v797, 2
      %v799 = vadd.f32 %v797, %v798
      %v800 = vrot.slane %v799, 1
      %v801 = vadd.f32 %v799, %v800
      %v802 = vrot.slane %v729, 4
      %v803 = vadd.f32 %v729, %v802
      %v804 = vrot.slane %v803, 2
      %v805 = vadd.f32 %v803, %v804
      %v806 = vrot.slane %v805, 1
      %v807 = vadd.f32 %v805, %v806
      %v808 = vrot.slane %v730, 4
      %v809 = vadd.f32 %v730, %v808
      %v810 = vrot.slane %v809, 2
      %v811 = vadd.f32 %v809, %v810
      %v812 = vrot.slane %v811, 1
      %v813 = vadd.f32 %v811, %v812
      %v814 = vrot.slane %v731, 4
      %v815 = vadd.f32 %v731, %v814
      %v816 = vrot.slane %v815, 2
      %v817 = vadd.f32 %v815, %v816
      %v818 = vrot.slane %v817, 1
      %v819 = vadd.f32 %v817, %v818
      %v820 = vrot.slane %v732, 4
      %v821 = vadd.f32 %v732, %v820
      %v822 = vrot.slane %v821, 2
      %v823 = vadd.f32 %v821, %v822
      %v824 = vrot.slane %v823, 1
      %v825 = vadd.f32 %v823, %v824
      %v826 = vrot.slane %v733, 4
      %v827 = vadd.f32 %v733, %v826
      %v828 = vrot.slane %v827, 2
      %v829 = vadd.f32 %v827, %v828
      %v830 = vrot.slane %v829, 1
      %v831 = vadd.f32 %v829, %v830
      %v832 = vrot.slane %v734, 4
      %v833 = vadd.f32 %v734, %v832
      %v834 = vrot.slane %v833, 2
      %v835 = vadd.f32 %v833, %v834
      %v836 = vrot.slane %v835, 1
      %v837 = vadd.f32 %v835, %v836
      %v838 = vrot.slane %v735, 4
      %v839 = vadd.f32 %v735, %v838
      %v840 = vrot.slane %v839, 2
      %v841 = vadd.f32 %v839, %v840
      %v842 = vrot.slane %v841, 1
      %v843 = vadd.f32 %v841, %v842
      %v844 = vrot.slane %v736, 4
      %v845 = vadd.f32 %v736, %v844
      %v846 = vrot.slane %v845, 2
      %v847 = vadd.f32 %v845, %v846
      %v848 = vrot.slane %v847, 1
      %v849 = vadd.f32 %v847, %v848
      %v850 = vrot.slane %v737, 4
      %v851 = vadd.f32 %v737, %v850
      %v852 = vrot.slane %v851, 2
      %v853 = vadd.f32 %v851, %v852
      %v854 = vrot.slane %v853, 1
      %v855 = vadd.f32 %v853, %v854
      %v856 = vrot.slane %v738, 4
      %v857 = vadd.f32 %v738, %v856
      %v858 = vrot.slane %v857, 2
      %v859 = vadd.f32 %v857, %v858
      %v860 = vrot.slane %v859, 1
      %v861 = vadd.f32 %v859, %v860
      %v862 = vrot.slane %v739, 4
      %v863 = vadd.f32 %v739, %v862
      %v864 = vrot.slane %v863, 2
      %v865 = vadd.f32 %v863, %v864
      %v866 = vrot.slane %v865, 1
      %v867 = vadd.f32 %v865, %v866
      %v868 = vrot.slane %v740, 4
      %v869 = vadd.f32 %v740, %v868
      %v870 = vrot.slane %v869, 2
      %v871 = vadd.f32 %v869, %v870
      %v872 = vrot.slane %v871, 1
      %v873 = vadd.f32 %v871, %v872
      %v874 = vrot.slane %v741, 4
      %v875 = vadd.f32 %v741, %v874
      %v876 = vrot.slane %v875, 2
      %v877 = vadd.f32 %v875, %v876
      %v878 = vrot.slane %v877, 1
      %v879 = vadd.f32 %v877, %v878
      %v880 = vrot.slane %v742, 4
      %v881 = vadd.f32 %v742, %v880
      %v882 = vrot.slane %v881, 2
      %v883 = vadd.f32 %v881, %v882
      %v884 = vrot.slane %v883, 1
      %v885 = vadd.f32 %v883, %v884
      %v886 = vrot.slane %v743, 4
      %v887 = vadd.f32 %v743, %v886
      %v888 = vrot.slane %v887, 2
      %v889 = vadd.f32 %v887, %v888
      %v890 = vrot.slane %v889, 1
      %v891 = vadd.f32 %v889, %v890
      %v892 = vrot.slane %v744, 4
      %v893 = vadd.f32 %v744, %v892
      %v894 = vrot.slane %v893, 2
      %v895 = vadd.f32 %v893, %v894
      %v896 = vrot.slane %v895, 1
      %v897 = vadd.f32 %v895, %v896
      %v898 = vrot.slane %v745, 4
      %v899 = vadd.f32 %v745, %v898
      %v900 = vrot.slane %v899, 2
      %v901 = vadd.f32 %v899, %v900
      %v902 = vrot.slane %v901, 1
      %v903 = vadd.f32 %v901, %v902
      %v904 = vrot.slane %v746, 4
      %v905 = vadd.f32 %v746, %v904
      %v906 = vrot.slane %v905, 2
      %v907 = vadd.f32 %v905, %v906
      %v908 = vrot.slane %v907, 1
      %v909 = vadd.f32 %v907, %v908
      %v910 = vrot.slane %v747, 4
      %v911 = vadd.f32 %v747, %v910
      %v912 = vrot.slane %v911, 2
      %v913 = vadd.f32 %v911, %v912
      %v914 = vrot.slane %v913, 1
      %v915 = vadd.f32 %v913, %v914
      %v916 = vrot.slane %v748, 4
      %v917 = vadd.f32 %v748, %v916
      %v918 = vrot.slane %v917, 2
      %v919 = vadd.f32 %v917, %v918
      %v920 = vrot.slane %v919, 1
      %v921 = vadd.f32 %v919, %v920
      %v922 = vrot.slane %v749, 4
      %v923 = vadd.f32 %v749, %v922
      %v924 = vrot.slane %v923, 2
      %v925 = vadd.f32 %v923, %v924
      %v926 = vrot.slane %v925, 1
      %v927 = vadd.f32 %v925, %v926
      %v928 = vrot.slane %v750, 4
      %v929 = vadd.f32 %v750, %v928
      %v930 = vrot.slane %v929, 2
      %v931 = vadd.f32 %v929, %v930
      %v932 = vrot.slane %v931, 1
      %v933 = vadd.f32 %v931, %v932
      %v934 = vrot.slane %v751, 4
      %v935 = vadd.f32 %v751, %v934
      %v936 = vrot.slane %v935, 2
      %v937 = vadd.f32 %v935, %v936
      %v938 = vrot.slane %v937, 1
      %v939 = vadd.f32 %v937, %v938
      %v940 = vrot.slane %v752, 4
      %v941 = vadd.f32 %v752, %v940
      %v942 = vrot.slane %v941, 2
      %v943 = vadd.f32 %v941, %v942
      %v944 = vrot.slane %v943, 1
      %v945 = vadd.f32 %v943, %v944
      %v946 = vrot.slane %v753, 4
      %v947 = vadd.f32 %v753, %v946
      %v948 = vrot.slane %v947, 2
      %v949 = vadd.f32 %v947, %v948
      %v950 = vrot.slane %v949, 1
      %v951 = vadd.f32 %v949, %v950
      %v952 = vrot.slane %v754, 4
      %v953 = vadd.f32 %v754, %v952
      %v954 = vrot.slane %v953, 2
      %v955 = vadd.f32 %v953, %v954
      %v956 = vrot.slane %v955, 1
      %v957 = vadd.f32 %v955, %v956
      %v958 = vrot.slane %v755, 4
      %v959 = vadd.f32 %v755, %v958
      %v960 = vrot.slane %v959, 2
      %v961 = vadd.f32 %v959, %v960
      %v962 = vrot.slane %v961, 1
      %v963 = vadd.f32 %v961, %v962
      %v964 = vrot.slane %v756, 4
      %v965 = vadd.f32 %v756, %v964
      %v966 = vrot.slane %v965, 2
      %v967 = vadd.f32 %v965, %v966
      %v968 = vrot.slane %v967, 1
      %v969 = vadd.f32 %v967, %v968
      %v970 = vrot.slane %v757, 4
      %v971 = vadd.f32 %v757, %v970
      %v972 = vrot.slane %v971, 2
      %v973 = vadd.f32 %v971, %v972
      %v974 = vrot.slane %v973, 1
      %v975 = vadd.f32 %v973, %v974
      %v976 = vrot.slane %v758, 4
      %v977 = vadd.f32 %v758, %v976
      %v978 = vrot.slane %v977, 2
      %v979 = vadd.f32 %v977, %v978
      %v980 = vrot.slane %v979, 1
      %v981 = vadd.f32 %v979, %v980
      %v982 = vrot.slane %v759, 4
      %v983 = vadd.f32 %v759, %v982
      %v984 = vrot.slane %v983, 2
      %v985 = vadd.f32 %v983, %v984
      %v986 = vrot.slane %v985, 1
      %v987 = vadd.f32 %v985, %v986
      %v988 = vrot.slane %v760, 4
      %v989 = vadd.f32 %v760, %v988
      %v990 = vrot.slane %v989, 2
      %v991 = vadd.f32 %v989, %v990
      %v992 = vrot.slane %v991, 1
      %v993 = vadd.f32 %v991, %v992
      %v994 = vrot.slane %v761, 4
      %v995 = vadd.f32 %v761, %v994
      %v996 = vrot.slane %v995, 2
      %v997 = vadd.f32 %v995, %v996
      %v998 = vrot.slane %v997, 1
      %v999 = vadd.f32 %v997, %v998
      %v1000 = vrot.slane %v762, 4
      %v1001 = vadd.f32 %v762, %v1000
      %v1002 = vrot.slane %v1001, 2
      %v1003 = vadd.f32 %v1001, %v1002
      %v1004 = vrot.slane %v1003, 1
      %v1005 = vadd.f32 %v1003, %v1004
      %v1006 = vrot.slane %v763, 4
      %v1007 = vadd.f32 %v763, %v1006
      %v1008 = vrot.slane %v1007, 2
      %v1009 = vadd.f32 %v1007, %v1008
      %v1010 = vrot.slane %v1009, 1
      %v1011 = vadd.f32 %v1009, %v1010
      %v1012 = vrot.slane %v764, 4
      %v1013 = vadd.f32 %v764, %v1012
      %v1014 = vrot.slane %v1013, 2
      %v1015 = vadd.f32 %v1013, %v1014
      %v1016 = vrot.slane %v1015, 1
      %v1017 = vadd.f32 %v1015, %v1016
      %v1018 = vrot.slane %v765, 4
      %v1019 = vadd.f32 %v765, %v1018
      %v1020 = vrot.slane %v1019, 2
      %v1021 = vadd.f32 %v1019, %v1020
      %v1022 = vrot.slane %v1021, 1
      %v1023 = vadd.f32 %v1021, %v1022
      %v1024 = vrot.slane %v766, 4
      %v1025 = vadd.f32 %v766, %v1024
      %v1026 = vrot.slane %v1025, 2
      %v1027 = vadd.f32 %v1025, %v1026
      %v1028 = vrot.slane %v1027, 1
      %v1029 = vadd.f32 %v1027, %v1028
      %v1030 = vrot.slane %v767, 4
      %v1031 = vadd.f32 %v767, %v1030
      %v1032 = vrot.slane %v1031, 2
      %v1033 = vadd.f32 %v1031, %v1032
      %v1034 = vrot.slane %v1033, 1
      %v1035 = vadd.f32 %v1033, %v1034
      %v1036 = vrot.slane %v768, 4
      %v1037 = vadd.f32 %v768, %v1036
      %v1038 = vrot.slane %v1037, 2
      %v1039 = vadd.f32 %v1037, %v1038
      %v1040 = vrot.slane %v1039, 1
      %v1041 = vadd.f32 %v1039, %v1040
      %v1042 = vrot.slane %v769, 4
      %v1043 = vadd.f32 %v769, %v1042
      %v1044 = vrot.slane %v1043, 2
      %v1045 = vadd.f32 %v1043, %v1044
      %v1046 = vrot.slane %v1045, 1
      %v1047 = vadd.f32 %v1045, %v1046
      %v1048 = vrot.slane %v770, 4
      %v1049 = vadd.f32 %v770, %v1048
      %v1050 = vrot.slane %v1049, 2
      %v1051 = vadd.f32 %v1049, %v1050
      %v1052 = vrot.slane %v1051, 1
      %v1053 = vadd.f32 %v1051, %v1052
      %v1054 = vrot.slane %v771, 4
      %v1055 = vadd.f32 %v771, %v1054
      %v1056 = vrot.slane %v1055, 2
      %v1057 = vadd.f32 %v1055, %v1056
      %v1058 = vrot.slane %v1057, 1
      %v1059 = vadd.f32 %v1057, %v1058
      %vm1108 = vcmask 1041409
      %v1109 = vsel %vm1108, %v813, %v777
      %vm1110 = vcmask 1042434
      %v1111 = vsel %vm1110, %v849, %v1109
      %vm1112 = vcmask 1043459
      %v1113 = vsel %vm1112, %v885, %v1111
      %vm1114 = vcmask 1044484
      %v1115 = vsel %vm1114, %v921, %v1113
      %vm1116 = vcmask 1045509
      %v1117 = vsel %vm1116, %v957, %v1115
      %vm1118 = vcmask 1046534
      %v1119 = vsel %vm1118, %v993, %v1117
      %vm1120 = vcmask 1047559
      %v1121 = vsel %vm1120, %v1029, %v1119
      %v1122 = vsel %vm1108, %v819, %v783
      %v1123 = vsel %vm1110, %v855, %v1122
      %v1124 = vsel %vm1112, %v891, %v1123
      %v1125 = vsel %vm1114, %v927, %v1124
      %v1126 = vsel %vm1116, %v963, %v1125
      %v1127 = vsel %vm1118, %v999, %v1126
      %v1128 = vsel %vm1120, %v1035, %v1127
      %v1129 = vsel %vm1108, %v825, %v789
      %v1130 = vsel %vm1110, %v861, %v1129
      %v1131 = vsel %vm1112, %v897, %v1130
      %v1132 = vsel %vm1114, %v933, %v1131
      %v1133 = vsel %vm1116, %v969, %v1132
      %v1134 = vsel %vm1118, %v1005, %v1133
      %v1135 = vsel %vm1120, %v1041, %v1134
      %v1136 = vsel %vm1108, %v831, %v795
      %v1137 = vsel %vm1110, %v867, %v1136
      %v1138 = vsel %vm1112, %v903, %v1137
      %v1139 = vsel %vm1114, %v939, %v1138
      %v1140 = vsel %vm1116, %v975, %v1139
      %v1141 = vsel %vm1118, %v1011, %v1140
      %v1142 = vsel %vm1120, %v1047, %v1141
      %v1143 = vsel %vm1108, %v837, %v801
      %v1144 = vsel %vm1110, %v873, %v1143
      %v1145 = vsel %vm1112, %v909, %v1144
      %v1146 = vsel %vm1114, %v945, %v1145
      %v1147 = vsel %vm1116, %v981, %v1146
      %v1148 = vsel %vm1118, %v1017, %v1147
      %v1149 = vsel %vm1120, %v1053, %v1148
      %v1150 = vsel %vm1108, %v843, %v807
      %v1151 = vsel %vm1110, %v879, %v1150
      %v1152 = vsel %vm1112, %v915, %v1151
      %v1153 = vsel %vm1114, %v951, %v1152
      %v1154 = vsel %vm1116, %v987, %v1153
      %v1155 = vsel %vm1118, %v1023, %v1154
      %v1156 = vsel %vm1120, %v1059, %v1155
      %v1163 = vadd.f32 %v694, %v1121
      %v1164 = vadd.f32 %v695, %v1128
      %v1165 = vadd.f32 %v696, %v1135
      %v1166 = vadd.f32 %v697, %v1142
      %v1167 = vadd.f32 %v698, %v1149
      %v1168 = vadd.f32 %v699, %v1156
      %1169 = vst [vmem:[#allocation2] sm:$0xff] %v1163
      %1170 = vst [vmem:[#allocation2 + $0x8] sm:$0xff] %v1164
      %1171 = vst [vmem:[#allocation2 + $0x10] sm:$0xff] %v1165
      %1172 = vst [vmem:[#allocation2 + $0x18] sm:$0xff] %v1166
      %1173 = vst [vmem:[#allocation2 + $0x20] sm:$0xff] %v1167
      %1174 = vst [vmem:[#allocation2 + $0x28] sm:$0xff] %v1168
      %v1175 = vld [vmem:[#allocation2] sm:$0xff]
      %v1176 = vld [vmem:[#allocation2 + $0x8] sm:$0xff]
      %v1177 = vld [vmem:[#allocation2 + $0x10] sm:$0xff]
      %v1178 = vld [vmem:[#allocation2 + $0x18] sm:$0xff]
      %v1179 = vld [vmem:[#allocation2 + $0x20] sm:$0xff]
      %v1180 = vld [vmem:[#allocation2 + $0x28] sm:$0xff]
      %v1181 = vmul.f32 %v1175, 0.125
      %v1182 = vmul.f32 %v1176, 0.125
      %v1183 = vmul.f32 %v1177, 0.125
      %v1184 = vmul.f32 %v1178, 0.125
      %v1185 = vmul.f32 %v1179, 0.125
      %v1186 = vmul.f32 %v1180, 0.125
      %v1187 = vld [vmem:[#allocation7] sm:$0xff]
      %v1188 = vld [vmem:[#allocation7 + $0x8] sm:$0xff]
      %v1189 = vld [vmem:[#allocation7 + $0x10] sm:$0xff]
      %v1190 = vld [vmem:[#allocation7 + $0x18] sm:$0xff]
      %v1191 = vld [vmem:[#allocation7 + $0x20] sm:$0xff]
      %v1192 = vld [vmem:[#allocation7 + $0x28] sm:$0xff]
      %v1193 = vld [vmem:[#allocation7 + $0x30] sm:$0xff]
      %v1194 = vld [vmem:[#allocation7 + $0x38] sm:$0xff]
      %v1195 = vld [vmem:[#allocation7 + $0x40] sm:$0xff]
      %v1196 = vld [vmem:[#allocation7 + $0x48] sm:$0xff]
      %v1197 = vld [vmem:[#allocation7 + $0x50] sm:$0xff]
      %v1198 = vld [vmem:[#allocation7 + $0x58] sm:$0xff]
      %v1199 = vld [vmem:[#allocation7 + $0x60] sm:$0xff]
      %v1200 = vld [vmem:[#allocation7 + $0x68] sm:$0xff]
      %v1201 = vld [vmem:[#allocation7 + $0x70] sm:$0xff]
      %v1202 = vld [vmem:[#allocation7 + $0x78] sm:$0xff]
      %v1203 = vld [vmem:[#allocation7 + $0x80] sm:$0xff]
      %v1204 = vld [vmem:[#allocation7 + $0x88] sm:$0xff]
      %v1205 = vld [vmem:[#allocation7 + $0x90] sm:$0xff]
      %v1206 = vld [vmem:[#allocation7 + $0x98] sm:$0xff]
      %v1207 = vld [vmem:[#allocation7 + $0xa0] sm:$0xff]
      %v1208 = vld [vmem:[#allocation7 + $0xa8] sm:$0xff]
      %v1209 = vld [vmem:[#allocation7 + $0xb0] sm:$0xff]
      %v1210 = vld [vmem:[#allocation7 + $0xb8] sm:$0xff]
      %v1211 = vld [vmem:[#allocation7 + $0xc0] sm:$0xff]
      %v1212 = vld [vmem:[#allocation7 + $0xc8] sm:$0xff]
      %v1213 = vld [vmem:[#allocation7 + $0xd0] sm:$0xff]
      %v1214 = vld [vmem:[#allocation7 + $0xd8] sm:$0xff]
      %v1215 = vld [vmem:[#allocation7 + $0xe0] sm:$0xff]
      %v1216 = vld [vmem:[#allocation7 + $0xe8] sm:$0xff]
      %v1217 = vld [vmem:[#allocation7 + $0xf0] sm:$0xff]
      %v1218 = vld [vmem:[#allocation7 + $0xf8] sm:$0xff]
      %v1219 = vld [vmem:[#allocation7 + $0x100] sm:$0xff]
      %v1220 = vld [vmem:[#allocation7 + $0x108] sm:$0xff]
      %v1221 = vld [vmem:[#allocation7 + $0x110] sm:$0xff]
      %v1222 = vld [vmem:[#allocation7 + $0x118] sm:$0xff]
      %v1223 = vld [vmem:[#allocation7 + $0x120] sm:$0xff]
      %v1224 = vld [vmem:[#allocation7 + $0x128] sm:$0xff]
      %v1225 = vld [vmem:[#allocation7 + $0x130] sm:$0xff]
      %v1226 = vld [vmem:[#allocation7 + $0x138] sm:$0xff]
      %v1227 = vld [vmem:[#allocation7 + $0x140] sm:$0xff]
      %v1228 = vld [vmem:[#allocation7 + $0x148] sm:$0xff]
      %v1229 = vld [vmem:[#allocation7 + $0x150] sm:$0xff]
      %v1230 = vld [vmem:[#allocation7 + $0x158] sm:$0xff]
      %v1231 = vld [vmem:[#allocation7 + $0x160] sm:$0xff]
      %v1232 = vld [vmem:[#allocation7 + $0x168] sm:$0xff]
      %v1233 = vld [vmem:[#allocation7 + $0x170] sm:$0xff]
      %v1234 = vld [vmem:[#allocation7 + $0x178] sm:$0xff]
      %v1235 = vld [vmem:[#allocation7 + $0x180] sm:$0xff]
      %v1236 = vld [vmem:[#allocation7 + $0x188] sm:$0xff]
      %v1237 = vld [vmem:[#allocation7 + $0x190] sm:$0xff]
      %v1238 = vld [vmem:[#allocation7 + $0x198] sm:$0xff]
      %v1239 = vld [vmem:[#allocation7 + $0x1a0] sm:$0xff]
      %v1240 = vld [vmem:[#allocation7 + $0x1a8] sm:$0xff]
      %v1241 = vld [vmem:[#allocation7 + $0x1b0] sm:$0xff]
      %v1242 = vld [vmem:[#allocation7 + $0x1b8] sm:$0xff]
      %v1243 = vld [vmem:[#allocation7 + $0x1c0] sm:$0xff]
      %v1244 = vld [vmem:[#allocation7 + $0x1c8] sm:$0xff]
      %v1245 = vld [vmem:[#allocation7 + $0x1d0] sm:$0xff]
      %v1246 = vld [vmem:[#allocation7 + $0x1d8] sm:$0xff]
      %v1247 = vld [vmem:[#allocation7 + $0x1e0] sm:$0xff]
      %v1248 = vld [vmem:[#allocation7 + $0x1e8] sm:$0xff]
      %v1249 = vld [vmem:[#allocation7 + $0x1f0] sm:$0xff]
      %v1250 = vld [vmem:[#allocation7 + $0x1f8] sm:$0xff]
      %v1251 = vld [vmem:[#allocation7 + $0x200] sm:$0xff]
      %v1252 = vld [vmem:[#allocation7 + $0x208] sm:$0xff]
      %v1253 = vld [vmem:[#allocation7 + $0x210] sm:$0xff]
      %v1254 = vld [vmem:[#allocation7 + $0x218] sm:$0xff]
      %v1255 = vld [vmem:[#allocation7 + $0x220] sm:$0xff]
      %v1256 = vld [vmem:[#allocation7 + $0x228] sm:$0xff]
      %v1257 = vld [vmem:[#allocation7 + $0x230] sm:$0xff]
      %v1258 = vld [vmem:[#allocation7 + $0x238] sm:$0xff]
      %v1259 = vld [vmem:[#allocation7 + $0x240] sm:$0xff]
      %v1260 = vld [vmem:[#allocation7 + $0x248] sm:$0xff]
      %v1261 = vld [vmem:[#allocation7 + $0x250] sm:$0xff]
      %v1262 = vld [vmem:[#allocation7 + $0x258] sm:$0xff]
      %v1263 = vld [vmem:[#allocation7 + $0x260] sm:$0xff]
      %v1264 = vld [vmem:[#allocation7 + $0x268] sm:$0xff]
      %v1265 = vld [vmem:[#allocation7 + $0x270] sm:$0xff]
      %v1266 = vld [vmem:[#allocation7 + $0x278] sm:$0xff]
      %v1267 = vld [vmem:[#allocation7 + $0x280] sm:$0xff]
      %v1268 = vld [vmem:[#allocation7 + $0x288] sm:$0xff]
      %v1269 = vld [vmem:[#allocation7 + $0x290] sm:$0xff]
      %v1270 = vld [vmem:[#allocation7 + $0x298] sm:$0xff]
      %v1271 = vld [vmem:[#allocation7 + $0x2a0] sm:$0xff]
      %v1272 = vld [vmem:[#allocation7 + $0x2a8] sm:$0xff]
      %v1273 = vld [vmem:[#allocation7 + $0x2b0] sm:$0xff]
      %v1274 = vld [vmem:[#allocation7 + $0x2b8] sm:$0xff]
      %v1275 = vld [vmem:[#allocation7 + $0x2c0] sm:$0xff]
      %v1276 = vld [vmem:[#allocation7 + $0x2c8] sm:$0xff]
      %v1277 = vld [vmem:[#allocation7 + $0x2d0] sm:$0xff]
      %v1278 = vld [vmem:[#allocation7 + $0x2d8] sm:$0xff]
      %v1279 = vld [vmem:[#allocation7 + $0x2e0] sm:$0xff]
      %v1280 = vld [vmem:[#allocation7 + $0x2e8] sm:$0xff]
      %v1281 = vld [vmem:[#allocation7 + $0x2f0] sm:$0xff]
      %v1282 = vld [vmem:[#allocation7 + $0x2f8] sm:$0xff]
      %v1283 = vld [vmem:[#allocation7 + $0x300] sm:$0xff]
      %v1284 = vld [vmem:[#allocation7 + $0x308] sm:$0xff]
      %v1285 = vld [vmem:[#allocation7 + $0x310] sm:$0xff]
      %v1286 = vld [vmem:[#allocation7 + $0x318] sm:$0xff]
      %v1287 = vld [vmem:[#allocation7 + $0x320] sm:$0xff]
      %v1288 = vld [vmem:[#allocation7 + $0x328] sm:$0xff]
      %v1289 = vld [vmem:[#allocation7 + $0x330] sm:$0xff]
      %v1290 = vld [vmem:[#allocation7 + $0x338] sm:$0xff]
      %v1291 = vld [vmem:[#allocation7 + $0x340] sm:$0xff]
      %v1292 = vld [vmem:[#allocation7 + $0x348] sm:$0xff]
      %v1293 = vld [vmem:[#allocation7 + $0x350] sm:$0xff]
      %v1294 = vld [vmem:[#allocation7 + $0x358] sm:$0xff]
      %v1295 = vld [vmem:[#allocation7 + $0x360] sm:$0xff]
      %v1296 = vld [vmem:[#allocation7 + $0x368] sm:$0xff]
      %v1297 = vld [vmem:[#allocation7 + $0x370] sm:$0xff]
      %v1298 = vld [vmem:[#allocation7 + $0x378] sm:$0xff]
      %v1299 = vld [vmem:[#allocation7 + $0x380] sm:$0xff]
      %v1300 = vld [vmem:[#allocation7 + $0x388] sm:$0xff]
      %v1301 = vld [vmem:[#allocation7 + $0x390] sm:$0xff]
      %v1302 = vld [vmem:[#allocation7 + $0x398] sm:$0xff]
      %v1303 = vld [vmem:[#allocation7 + $0x3a0] sm:$0xff]
      %v1304 = vld [vmem:[#allocation7 + $0x3a8] sm:$0xff]
      %v1305 = vld [vmem:[#allocation7 + $0x3b0] sm:$0xff]
      %v1306 = vld [vmem:[#allocation7 + $0x3b8] sm:$0xff]
      %v1307 = vld [vmem:[#allocation7 + $0x3c0] sm:$0xff]
      %v1308 = vld [vmem:[#allocation7 + $0x3c8] sm:$0xff]
      %v1309 = vld [vmem:[#allocation7 + $0x3d0] sm:$0xff]
      %v1310 = vld [vmem:[#allocation7 + $0x3d8] sm:$0xff]
      %v1311 = vld [vmem:[#allocation7 + $0x3e0] sm:$0xff]
      %v1312 = vld [vmem:[#allocation7 + $0x3e8] sm:$0xff]
      %v1313 = vld [vmem:[#allocation7 + $0x3f0] sm:$0xff]
      %v1314 = vld [vmem:[#allocation7 + $0x3f8] sm:$0xff]
      %v1315 = vld [vmem:[#allocation7 + $0x400] sm:$0xff]
      %v1316 = vld [vmem:[#allocation7 + $0x408] sm:$0xff]
      %v1317 = vld [vmem:[#allocation7 + $0x410] sm:$0xff]
      %v1318 = vld [vmem:[#allocation7 + $0x418] sm:$0xff]
      %v1319 = vld [vmem:[#allocation7 + $0x420] sm:$0xff]
      %v1320 = vld [vmem:[#allocation7 + $0x428] sm:$0xff]
      %v1321 = vld [vmem:[#allocation7 + $0x430] sm:$0xff]
      %v1322 = vld [vmem:[#allocation7 + $0x438] sm:$0xff]
      %v1323 = vld [vmem:[#allocation7 + $0x440] sm:$0xff]
      %v1324 = vld [vmem:[#allocation7 + $0x448] sm:$0xff]
      %v1325 = vld [vmem:[#allocation7 + $0x450] sm:$0xff]
      %v1326 = vld [vmem:[#allocation7 + $0x458] sm:$0xff]
      %v1327 = vld [vmem:[#allocation7 + $0x460] sm:$0xff]
      %v1328 = vld [vmem:[#allocation7 + $0x468] sm:$0xff]
      %v1329 = vld [vmem:[#allocation7 + $0x470] sm:$0xff]
      %v1330 = vld [vmem:[#allocation7 + $0x478] sm:$0xff]
      %v1331 = vld [vmem:[#allocation7 + $0x480] sm:$0xff]
      %v1332 = vld [vmem:[#allocation7 + $0x488] sm:$0xff]
      %v1333 = vld [vmem:[#allocation7 + $0x490] sm:$0xff]
      %v1334 = vld [vmem:[#allocation7 + $0x498] sm:$0xff]
      %v1335 = vld [vmem:[#allocation7 + $0x4a0] sm:$0xff]
      %v1336 = vld [vmem:[#allocation7 + $0x4a8] sm:$0xff]
      %v1337 = vld [vmem:[#allocation7 + $0x4b0] sm:$0xff]
      %v1338 = vld [vmem:[#allocation7 + $0x4b8] sm:$0xff]
      %v1339 = vld [vmem:[#allocation7 + $0x4c0] sm:$0xff]
      %v1340 = vld [vmem:[#allocation7 + $0x4c8] sm:$0xff]
      %v1341 = vld [vmem:[#allocation7 + $0x4d0] sm:$0xff]
      %v1342 = vld [vmem:[#allocation7 + $0x4d8] sm:$0xff]
      %v1343 = vld [vmem:[#allocation7 + $0x4e0] sm:$0xff]
      %v1344 = vld [vmem:[#allocation7 + $0x4e8] sm:$0xff]
      %v1345 = vld [vmem:[#allocation7 + $0x4f0] sm:$0xff]
      %v1346 = vld [vmem:[#allocation7 + $0x4f8] sm:$0xff]
      %v1347 = vld [vmem:[#allocation7 + $0x500] sm:$0xff]
      %v1348 = vld [vmem:[#allocation7 + $0x508] sm:$0xff]
      %v1349 = vld [vmem:[#allocation7 + $0x510] sm:$0xff]
      %v1350 = vld [vmem:[#allocation7 + $0x518] sm:$0xff]
      %v1351 = vld [vmem:[#allocation7 + $0x520] sm:$0xff]
      %v1352 = vld [vmem:[#allocation7 + $0x528] sm:$0xff]
      %v1353 = vld [vmem:[#allocation7 + $0x530] sm:$0xff]
      %v1354 = vld [vmem:[#allocation7 + $0x538] sm:$0xff]
      %v1355 = vld [vmem:[#allocation7 + $0x540] sm:$0xff]
      %v1356 = vld [vmem:[#allocation7 + $0x548] sm:$0xff]
      %v1357 = vld [vmem:[#allocation7 + $0x550] sm:$0xff]
      %v1358 = vld [vmem:[#allocation7 + $0x558] sm:$0xff]
      %v1359 = vld [vmem:[#allocation7 + $0x560] sm:$0xff]
      %v1360 = vld [vmem:[#allocation7 + $0x568] sm:$0xff]
      %v1361 = vld [vmem:[#allocation7 + $0x570] sm:$0xff]
      %v1362 = vld [vmem:[#allocation7 + $0x578] sm:$0xff]
      %v1363 = vld [vmem:[#allocation7 + $0x580] sm:$0xff]
      %v1364 = vld [vmem:[#allocation7 + $0x588] sm:$0xff]
      %v1365 = vld [vmem:[#allocation7 + $0x590] sm:$0xff]
      %v1366 = vld [vmem:[#allocation7 + $0x598] sm:$0xff]
      %v1367 = vld [vmem:[#allocation7 + $0x5a0] sm:$0xff]
      %v1368 = vld [vmem:[#allocation7 + $0x5a8] sm:$0xff]
      %v1369 = vld [vmem:[#allocation7 + $0x5b0] sm:$0xff]
      %v1370 = vld [vmem:[#allocation7 + $0x5b8] sm:$0xff]
      %v1371 = vld [vmem:[#allocation7 + $0x5c0] sm:$0xff]
      %v1372 = vld [vmem:[#allocation7 + $0x5c8] sm:$0xff]
      %v1373 = vld [vmem:[#allocation7 + $0x5d0] sm:$0xff]
      %v1374 = vld [vmem:[#allocation7 + $0x5d8] sm:$0xff]
      %v1375 = vld [vmem:[#allocation7 + $0x5e0] sm:$0xff]
      %v1376 = vld [vmem:[#allocation7 + $0x5e8] sm:$0xff]
      %v1377 = vld [vmem:[#allocation7 + $0x5f0] sm:$0xff]
      %v1378 = vld [vmem:[#allocation7 + $0x5f8] sm:$0xff]
      %v1379 = vld [vmem:[%s2] sm:$0x3]
      %v1381 = vlaneseq
      %v1382 = vshrl.u32 %v1381, 7
      %v1383 = vsub.s32 0, %v1382
      %v1384 = vrot.slane %v1379, %v1383
      %v1385 = vlaneseq
      %v1386 = vshrl.u32 %v1385, 7
      %v1387 = vsub.s32 1, %v1386
      %v1388 = vrot.slane %v1379, %v1387
      %1391 = vmatprep.subr.mxu0 %v1188
      %1392 = vmatpush1.msra.mxu0 %v1187
      %1393 = vmatprep.subr.mxu0 %v1190
      %1394 = vmatpush1.msra.mxu0 %v1189
      %1395 = vmatprep.subr.mxu0 %v1192
      %1396 = vmatpush1.msra.mxu0 %v1191
      %1397 = vmatprep.subr.mxu0 %v1194
      %1398 = vmatpush1.msra.mxu0 %v1193
      %1399 = vmatprep.subr.mxu0 %v1196
      %1400 = vmatpush1.msra.mxu0 %v1195
      %1401 = vmatprep.subr.mxu0 %v1198
      %1402 = vmatpush1.msra.mxu0 %v1197
      %1403 = vmatprep.subr.mxu0 %v1200
      %1404 = vmatpush1.msra.mxu0 %v1199
      %1405 = vmatprep.subr.mxu0 %v1202
      %1406 = vmatpush1.msra.mxu0 %v1201
      %1407 = vmatprep.subr.mxu0 %v1204
      %1408 = vmatpush1.msra.mxu0 %v1203
      %1409 = vmatprep.subr.mxu0 %v1206
      %1410 = vmatpush1.msra.mxu0 %v1205
      %1411 = vmatprep.subr.mxu0 %v1208
      %1412 = vmatpush1.msra.mxu0 %v1207
      %1413 = vmatprep.subr.mxu0 %v1210
      %1414 = vmatpush1.msra.mxu0 %v1209
      %1415 = vmatprep.subr.mxu0 %v1212
      %1416 = vmatpush1.msra.mxu0 %v1211
      %1417 = vmatprep.subr.mxu0 %v1214
      %1418 = vmatpush1.msra.mxu0 %v1213
      %1419 = vmatprep.subr.mxu0 %v1216
      %1420 = vmatpush1.msra.mxu0 %v1215
      %1421 = vmatprep.subr.mxu0 %v1218
      %1422 = vmatpush1.msra.mxu0 %v1217
      %1423 = vmatprep.subr.mxu0 %v1220
      %1424 = vmatpush1.msra.mxu0 %v1219
      %1425 = vmatprep.subr.mxu0 %v1222
      %1426 = vmatpush1.msra.mxu0 %v1221
      %1427 = vmatprep.subr.mxu0 %v1224
      %1428 = vmatpush1.msra.mxu0 %v1223
      %1429 = vmatprep.subr.mxu0 %v1226
      %1430 = vmatpush1.msra.mxu0 %v1225
      %1431 = vmatprep.subr.mxu0 %v1228
      %1432 = vmatpush1.msra.mxu0 %v1227
      %1433 = vmatprep.subr.mxu0 %v1230
      %1434 = vmatpush1.msra.mxu0 %v1229
      %1435 = vmatprep.subr.mxu0 %v1232
      %1436 = vmatpush1.msra.mxu0 %v1231
      %1437 = vmatprep.subr.mxu0 %v1234
      %1438 = vmatpush1.msra.mxu0 %v1233
      %1439 = vmatprep.subr.mxu0 %v1236
      %1440 = vmatpush1.msra.mxu0 %v1235
      %1441 = vmatprep.subr.mxu0 %v1238
      %1442 = vmatpush1.msra.mxu0 %v1237
      %1443 = vmatprep.subr.mxu0 %v1240
      %1444 = vmatpush1.msra.mxu0 %v1239
      %1445 = vmatprep.subr.mxu0 %v1242
      %1446 = vmatpush1.msra.mxu0 %v1241
      %1447 = vmatprep.subr.mxu0 %v1244
      %1448 = vmatpush1.msra.mxu0 %v1243
      %1449 = vmatprep.subr.mxu0 %v1246
      %1450 = vmatpush1.msra.mxu0 %v1245
      %1451 = vmatprep.subr.mxu0 %v1248
      %1452 = vmatpush1.msra.mxu0 %v1247
      %1453 = vmatprep.subr.mxu0 %v1250
      %1454 = vmatpush1.msra.mxu0 %v1249
      %1455 = vmatprep.mubr.f32.mxu0 %v1182
      %1456 = vmatmul.mubr.f32.gmra.mrb[0].mxu0 %v1181
      %v1457 = vpop.f32.mrb[0].mxu0
      %v1458 = vadd.f32 %v1384, %v1457
      %v1459 = vpop.f32.mrb[0].mxu0
      %v1460 = vadd.f32 %v1388, %v1459
      %1461 = vdwg.mxu0
      %1462 = vmatprep.subr.mxu0 %v1252
      %1463 = vmatpush1.msra.mxu0 %v1251
      %1464 = vmatprep.subr.mxu0 %v1254
      %1465 = vmatpush1.msra.mxu0 %v1253
      %1466 = vmatprep.subr.mxu0 %v1256
      %1467 = vmatpush1.msra.mxu0 %v1255
      %1468 = vmatprep.subr.mxu0 %v1258
      %1469 = vmatpush1.msra.mxu0 %v1257
      %1470 = vmatprep.subr.mxu0 %v1260
      %1471 = vmatpush1.msra.mxu0 %v1259
      %1472 = vmatprep.subr.mxu0 %v1262
      %1473 = vmatpush1.msra.mxu0 %v1261
      %1474 = vmatprep.subr.mxu0 %v1264
      %1475 = vmatpush1.msra.mxu0 %v1263
      %1476 = vmatprep.subr.mxu0 %v1266
      %1477 = vmatpush1.msra.mxu0 %v1265
      %1478 = vmatprep.subr.mxu0 %v1268
      %1479 = vmatpush1.msra.mxu0 %v1267
      %1480 = vmatprep.subr.mxu0 %v1270
      %1481 = vmatpush1.msra.mxu0 %v1269
      %1482 = vmatprep.subr.mxu0 %v1272
      %1483 = vmatpush1.msra.mxu0 %v1271
      %1484 = vmatprep.subr.mxu0 %v1274
      %1485 = vmatpush1.msra.mxu0 %v1273
      %1486 = vmatprep.subr.mxu0 %v1276
      %1487 = vmatpush1.msra.mxu0 %v1275
      %1488 = vmatprep.subr.mxu0 %v1278
      %1489 = vmatpush1.msra.mxu0 %v1277
      %1490 = vmatprep.subr.mxu0 %v1280
      %1491 = vmatpush1.msra.mxu0 %v1279
      %1492 = vmatprep.subr.mxu0 %v1282
      %1493 = vmatpush1.msra.mxu0 %v1281
      %1494 = vmatprep.subr.mxu0 %v1284
      %1495 = vmatpush1.msra.mxu0 %v1283
      %1496 = vmatprep.subr.mxu0 %v1286
      %1497 = vmatpush1.msra.mxu0 %v1285
      %1498 = vmatprep.subr.mxu0 %v1288
      %1499 = vmatpush1.msra.mxu0 %v1287
      %1500 = vmatprep.subr.mxu0 %v1290
      %1501 = vmatpush1.msra.mxu0 %v1289
      %1502 = vmatprep.subr.mxu0 %v1292
      %1503 = vmatpush1.msra.mxu0 %v1291
      %1504 = vmatprep.subr.mxu0 %v1294
      %1505 = vmatpush1.msra.mxu0 %v1293
      %1506 = vmatprep.subr.mxu0 %v1296
      %1507 = vmatpush1.msra.mxu0 %v1295
      %1508 = vmatprep.subr.mxu0 %v1298
      %1509 = vmatpush1.msra.mxu0 %v1297
      %1510 = vmatprep.subr.mxu0 %v1300
      %1511 = vmatpush1.msra.mxu0 %v1299
      %1512 = vmatprep.subr.mxu0 %v1302
      %1513 = vmatpush1.msra.mxu0 %v1301
      %1514 = vmatprep.subr.mxu0 %v1304
      %1515 = vmatpush1.msra.mxu0 %v1303
      %1516 = vmatprep.subr.mxu0 %v1306
      %1517 = vmatpush1.msra.mxu0 %v1305
      %1518 = vmatprep.subr.mxu0 %v1308
      %1519 = vmatpush1.msra.mxu0 %v1307
      %1520 = vmatprep.subr.mxu0 %v1310
      %1521 = vmatpush1.msra.mxu0 %v1309
      %1522 = vmatprep.subr.mxu0 %v1312
      %1523 = vmatpush1.msra.mxu0 %v1311
      %1524 = vmatprep.subr.mxu0 %v1314
      %1525 = vmatpush1.msra.mxu0 %v1313
      %1526 = vmatprep.mubr.f32.mxu0 %v1184
      %1527 = vmatmul.mubr.f32.gmra.mrb[0].mxu0 %v1183
      %v1528 = vpop.f32.mrb[0].mxu0
      %v1529 = vadd.f32 %v1458, %v1528
      %v1530 = vpop.f32.mrb[0].mxu0
      %v1531 = vadd.f32 %v1460, %v1530
      %1532 = vdwg.mxu0
      %1533 = vmatprep.subr.mxu0 %v1316
      %1534 = vmatpush1.msra.mxu0 %v1315
      %1535 = vmatprep.subr.mxu0 %v1318
      %1536 = vmatpush1.msra.mxu0 %v1317
      %1537 = vmatprep.subr.mxu0 %v1320
      %1538 = vmatpush1.msra.mxu0 %v1319
      %1539 = vmatprep.subr.mxu0 %v1322
      %1540 = vmatpush1.msra.mxu0 %v1321
      %1541 = vmatprep.subr.mxu0 %v1324
      %1542 = vmatpush1.msra.mxu0 %v1323
      %1543 = vmatprep.subr.mxu0 %v1326
      %1544 = vmatpush1.msra.mxu0 %v1325
      %1545 = vmatprep.subr.mxu0 %v1328
      %1546 = vmatpush1.msra.mxu0 %v1327
      %1547 = vmatprep.subr.mxu0 %v1330
      %1548 = vmatpush1.msra.mxu0 %v1329
      %1549 = vmatprep.subr.mxu0 %v1332
      %1550 = vmatpush1.msra.mxu0 %v1331
      %1551 = vmatprep.subr.mxu0 %v1334
      %1552 = vmatpush1.msra.mxu0 %v1333
      %1553 = vmatprep.subr.mxu0 %v1336
      %1554 = vmatpush1.msra.mxu0 %v1335
      %1555 = vmatprep.subr.mxu0 %v1338
      %1556 = vmatpush1.msra.mxu0 %v1337
      %1557 = vmatprep.subr.mxu0 %v1340
      %1558 = vmatpush1.msra.mxu0 %v1339
      %1559 = vmatprep.subr.mxu0 %v1342
      %1560 = vmatpush1.msra.mxu0 %v1341
      %1561 = vmatprep.subr.mxu0 %v1344
      %1562 = vmatpush1.msra.mxu0 %v1343
      %1563 = vmatprep.subr.mxu0 %v1346
      %1564 = vmatpush1.msra.mxu0 %v1345
      %1565 = vmatprep.subr.mxu0 %v1348
      %1566 = vmatpush1.msra.mxu0 %v1347
      %1567 = vmatprep.subr.mxu0 %v1350
      %1568 = vmatpush1.msra.mxu0 %v1349
      %1569 = vmatprep.subr.mxu0 %v1352
      %1570 = vmatpush1.msra.mxu0 %v1351
      %1571 = vmatprep.subr.mxu0 %v1354
      %1572 = vmatpush1.msra.mxu0 %v1353
      %1573 = vmatprep.subr.mxu0 %v1356
      %1574 = vmatpush1.msra.mxu0 %v1355
      %1575 = vmatprep.subr.mxu0 %v1358
      %1576 = vmatpush1.msra.mxu0 %v1357
      %1577 = vmatprep.subr.mxu0 %v1360
      %1578 = vmatpush1.msra.mxu0 %v1359
      %1579 = vmatprep.subr.mxu0 %v1362
      %1580 = vmatpush1.msra.mxu0 %v1361
      %1581 = vmatprep.subr.mxu0 %v1364
      %1582 = vmatpush1.msra.mxu0 %v1363
      %1583 = vmatprep.subr.mxu0 %v1366
      %1584 = vmatpush1.msra.mxu0 %v1365
      %1585 = vmatprep.subr.mxu0 %v1368
      %1586 = vmatpush1.msra.mxu0 %v1367
      %1587 = vmatprep.subr.mxu0 %v1370
      %1588 = vmatpush1.msra.mxu0 %v1369
      %1589 = vmatprep.subr.mxu0 %v1372
      %1590 = vmatpush1.msra.mxu0 %v1371
      %1591 = vmatprep.subr.mxu0 %v1374
      %1592 = vmatpush1.msra.mxu0 %v1373
      %1593 = vmatprep.subr.mxu0 %v1376
      %1594 = vmatpush1.msra.mxu0 %v1375
      %1595 = vmatprep.subr.mxu0 %v1378
      %1596 = vmatpush1.msra.mxu0 %v1377
      %1597 = vmatprep.mubr.f32.mxu0 %v1186
      %1598 = vmatmul.mubr.f32.gmra.mrb[0].mxu0 %v1185
      %v1599 = vpop.f32.mrb[0].mxu0
      %v1600 = vadd.f32 %v1529, %v1599
      %v1601 = vpop.f32.mrb[0].mxu0
      %v1602 = vadd.f32 %v1531, %v1601
      %1603 = vdwg.mxu0
      %v1604 = vmax.f32 %v1600, 0.0
      %v1605 = vmax.f32 %v1602, 0.0
      %v1606 = vld [vmem:[%s3] sm:$0x3]
      %v1608 = vlaneseq
      %v1609 = vshrl.u32 %v1608, 7
      %v1610 = vsub.s32 0, %v1609
      %v1611 = vrot.slane %v1606, %v1610
      %v1612 = vlaneseq
      %v1613 = vshrl.u32 %v1612, 7
      %v1614 = vsub.s32 1, %v1613
      %v1615 = vrot.slane %v1606, %v1614
      %v1618 = vmul.f32 %v1604, %v1611
      %v1619 = vmul.f32 %v1605, %v1615
      %v1620 = vadd.f32 %v1618, %v1619
      %1621 = vadd.xlane.f32.xlu0 %v1620
      %v1622 = vpop.xlane.xlu0 %1621
      %v1623 = vld [vmem:[#allocation3] sm:$0x1]
      %v1625 = vlaneseq
      %v1626 = vshrl.u32 %v1625, 7
      %v1627 = vsub.s32 0, %v1626
      %v1628 = vrot.slane %v1623, %v1627
      %v1630 = vadd.f32 %v1622, %v1628
      %v1631 = vxor.u32 %v1630, 2147483648
      %v1632 = vmul.f32 %v1631, 1.442695
      %v1633 = vpow.pop %v1632
      %v1634 = vadd.f32 %v1633, 1.0
      %v1635 = vrcp.pop %v1634
      %v1636 = vmul.f32 1.0, %v1635
      %1638 = vset.pattern.permute.xlu0 0
      %1639 = vperm.xlu0 %1638, %v1636
      %v1640 = vpop.permute.xlu0 %1639
      %1642 = vst [vmem:[#allocation9] sm:$0xff] %v1640
    $region41: #{tpu_custom_call.1} parent=1 // pred_fallthru
      _
    // Predicated region
    $region42: #{tpu_custom_call.1} parent=1 // pred_check
      _
    $region43: #{tpu_custom_call.1} parent=1 // pred_check_branch
      %1644 = sbr.rel (0) target = $region45
    $region44: #{tpu_custom_call.1} parent=1 // pred_region
      %s1646 = ssub.s32 128, 32
      %1647 = vsyncadd [#allocation6], %s1646
      %s1648 = sshll.u32 [#allocation9], 4
      %s1649 = int_to_ptr.vmem [resolvable:$true] %s1648
      %1654 = dma.vmem_to_hbm [thread:$0]  %s1649, 32, %s5, [#allocation6], 32, 32, 2
    $region45: #{tpu_custom_call.1} parent=1 // pred_fallthru
      _
    // Predicated region
    $region46: #{tpu_custom_call.1} parent=1 // pred_check
      _
    $region47: #{tpu_custom_call.1} parent=1 // pred_check_branch
      %1656 = sbr.rel (0) target = $region49
    $region48: #{tpu_custom_call.1} parent=1 // pred_region
      %1657 = dma.done [#allocation6], 128
    $region49: #{tpu_custom_call.1} parent=1 // pred_fallthru
      _
    %1658 = vsyncpa [#allocation5], 1
    %1659 = vsyncpa [#allocation8], 1
    %1660 = vsyncpa [#allocation6], 1

// kernel: tpu_custom_call.1
$region0: #{tpu_custom_call.1}
  #allocation0 [shape = 'u32[]', space=smem, size = 0x4, offset = 0x4, fixed_abs, tag = 'smem constant byte address 0x4 - core index']
  #allocation1 [shape = 'u32[144,128]{1,0:T(1,128)}', space=vmem, size = 0x12000, scoped, tag = 'internal scratch']
  #allocation2 [shape = 'f32[8,768]{1,0:T(8,128)}', space=vmem, size = 0x6000, scoped, tag = 'scratch operand']
  #allocation3 [shape = 'f32[1,1]{1,0:T(1,128)S(1)}', space=vmem, size = 0x200, scoped, tag = 'scoped memory for tpu_custom_call.1']
  #allocation10 [shape = 's32[]', space=sflag, size = 0x4, offset = 0, fixed_abs, tag = 'sflag constant byte address 0x0 - dummy sync flag']
  %s0 = inlined_call_operand.hbm [shape: bf16[2,8,768], index: 0, kind: input, shape index: {}]
  %s1 = inlined_call_operand.hbm [shape: f32[768,256], index: 1, kind: input, shape index: {}]
  %s2 = inlined_call_operand.vmem [shape: f32[1,256], index: 2, kind: input, shape index: {}]
  %s3 = inlined_call_operand.vmem [shape: f32[1,256], index: 3, kind: input, shape index: {}]
  %s4 = inlined_call_operand.<no memory space> [shape: f32[1,1], index: 4, kind: input, shape index: {}]
  %s5 = inlined_call_operand.hbm [shape: f32[2,128], index: 5, kind: output, shape index: {}]
  %s6 = sld [smem:[#allocation0]]
  $region50: #{tpu_custom_call.1} parent=0
    _
  %s8 = ssub.s32 1, %s6
  %s9 = scalar_select 0, %s8, %s6
  %v10 = vstv %s4
  %11 = vst [vmem:[#allocation3] sm:$0x1] %v10
  $region1: #{tpu_custom_call.1} parent=0
    #allocation4 [shape = 'u8[196608]{0}', space=vmem, size = 0x30000, scoped, tag = 'input window, operand 0, single buffered']
    #allocation5 [shape = 's32[1]{0}', space=sflag, size = 0x4, scoped, tag = 'scoped memory for tpu_custom_call.1']
    #allocation6 [shape = 's32[1]{0}', space=sflag, size = 0x4, scoped, tag = 'scoped memory for tpu_custom_call.1']
    #allocation7 [shape = 'u8[786432]{0}', space=vmem, size = 0xc0000, scoped, tag = 'input window, operand 1, single buffered']
    #allocation8 [shape = 's32[1]{0}', space=sflag, size = 0x4, scoped, tag = 'scoped memory for tpu_custom_call.1']
    #allocation9 [shape = 'u8[4096]{0}', space=vmem, size = 0x1000, scoped, tag = 'output window, operand 0, single buffered']
    %12 = vsyncpa [#allocation5], 0
    %13 = vsyncpa [#allocation8], 0
    %14 = vsyncpa [#allocation6], 0
    // Predicated region
    $region2: #{tpu_custom_call.1} parent=1 // pred_check
      _
    $region3: #{tpu_custom_call.1} parent=1 // pred_check_branch
      %16 = sbr.rel (0) target = $region5
    $region4: #{tpu_custom_call.1} parent=1 // pred_region
      #allocation11 [shape = 'u32[6]{0}', space=smem, size = 0x18, scoped, tag = 'DMA stride descriptor']
      %s18 = ssub.s32 6144, 768
      %19 = vsyncadd [#allocation5], %s18
      %s21 = sshll.u32 1, 14
      %s22 = sxor.u32 4294967295, %s21
      %s24 = sld [smem:[#allocation0]]
      %s25 = sadd.s32 2, %s24
      %s27 = sshll.u32 7, 26
      %s28 = sxor.u32 4294967295, %s27
      %s29 = sand.u32 0, %s28
      %s30 = sshll.u32 %s25, 26
      %s31 = sor.u32 %s29, %s30
      %s32 = sshll.u32 [#allocation4], 4
      %s33 = int_to_ptr.vmem [resolvable:$true] %s32
      %39 = sst [smem:[#allocation11]] 384
      %s40 = scalar_lea.smem [#allocation11], 1
      %41 = sst [smem:[%s40]] 768
      %s42 = scalar_lea.smem [#allocation11], 2
      %43 = sst [smem:[%s42]] 1
      %s44 = scalar_lea.smem [#allocation11], 3
      %45 = sst [smem:[%s44]] 384
      %s46 = scalar_lea.smem [#allocation11], 4
      %47 = sst [smem:[%s46]] 384
      %s48 = scalar_lea.smem [#allocation11], 5
      %49 = sst [smem:[%s48]] 24
      %51 = dma.general %s0, 768, %s33, [#allocation5], [#allocation10], [#allocation11], %s31, 0
    $region5: #{tpu_custom_call.1} parent=1 // pred_fallthru
      _
    // Predicated region
    $region6: #{tpu_custom_call.1} parent=1 // pred_check
      _
    $region7: #{tpu_custom_call.1} parent=1 // pred_check_branch
      %53 = sbr.rel (0) target = $region9
    $region8: #{tpu_custom_call.1} parent=1 // pred_region
      %s55 = ssub.s32 24576, 24576
      %56 = vsyncadd [#allocation8], %s55
      %s57 = sshll.u32 [#allocation7], 4
      %s58 = int_to_ptr.vmem [resolvable:$true] %s57
      %63 = dma.hbm_to_vmem [thread:$0]  %s1, 24576, %s58, [#allocation8], 256, 256, 16
    $region9: #{tpu_custom_call.1} parent=1 // pred_fallthru
      _
    // Predicated region
    $region10: #{tpu_custom_call.1} parent=1 // pred_check
      _
    $region11: #{tpu_custom_call.1} parent=1 // pred_check_branch
      %65 = sbr.rel (0) target = $region13
    $region12: #{tpu_custom_call.1} parent=1 // pred_region
      _
    $region13: #{tpu_custom_call.1} parent=1 // pred_fallthru
      _
    // Predicated region
    $region14: #{tpu_custom_call.1} parent=1 // pred_check
      _
    $region15: #{tpu_custom_call.1} parent=1 // pred_check_branch
      %67 = sbr.rel (0) target = $region17
    $region16: #{tpu_custom_call.1} parent=1 // pred_region
      _
    $region17: #{tpu_custom_call.1} parent=1 // pred_fallthru
      _
    // Predicated region
    $region18: #{tpu_custom_call.1} parent=1 // pred_check
      _
    $region19: #{tpu_custom_call.1} parent=1 // pred_check_branch
      %69 = sbr.rel (0) target = $region21
    $region20: #{tpu_custom_call.1} parent=1 // pred_region
      _
    $region21: #{tpu_custom_call.1} parent=1 // pred_fallthru
      _
    // Predicated region
    $region22: #{tpu_custom_call.1} parent=1 // pred_check
      _
    $region23: #{tpu_custom_call.1} parent=1 // pred_check_branch
      %71 = sbr.rel (0) target = $region25
    $region24: #{tpu_custom_call.1} parent=1 // pred_region
      %72 = dma.done [#allocation5], 6144
    $region25: #{tpu_custom_call.1} parent=1 // pred_fallthru
      _
    // Predicated region
    $region26: #{tpu_custom_call.1} parent=1 // pred_check
      _
    $region27: #{tpu_custom_call.1} parent=1 // pred_check_branch
      %74 = sbr.rel (0) target = $region29
    $region28: #{tpu_custom_call.1} parent=1 // pred_region
      %75 = dma.done [#allocation8], 24576
    $region29: #{tpu_custom_call.1} parent=1 // pred_fallthru
      _
    %p76 = scmp.eq.s32.totalorder 0, 0
    // Predicated region
    $region30: #{tpu_custom_call.1} parent=1 // pred_check
      %p77 = pneg %p76
    $region31: #{tpu_custom_call.1} parent=1 // pred_check_branch
      %79 = sbr.rel (%p77) target = $region33
    $region32: #{tpu_custom_call.1} parent=1 // pred_region
      %80 = vst [vmem:[#allocation2] sm:$0xff] 0.0
      %81 = vst [vmem:[#allocation2 + $0x8] sm:$0xff] 0.0
      %82 = vst [vmem:[#allocation2 + $0x10] sm:$0xff] 0.0
      %83 = vst [vmem:[#allocation2 + $0x18] sm:$0xff] 0.0
      %84 = vst [vmem:[#allocation2 + $0x20] sm:$0xff] 0.0
      %85 = vst [vmem:[#allocation2 + $0x28] sm:$0xff] 0.0
    $region33: #{tpu_custom_call.1} parent=1 // pred_fallthru
      _
    %p86 = scmp.ne.s32.totalorder 0, 0
    // Predicated region
    $region34: #{tpu_custom_call.1} parent=1 // pred_check
      %p87 = pneg %p86
    $region35: #{tpu_custom_call.1} parent=1 // pred_check_branch
      %89 = sbr.rel (%p87) target = $region37
    $region36: #{tpu_custom_call.1} parent=1 // pred_region
      %v90 = vld [vmem:[#allocation2] sm:$0xff]
      %v91 = vld [vmem:[#allocation2 + $0x8] sm:$0xff]
      %v92 = vld [vmem:[#allocation2 + $0x10] sm:$0xff]
      %v93 = vld [vmem:[#allocation2 + $0x18] sm:$0xff]
      %v94 = vld [vmem:[#allocation2 + $0x20] sm:$0xff]
      %v95 = vld [vmem:[#allocation2 + $0x28] sm:$0xff]
      %v96 = vld [vmem:[#allocation4] sm:$0xff]
      %v97 = vld [vmem:[#allocation4 + $0x8] sm:$0xff]
      %v98 = vld [vmem:[#allocation4 + $0x10] sm:$0xff]
      %v99 = vld [vmem:[#allocation4 + $0x18] sm:$0xff]
      %v100 = vld [vmem:[#allocation4 + $0x20] sm:$0xff]
      %v101 = vld [vmem:[#allocation4 + $0x28] sm:$0xff]
      %v102 = vld [vmem:[#allocation4 + $0x30] sm:$0xff]
      %v103 = vld [vmem:[#allocation4 + $0x38] sm:$0xff]
      %v104 = vld [vmem:[#allocation4 + $0x40] sm:$0xff]
      %v105 = vld [vmem:[#allocation4 + $0x48] sm:$0xff]
      %v106 = vld [vmem:[#allocation4 + $0x50] sm:$0xff]
      %v107 = vld [vmem:[#allocation4 + $0x58] sm:$0xff]
      %v108 = vld [vmem:[#allocation4 + $0x60] sm:$0xff]
      %v109 = vld [vmem:[#allocation4 + $0x68] sm:$0xff]
      %v110 = vld [vmem:[#allocation4 + $0x70] sm:$0xff]
      %v111 = vld [vmem:[#allocation4 + $0x78] sm:$0xff]
      %v112 = vld [vmem:[#allocation4 + $0x80] sm:$0xff]
      %v113 = vld [vmem:[#allocation4 + $0x88] sm:$0xff]
      %v114 = vld [vmem:[#allocation4 + $0x90] sm:$0xff]
      %v115 = vld [vmem:[#allocation4 + $0x98] sm:$0xff]
      %v116 = vld [vmem:[#allocation4 + $0xa0] sm:$0xff]
      %v117 = vld [vmem:[#allocation4 + $0xa8] sm:$0xff]
      %v118 = vld [vmem:[#allocation4 + $0xb0] sm:$0xff]
      %v119 = vld [vmem:[#allocation4 + $0xb8] sm:$0xff]
      %v120 = vld [vmem:[#allocation4 + $0xc0] sm:$0xff]
      %v121 = vld [vmem:[#allocation4 + $0xc8] sm:$0xff]
      %v122 = vld [vmem:[#allocation4 + $0xd0] sm:$0xff]
      %v123 = vld [vmem:[#allocation4 + $0xd8] sm:$0xff]
      %v124 = vld [vmem:[#allocation4 + $0xe0] sm:$0xff]
      %v125 = vld [vmem:[#allocation4 + $0xe8] sm:$0xff]
      %v126 = vld [vmem:[#allocation4 + $0xf0] sm:$0xff]
      %v127 = vld [vmem:[#allocation4 + $0xf8] sm:$0xff]
      %v128 = vld [vmem:[#allocation4 + $0x100] sm:$0xff]
      %v129 = vld [vmem:[#allocation4 + $0x108] sm:$0xff]
      %v130 = vld [vmem:[#allocation4 + $0x110] sm:$0xff]
      %v131 = vld [vmem:[#allocation4 + $0x118] sm:$0xff]
      %v132 = vld [vmem:[#allocation4 + $0x120] sm:$0xff]
      %v133 = vld [vmem:[#allocation4 + $0x128] sm:$0xff]
      %v134 = vld [vmem:[#allocation4 + $0x130] sm:$0xff]
      %v135 = vld [vmem:[#allocation4 + $0x138] sm:$0xff]
      %v136 = vld [vmem:[#allocation4 + $0x140] sm:$0xff]
      %v137 = vld [vmem:[#allocation4 + $0x148] sm:$0xff]
      %v138 = vld [vmem:[#allocation4 + $0x150] sm:$0xff]
      %v139 = vld [vmem:[#allocation4 + $0x158] sm:$0xff]
      %v140 = vld [vmem:[#allocation4 + $0x160] sm:$0xff]
      %v141 = vld [vmem:[#allocation4 + $0x168] sm:$0xff]
      %v142 = vld [vmem:[#allocation4 + $0x170] sm:$0xff]
      %v143 = vld [vmem:[#allocation4 + $0x178] sm:$0xff]
      %v144 = vunpack.c.l.bf16 %v96
      %v145 = vunpack.c.h.bf16 %v96
      %v146 = vunpack.c.l.bf16 %v97
      %v147 = vunpack.c.h.bf16 %v97
      %v148 = vunpack.c.l.bf16 %v98
      %v149 = vunpack.c.h.bf16 %v98
      %v150 = vunpack.c.l.bf16 %v99
      %v151 = vunpack.c.h.bf16 %v99
      %v152 = vunpack.c.l.bf16 %v100
      %v153 = vunpack.c.h.bf16 %v100
      %v154 = vunpack.c.l.bf16 %v101
      %v155 = vunpack.c.h.bf16 %v101
      %v156 = vunpack.c.l.bf16 %v102
      %v157 = vunpack.c.h.bf16 %v102
      %v158 = vunpack.c.l.bf16 %v103
      %v159 = vunpack.c.h.bf16 %v103
      %v160 = vunpack.c.l.bf16 %v104
      %v161 = vunpack.c.h.bf16 %v104
      %v162 = vunpack.c.l.bf16 %v105
      %v163 = vunpack.c.h.bf16 %v105
      %v164 = vunpack.c.l.bf16 %v106
      %v165 = vunpack.c.h.bf16 %v106
      %v166 = vunpack.c.l.bf16 %v107
      %v167 = vunpack.c.h.bf16 %v107
      %v168 = vunpack.c.l.bf16 %v108
      %v169 = vunpack.c.h.bf16 %v108
      %v170 = vunpack.c.l.bf16 %v109
      %v171 = vunpack.c.h.bf16 %v109
      %v172 = vunpack.c.l.bf16 %v110
      %v173 = vunpack.c.h.bf16 %v110
      %v174 = vunpack.c.l.bf16 %v111
      %v175 = vunpack.c.h.bf16 %v111
      %v176 = vunpack.c.l.bf16 %v112
      %v177 = vunpack.c.h.bf16 %v112
      %v178 = vunpack.c.l.bf16 %v113
      %v179 = vunpack.c.h.bf16 %v113
      %v180 = vunpack.c.l.bf16 %v114
      %v181 = vunpack.c.h.bf16 %v114
      %v182 = vunpack.c.l.bf16 %v115
      %v183 = vunpack.c.h.bf16 %v115
      %v184 = vunpack.c.l.bf16 %v116
      %v185 = vunpack.c.h.bf16 %v116
      %v186 = vunpack.c.l.bf16 %v117
      %v187 = vunpack.c.h.bf16 %v117
      %v188 = vunpack.c.l.bf16 %v118
      %v189 = vunpack.c.h.bf16 %v118
      %v190 = vunpack.c.l.bf16 %v119
      %v191 = vunpack.c.h.bf16 %v119
      %v192 = vunpack.c.l.bf16 %v120
      %v193 = vunpack.c.h.bf16 %v120
      %v194 = vunpack.c.l.bf16 %v121
      %v195 = vunpack.c.h.bf16 %v121
      %v196 = vunpack.c.l.bf16 %v122
      %v197 = vunpack.c.h.bf16 %v122
      %v198 = vunpack.c.l.bf16 %v123
      %v199 = vunpack.c.h.bf16 %v123
      %v200 = vunpack.c.l.bf16 %v124
      %v201 = vunpack.c.h.bf16 %v124
      %v202 = vunpack.c.l.bf16 %v125
      %v203 = vunpack.c.h.bf16 %v125
      %v204 = vunpack.c.l.bf16 %v126
      %v205 = vunpack.c.h.bf16 %v126
      %v206 = vunpack.c.l.bf16 %v127
      %v207 = vunpack.c.h.bf16 %v127
      %v208 = vunpack.c.l.bf16 %v128
      %v209 = vunpack.c.h.bf16 %v128
      %v210 = vunpack.c.l.bf16 %v129
      %v211 = vunpack.c.h.bf16 %v129
      %v212 = vunpack.c.l.bf16 %v130
      %v213 = vunpack.c.h.bf16 %v130
      %v214 = vunpack.c.l.bf16 %v131
      %v215 = vunpack.c.h.bf16 %v131
      %v216 = vunpack.c.l.bf16 %v132
      %v217 = vunpack.c.h.bf16 %v132
      %v218 = vunpack.c.l.bf16 %v133
      %v219 = vunpack.c.h.bf16 %v133
      %v220 = vunpack.c.l.bf16 %v134
      %v221 = vunpack.c.h.bf16 %v134
      %v222 = vunpack.c.l.bf16 %v135
      %v223 = vunpack.c.h.bf16 %v135
      %v224 = vunpack.c.l.bf16 %v136
      %v225 = vunpack.c.h.bf16 %v136
      %v226 = vunpack.c.l.bf16 %v137
      %v227 = vunpack.c.h.bf16 %v137
      %v228 = vunpack.c.l.bf16 %v138
      %v229 = vunpack.c.h.bf16 %v138
      %v230 = vunpack.c.l.bf16 %v139
      %v231 = vunpack.c.h.bf16 %v139
      %v232 = vunpack.c.l.bf16 %v140
      %v233 = vunpack.c.h.bf16 %v140
      %v234 = vunpack.c.l.bf16 %v141
      %v235 = vunpack.c.h.bf16 %v141
      %v236 = vunpack.c.l.bf16 %v142
      %v237 = vunpack.c.h.bf16 %v142
      %v238 = vunpack.c.l.bf16 %v143
      %v239 = vunpack.c.h.bf16 %v143
      %v240 = vadd.f32 %v144, %v150
      %v241 = vrot.slane %v240, 4
      %v242 = vadd.f32 %v240, %v241
      %v243 = vrot.slane %v242, 2
      %v244 = vadd.f32 %v242, %v243
      %v245 = vrot.slane %v244, 1
      %v246 = vadd.f32 %v244, %v245
      %v247 = vadd.f32 %v145, %v151
      %v248 = vrot.slane %v247, 4
      %v249 = vadd.f32 %v247, %v248
      %v250 = vrot.slane %v249, 2
      %v251 = vadd.f32 %v249, %v250
      %v252 = vrot.slane %v251, 1
      %v253 = vadd.f32 %v251, %v252
      %v254 = vadd.f32 %v146, %v152
      %v255 = vrot.slane %v254, 4
      %v256 = vadd.f32 %v254, %v255
      %v257 = vrot.slane %v256, 2
      %v258 = vadd.f32 %v256, %v257
      %v259 = vrot.slane %v258, 1
      %v260 = vadd.f32 %v258, %v259
      %v261 = vadd.f32 %v147, %v153
      %v262 = vrot.slane %v261, 4
      %v263 = vadd.f32 %v261, %v262
      %v264 = vrot.slane %v263, 2
      %v265 = vadd.f32 %v263, %v264
      %v266 = vrot.slane %v265, 1
      %v267 = vadd.f32 %v265, %v266
      %v268 = vadd.f32 %v148, %v154
      %v269 = vrot.slane %v268, 4
      %v270 = vadd.f32 %v268, %v269
      %v271 = vrot.slane %v270, 2
      %v272 = vadd.f32 %v270, %v271
      %v273 = vrot.slane %v272, 1
      %v274 = vadd.f32 %v272, %v273
      %v275 = vadd.f32 %v149, %v155
      %v276 = vrot.slane %v275, 4
      %v277 = vadd.f32 %v275, %v276
      %v278 = vrot.slane %v277, 2
      %v279 = vadd.f32 %v277, %v278
      %v280 = vrot.slane %v279, 1
      %v281 = vadd.f32 %v279, %v280
      %v282 = vadd.f32 %v156, %v162
      %v283 = vrot.slane %v282, 4
      %v284 = vadd.f32 %v282, %v283
      %v285 = vrot.slane %v284, 2
      %v286 = vadd.f32 %v284, %v285
      %v287 = vrot.slane %v286, 1
      %v288 = vadd.f32 %v286, %v287
      %v289 = vadd.f32 %v157, %v163
      %v290 = vrot.slane %v289, 4
      %v291 = vadd.f32 %v289, %v290
      %v292 = vrot.slane %v291, 2
      %v293 = vadd.f32 %v291, %v292
      %v294 = vrot.slane %v293, 1
      %v295 = vadd.f32 %v293, %v294
      %v296 = vadd.f32 %v158, %v164
      %v297 = vrot.slane %v296, 4
      %v298 = vadd.f32 %v296, %v297
      %v299 = vrot.slane %v298, 2
      %v300 = vadd.f32 %v298, %v299
      %v301 = vrot.slane %v300, 1
      %v302 = vadd.f32 %v300, %v301
      %v303 = vadd.f32 %v159, %v165
      %v304 = vrot.slane %v303, 4
      %v305 = vadd.f32 %v303, %v304
      %v306 = vrot.slane %v305, 2
      %v307 = vadd.f32 %v305, %v306
      %v308 = vrot.slane %v307, 1
      %v309 = vadd.f32 %v307, %v308
      %v310 = vadd.f32 %v160, %v166
      %v311 = vrot.slane %v310, 4
      %v312 = vadd.f32 %v310, %v311
      %v313 = vrot.slane %v312, 2
      %v314 = vadd.f32 %v312, %v313
      %v315 = vrot.slane %v314, 1
      %v316 = vadd.f32 %v314, %v315
      %v317 = vadd.f32 %v161, %v167
      %v318 = vrot.slane %v317, 4
      %v319 = vadd.f32 %v317, %v318
      %v320 = vrot.slane %v319, 2
      %v321 = vadd.f32 %v319, %v320
      %v322 = vrot.slane %v321, 1
      %v323 = vadd.f32 %v321, %v322
      %v324 = vadd.f32 %v168, %v174
      %v325 = vrot.slane %v324, 4
      %v326 = vadd.f32 %v324, %v325
      %v327 = vrot.slane %v326, 2
      %v328 = vadd.f32 %v326, %v327
      %v329 = vrot.slane %v328, 1
      %v330 = vadd.f32 %v328, %v329
      %v331 = vadd.f32 %v169, %v175
      %v332 = vrot.slane %v331, 4
      %v333 = vadd.f32 %v331, %v332
      %v334 = vrot.slane %v333, 2
      %v335 = vadd.f32 %v333, %v334
      %v336 = vrot.slane %v335, 1
      %v337 = vadd.f32 %v335, %v336
      %v338 = vadd.f32 %v170, %v176
      %v339 = vrot.slane %v338, 4
      %v340 = vadd.f32 %v338, %v339
      %v341 = vrot.slane %v340, 2
      %v342 = vadd.f32 %v340, %v341
      %v343 = vrot.slane %v342, 1
      %v344 = vadd.f32 %v342, %v343
      %v345 = vadd.f32 %v171, %v177
      %v346 = vrot.slane %v345, 4
      %v347 = vadd.f32 %v345, %v346
      %v348 = vrot.slane %v347, 2
      %v349 = vadd.f32 %v347, %v348
      %v350 = vrot.slane %v349, 1
      %v351 = vadd.f32 %v349, %v350
      %v352 = vadd.f32 %v172, %v178
      %v353 = vrot.slane %v352, 4
      %v354 = vadd.f32 %v352, %v353
      %v355 = vrot.slane %v354, 2
      %v356 = vadd.f32 %v354, %v355
      %v357 = vrot.slane %v356, 1
      %v358 = vadd.f32 %v356, %v357
      %v359 = vadd.f32 %v173, %v179
      %v360 = vrot.slane %v359, 4
      %v361 = vadd.f32 %v359, %v360
      %v362 = vrot.slane %v361, 2
      %v363 = vadd.f32 %v361, %v362
      %v364 = vrot.slane %v363, 1
      %v365 = vadd.f32 %v363, %v364
      %v366 = vadd.f32 %v180, %v186
      %v367 = vrot.slane %v366, 4
      %v368 = vadd.f32 %v366, %v367
      %v369 = vrot.slane %v368, 2
      %v370 = vadd.f32 %v368, %v369
      %v371 = vrot.slane %v370, 1
      %v372 = vadd.f32 %v370, %v371
      %v373 = vadd.f32 %v181, %v187
      %v374 = vrot.slane %v373, 4
      %v375 = vadd.f32 %v373, %v374
      %v376 = vrot.slane %v375, 2
      %v377 = vadd.f32 %v375, %v376
      %v378 = vrot.slane %v377, 1
      %v379 = vadd.f32 %v377, %v378
      %v380 = vadd.f32 %v182, %v188
      %v381 = vrot.slane %v380, 4
      %v382 = vadd.f32 %v380, %v381
      %v383 = vrot.slane %v382, 2
      %v384 = vadd.f32 %v382, %v383
      %v385 = vrot.slane %v384, 1
      %v386 = vadd.f32 %v384, %v385
      %v387 = vadd.f32 %v183, %v189
      %v388 = vrot.slane %v387, 4
      %v389 = vadd.f32 %v387, %v388
      %v390 = vrot.slane %v389, 2
      %v391 = vadd.f32 %v389, %v390
      %v392 = vrot.slane %v391, 1
      %v393 = vadd.f32 %v391, %v392
      %v394 = vadd.f32 %v184, %v190
      %v395 = vrot.slane %v394, 4
      %v396 = vadd.f32 %v394, %v395
      %v397 = vrot.slane %v396, 2
      %v398 = vadd.f32 %v396, %v397
      %v399 = vrot.slane %v398, 1
      %v400 = vadd.f32 %v398, %v399
      %v401 = vadd.f32 %v185, %v191
      %v402 = vrot.slane %v401, 4
      %v403 = vadd.f32 %v401, %v402
      %v404 = vrot.slane %v403, 2
      %v405 = vadd.f32 %v403, %v404
      %v406 = vrot.slane %v405, 1
      %v407 = vadd.f32 %v405, %v406
      %v408 = vadd.f32 %v192, %v198
      %v409 = vrot.slane %v408, 4
      %v410 = vadd.f32 %v408, %v409
      %v411 = vrot.slane %v410, 2
      %v412 = vadd.f32 %v410, %v411
      %v413 = vrot.slane %v412, 1
      %v414 = vadd.f32 %v412, %v413
      %v415 = vadd.f32 %v193, %v199
      %v416 = vrot.slane %v415, 4
      %v417 = vadd.f32 %v415, %v416
      %v418 = vrot.slane %v417, 2
      %v419 = vadd.f32 %v417, %v418
      %v420 = vrot.slane %v419, 1
      %v421 = vadd.f32 %v419, %v420
      %v422 = vadd.f32 %v194, %v200
      %v423 = vrot.slane %v422, 4
      %v424 = vadd.f32 %v422, %v423
      %v425 = vrot.slane %v424, 2
      %v426 = vadd.f32 %v424, %v425
      %v427 = vrot.slane %v426, 1
      %v428 = vadd.f32 %v426, %v427
      %v429 = vadd.f32 %v195, %v201
      %v430 = vrot.slane %v429, 4
      %v431 = vadd.f32 %v429, %v430
      %v432 = vrot.slane %v431, 2
      %v433 = vadd.f32 %v431, %v432
      %v434 = vrot.slane %v433, 1
      %v435 = vadd.f32 %v433, %v434
      %v436 = vadd.f32 %v196, %v202
      %v437 = vrot.slane %v436, 4
      %v438 = vadd.f32 %v436, %v437
      %v439 = vrot.slane %v438, 2
      %v440 = vadd.f32 %v438, %v439
      %v441 = vrot.slane %v440, 1
      %v442 = vadd.f32 %v440, %v441
      %v443 = vadd.f32 %v197, %v203
      %v444 = vrot.slane %v443, 4
      %v445 = vadd.f32 %v443, %v444
      %v446 = vrot.slane %v445, 2
      %v447 = vadd.f32 %v445, %v446
      %v448 = vrot.slane %v447, 1
      %v449 = vadd.f32 %v447, %v448
      %v450 = vadd.f32 %v204, %v210
      %v451 = vrot.slane %v450, 4
      %v452 = vadd.f32 %v450, %v451
      %v453 = vrot.slane %v452, 2
      %v454 = vadd.f32 %v452, %v453
      %v455 = vrot.slane %v454, 1
      %v456 = vadd.f32 %v454, %v455
      %v457 = vadd.f32 %v205, %v211
      %v458 = vrot.slane %v457, 4
      %v459 = vadd.f32 %v457, %v458
      %v460 = vrot.slane %v459, 2
      %v461 = vadd.f32 %v459, %v460
      %v462 = vrot.slane %v461, 1
      %v463 = vadd.f32 %v461, %v462
      %v464 = vadd.f32 %v206, %v212
      %v465 = vrot.slane %v464, 4
      %v466 = vadd.f32 %v464, %v465
      %v467 = vrot.slane %v466, 2
      %v468 = vadd.f32 %v466, %v467
      %v469 = vrot.slane %v468, 1
      %v470 = vadd.f32 %v468, %v469
      %v471 = vadd.f32 %v207, %v213
      %v472 = vrot.slane %v471, 4
      %v473 = vadd.f32 %v471, %v472
      %v474 = vrot.slane %v473, 2
      %v475 = vadd.f32 %v473, %v474
      %v476 = vrot.slane %v475, 1
      %v477 = vadd.f32 %v475, %v476
      %v478 = vadd.f32 %v208, %v214
      %v479 = vrot.slane %v478, 4
      %v480 = vadd.f32 %v478, %v479
      %v481 = vrot.slane %v480, 2
      %v482 = vadd.f32 %v480, %v481
      %v483 = vrot.slane %v482, 1
      %v484 = vadd.f32 %v482, %v483
      %v485 = vadd.f32 %v209, %v215
      %v486 = vrot.slane %v485, 4
      %v487 = vadd.f32 %v485, %v486
      %v488 = vrot.slane %v487, 2
      %v489 = vadd.f32 %v487, %v488
      %v490 = vrot.slane %v489, 1
      %v491 = vadd.f32 %v489, %v490
      %v492 = vadd.f32 %v216, %v222
      %v493 = vrot.slane %v492, 4
      %v494 = vadd.f32 %v492, %v493
      %v495 = vrot.slane %v494, 2
      %v496 = vadd.f32 %v494, %v495
      %v497 = vrot.slane %v496, 1
      %v498 = vadd.f32 %v496, %v497
      %v499 = vadd.f32 %v217, %v223
      %v500 = vrot.slane %v499, 4
      %v501 = vadd.f32 %v499, %v500
      %v502 = vrot.slane %v501, 2
      %v503 = vadd.f32 %v501, %v502
      %v504 = vrot.slane %v503, 1
      %v505 = vadd.f32 %v503, %v504
      %v506 = vadd.f32 %v218, %v224
      %v507 = vrot.slane %v506, 4
      %v508 = vadd.f32 %v506, %v507
      %v509 = vrot.slane %v508, 2
      %v510 = vadd.f32 %v508, %v509
      %v511 = vrot.slane %v510, 1
      %v512 = vadd.f32 %v510, %v511
      %v513 = vadd.f32 %v219, %v225
      %v514 = vrot.slane %v513, 4
      %v515 = vadd.f32 %v513, %v514
      %v516 = vrot.slane %v515, 2
      %v517 = vadd.f32 %v515, %v516
      %v518 = vrot.slane %v517, 1
      %v519 = vadd.f32 %v517, %v518
      %v520 = vadd.f32 %v220, %v226
      %v521 = vrot.slane %v520, 4
      %v522 = vadd.f32 %v520, %v521
      %v523 = vrot.slane %v522, 2
      %v524 = vadd.f32 %v522, %v523
      %v525 = vrot.slane %v524, 1
      %v526 = vadd.f32 %v524, %v525
      %v527 = vadd.f32 %v221, %v227
      %v528 = vrot.slane %v527, 4
      %v529 = vadd.f32 %v527, %v528
      %v530 = vrot.slane %v529, 2
      %v531 = vadd.f32 %v529, %v530
      %v532 = vrot.slane %v531, 1
      %v533 = vadd.f32 %v531, %v532
      %v534 = vadd.f32 %v228, %v234
      %v535 = vrot.slane %v534, 4
      %v536 = vadd.f32 %v534, %v535
      %v537 = vrot.slane %v536, 2
      %v538 = vadd.f32 %v536, %v537
      %v539 = vrot.slane %v538, 1
      %v540 = vadd.f32 %v538, %v539
      %v541 = vadd.f32 %v229, %v235
      %v542 = vrot.slane %v541, 4
      %v543 = vadd.f32 %v541, %v542
      %v544 = vrot.slane %v543, 2
      %v545 = vadd.f32 %v543, %v544
      %v546 = vrot.slane %v545, 1
      %v547 = vadd.f32 %v545, %v546
      %v548 = vadd.f32 %v230, %v236
      %v549 = vrot.slane %v548, 4
      %v550 = vadd.f32 %v548, %v549
      %v551 = vrot.slane %v550, 2
      %v552 = vadd.f32 %v550, %v551
      %v553 = vrot.slane %v552, 1
      %v554 = vadd.f32 %v552, %v553
      %v555 = vadd.f32 %v231, %v237
      %v556 = vrot.slane %v555, 4
      %v557 = vadd.f32 %v555, %v556
      %v558 = vrot.slane %v557, 2
      %v559 = vadd.f32 %v557, %v558
      %v560 = vrot.slane %v559, 1
      %v561 = vadd.f32 %v559, %v560
      %v562 = vadd.f32 %v232, %v238
      %v563 = vrot.slane %v562, 4
      %v564 = vadd.f32 %v562, %v563
      %v565 = vrot.slane %v564, 2
      %v566 = vadd.f32 %v564, %v565
      %v567 = vrot.slane %v566, 1
      %v568 = vadd.f32 %v566, %v567
      %v569 = vadd.f32 %v233, %v239
      %v570 = vrot.slane %v569, 4
      %v571 = vadd.f32 %v569, %v570
      %v572 = vrot.slane %v571, 2
      %v573 = vadd.f32 %v571, %v572
      %v574 = vrot.slane %v573, 1
      %v575 = vadd.f32 %v573, %v574
      %vm624 = vcmask 1041409
      %v625 = vsel %vm624, %v288, %v246
      %vm626 = vcmask 1042434
      %v627 = vsel %vm626, %v330, %v625
      %vm628 = vcmask 1043459
      %v629 = vsel %vm628, %v372, %v627
      %vm630 = vcmask 1044484
      %v631 = vsel %vm630, %v414, %v629
      %vm632 = vcmask 1045509
      %v633 = vsel %vm632, %v456, %v631
      %vm634 = vcmask 1046534
      %v635 = vsel %vm634, %v498, %v633
      %vm636 = vcmask 1047559
      %v637 = vsel %vm636, %v540, %v635
      %v638 = vsel %vm624, %v295, %v253
      %v639 = vsel %vm626, %v337, %v638
      %v640 = vsel %vm628, %v379, %v639
      %v641 = vsel %vm630, %v421, %v640
      %v642 = vsel %vm632, %v463, %v641
      %v643 = vsel %vm634, %v505, %v642
      %v644 = vsel %vm636, %v547, %v643
      %v645 = vsel %vm624, %v302, %v260
      %v646 = vsel %vm626, %v344, %v645
      %v647 = vsel %vm628, %v386, %v646
      %v648 = vsel %vm630, %v428, %v647
      %v649 = vsel %vm632, %v470, %v648
      %v650 = vsel %vm634, %v512, %v649
      %v651 = vsel %vm636, %v554, %v650
      %v652 = vsel %vm624, %v309, %v267
      %v653 = vsel %vm626, %v351, %v652
      %v654 = vsel %vm628, %v393, %v653
      %v655 = vsel %vm630, %v435, %v654
      %v656 = vsel %vm632, %v477, %v655
      %v657 = vsel %vm634, %v519, %v656
      %v658 = vsel %vm636, %v561, %v657
      %v659 = vsel %vm624, %v316, %v274
      %v660 = vsel %vm626, %v358, %v659
      %v661 = vsel %vm628, %v400, %v660
      %v662 = vsel %vm630, %v442, %v661
      %v663 = vsel %vm632, %v484, %v662
      %v664 = vsel %vm634, %v526, %v663
      %v665 = vsel %vm636, %v568, %v664
      %v666 = vsel %vm624, %v323, %v281
      %v667 = vsel %vm626, %v365, %v666
      %v668 = vsel %vm628, %v407, %v667
      %v669 = vsel %vm630, %v449, %v668
      %v670 = vsel %vm632, %v491, %v669
      %v671 = vsel %vm634, %v533, %v670
      %v672 = vsel %vm636, %v575, %v671
      %v679 = vadd.f32 %v90, %v637
      %v680 = vadd.f32 %v91, %v644
      %v681 = vadd.f32 %v92, %v651
      %v682 = vadd.f32 %v93, %v658
      %v683 = vadd.f32 %v94, %v665
      %v684 = vadd.f32 %v95, %v672
      %685 = vst [vmem:[#allocation2] sm:$0xff] %v679
      %686 = vst [vmem:[#allocation2 + $0x8] sm:$0xff] %v680
      %687 = vst [vmem:[#allocation2 + $0x10] sm:$0xff] %v681
      %688 = vst [vmem:[#allocation2 + $0x18] sm:$0xff] %v682
      %689 = vst [vmem:[#allocation2 + $0x20] sm:$0xff] %v683
      %690 = vst [vmem:[#allocation2 + $0x28] sm:$0xff] %v684
    $region37: #{tpu_custom_call.1} parent=1 // pred_fallthru
      _
    // Predicated region
    $region38: #{tpu_custom_call.1} parent=1 // pred_check
      %p691 = pneg %p76
    $region39: #{tpu_custom_call.1} parent=1 // pred_check_branch
      %693 = sbr.rel (%p691) target = $region41
    $region40: #{tpu_custom_call.1} parent=1 // pred_region
      %v694 = vld [vmem:[#allocation2] sm:$0xff]
      %v695 = vld [vmem:[#allocation2 + $0x8] sm:$0xff]
      %v696 = vld [vmem:[#allocation2 + $0x10] sm:$0xff]
      %v697 = vld [vmem:[#allocation2 + $0x18] sm:$0xff]
      %v698 = vld [vmem:[#allocation2 + $0x20] sm:$0xff]
      %v699 = vld [vmem:[#allocation2 + $0x28] sm:$0xff]
      %v700 = vld [vmem:[#allocation4] sm:$0xff]
      %v701 = vld [vmem:[#allocation4 + $0x8] sm:$0xff]
      %v702 = vld [vmem:[#allocation4 + $0x10] sm:$0xff]
      %v703 = vld [vmem:[#allocation4 + $0x30] sm:$0xff]
      %v704 = vld [vmem:[#allocation4 + $0x38] sm:$0xff]
      %v705 = vld [vmem:[#allocation4 + $0x40] sm:$0xff]
      %v706 = vld [vmem:[#allocation4 + $0x60] sm:$0xff]
      %v707 = vld [vmem:[#allocation4 + $0x68] sm:$0xff]
      %v708 = vld [vmem:[#allocation4 + $0x70] sm:$0xff]
      %v709 = vld [vmem:[#allocation4 + $0x90] sm:$0xff]
      %v710 = vld [vmem:[#allocation4 + $0x98] sm:$0xff]
      %v711 = vld [vmem:[#allocation4 + $0xa0] sm:$0xff]
      %v712 = vld [vmem:[#allocation4 + $0xc0] sm:$0xff]
      %v713 = vld [vmem:[#allocation4 + $0xc8] sm:$0xff]
      %v714 = vld [vmem:[#allocation4 + $0xd0] sm:$0xff]
      %v715 = vld [vmem:[#allocation4 + $0xf0] sm:$0xff]
      %v716 = vld [vmem:[#allocation4 + $0xf8] sm:$0xff]
      %v717 = vld [vmem:[#allocation4 + $0x100] sm:$0xff]
      %v718 = vld [vmem:[#allocation4 + $0x120] sm:$0xff]
      %v719 = vld [vmem:[#allocation4 + $0x128] sm:$0xff]
      %v720 = vld [vmem:[#allocation4 + $0x130] sm:$0xff]
      %v721 = vld [vmem:[#allocation4 + $0x150] sm:$0xff]
      %v722 = vld [vmem:[#allocation4 + $0x158] sm:$0xff]
      %v723 = vld [vmem:[#allocation4 + $0x160] sm:$0xff]
      %v724 = vunpack.c.l.bf16 %v700
      %v725 = vunpack.c.h.bf16 %v700
      %v726 = vunpack.c.l.bf16 %v701
      %v727 = vunpack.c.h.bf16 %v701
      %v728 = vunpack.c.l.bf16 %v702
      %v729 = vunpack.c.h.bf16 %v702
      %v730 = vunpack.c.l.bf16 %v703
      %v731 = vunpack.c.h.bf16 %v703
      %v732 = vunpack.c.l.bf16 %v704
      %v733 = vunpack.c.h.bf16 %v704
      %v734 = vunpack.c.l.bf16 %v705
      %v735 = vunpack.c.h.bf16 %v705
      %v736 = vunpack.c.l.bf16 %v706
      %v737 = vunpack.c.h.bf16 %v706
      %v738 = vunpack.c.l.bf16 %v707
      %v739 = vunpack.c.h.bf16 %v707
      %v740 = vunpack.c.l.bf16 %v708
      %v741 = vunpack.c.h.bf16 %v708
      %v742 = vunpack.c.l.bf16 %v709
      %v743 = vunpack.c.h.bf16 %v709
      %v744 = vunpack.c.l.bf16 %v710
      %v745 = vunpack.c.h.bf16 %v710
      %v746 = vunpack.c.l.bf16 %v711
      %v747 = vunpack.c.h.bf16 %v711
      %v748 = vunpack.c.l.bf16 %v712
      %v749 = vunpack.c.h.bf16 %v712
      %v750 = vunpack.c.l.bf16 %v713
      %v751 = vunpack.c.h.bf16 %v713
      %v752 = vunpack.c.l.bf16 %v714
      %v753 = vunpack.c.h.bf16 %v714
      %v754 = vunpack.c.l.bf16 %v715
      %v755 = vunpack.c.h.bf16 %v715
      %v756 = vunpack.c.l.bf16 %v716
      %v757 = vunpack.c.h.bf16 %v716
      %v758 = vunpack.c.l.bf16 %v717
      %v759 = vunpack.c.h.bf16 %v717
      %v760 = vunpack.c.l.bf16 %v718
      %v761 = vunpack.c.h.bf16 %v718
      %v762 = vunpack.c.l.bf16 %v719
      %v763 = vunpack.c.h.bf16 %v719
      %v764 = vunpack.c.l.bf16 %v720
      %v765 = vunpack.c.h.bf16 %v720
      %v766 = vunpack.c.l.bf16 %v721
      %v767 = vunpack.c.h.bf16 %v721
      %v768 = vunpack.c.l.bf16 %v722
      %v769 = vunpack.c.h.bf16 %v722
      %v770 = vunpack.c.l.bf16 %v723
      %v771 = vunpack.c.h.bf16 %v723
      %v772 = vrot.slane %v724, 4
      %v773 = vadd.f32 %v724, %v772
      %v774 = vrot.slane %v773, 2
      %v775 = vadd.f32 %v773, %v774
      %v776 = vrot.slane %v775, 1
      %v777 = vadd.f32 %v775, %v776
      %v778 = vrot.slane %v725, 4
      %v779 = vadd.f32 %v725, %v778
      %v780 = vrot.slane %v779, 2
      %v781 = vadd.f32 %v779, %v780
      %v782 = vrot.slane %v781, 1
      %v783 = vadd.f32 %v781, %v782
      %v784 = vrot.slane %v726, 4
      %v785 = vadd.f32 %v726, %v784
      %v786 = vrot.slane %v785, 2
      %v787 = vadd.f32 %v785, %v786
      %v788 = vrot.slane %v787, 1
      %v789 = vadd.f32 %v787, %v788
      %v790 = vrot.slane %v727, 4
      %v791 = vadd.f32 %v727, %v790
      %v792 = vrot.slane %v791, 2
      %v793 = vadd.f32 %v791, %v792
      %v794 = vrot.slane %v793, 1
      %v795 = vadd.f32 %v793, %v794
      %v796 = vrot.slane %v728, 4
      %v797 = vadd.f32 %v728, %v796
      %v798 = vrot.slane %v797, 2
      %v799 = vadd.f32 %v797, %v798
      %v800 = vrot.slane %v799, 1
      %v801 = vadd.f32 %v799, %v800
      %v802 = vrot.slane %v729, 4
      %v803 = vadd.f32 %v729, %v802
      %v804 = vrot.slane %v803, 2
      %v805 = vadd.f32 %v803, %v804
      %v806 = vrot.slane %v805, 1
      %v807 = vadd.f32 %v805, %v806
      %v808 = vrot.slane %v730, 4
      %v809 = vadd.f32 %v730, %v808
      %v810 = vrot.slane %v809, 2
      %v811 = vadd.f32 %v809, %v810
      %v812 = vrot.slane %v811, 1
      %v813 = vadd.f32 %v811, %v812
      %v814 = vrot.slane %v731, 4
      %v815 = vadd.f32 %v731, %v814
      %v816 = vrot.slane %v815, 2
      %v817 = vadd.f32 %v815, %v816
      %v818 = vrot.slane %v817, 1
      %v819 = vadd.f32 %v817, %v818
      %v820 = vrot.slane %v732, 4
      %v821 = vadd.f32 %v732, %v820
      %v822 = vrot.slane %v821, 2
      %v823 = vadd.f32 %v821, %v822
      %v824 = vrot.slane %v823, 1
      %v825 = vadd.f32 %v823, %v824
      %v826 = vrot.slane %v733, 4
      %v827 = vadd.f32 %v733, %v826
      %v828 = vrot.slane %v827, 2
      %v829 = vadd.f32 %v827, %v828
      %v830 = vrot.slane %v829, 1
      %v831 = vadd.f32 %v829, %v830
      %v832 = vrot.slane %v734, 4
      %v833 = vadd.f32 %v734, %v832
      %v834 = vrot.slane %v833, 2
      %v835 = vadd.f32 %v833, %v834
      %v836 = vrot.slane %v835, 1
      %v837 = vadd.f32 %v835, %v836
      %v838 = vrot.slane %v735, 4
      %v839 = vadd.f32 %v735, %v838
      %v840 = vrot.slane %v839, 2
      %v841 = vadd.f32 %v839, %v840
      %v842 = vrot.slane %v841, 1
      %v843 = vadd.f32 %v841, %v842
      %v844 = vrot.slane %v736, 4
      %v845 = vadd.f32 %v736, %v844
      %v846 = vrot.slane %v845, 2
      %v847 = vadd.f32 %v845, %v846
      %v848 = vrot.slane %v847, 1
      %v849 = vadd.f32 %v847, %v848
      %v850 = vrot.slane %v737, 4
      %v851 = vadd.f32 %v737, %v850
      %v852 = vrot.slane %v851, 2
      %v853 = vadd.f32 %v851, %v852
      %v854 = vrot.slane %v853, 1
      %v855 = vadd.f32 %v853, %v854
      %v856 = vrot.slane %v738, 4
      %v857 = vadd.f32 %v738, %v856
      %v858 = vrot.slane %v857, 2
      %v859 = vadd.f32 %v857, %v858
      %v860 = vrot.slane %v859, 1
      %v861 = vadd.f32 %v859, %v860
      %v862 = vrot.slane %v739, 4
      %v863 = vadd.f32 %v739, %v862
      %v864 = vrot.slane %v863, 2
      %v865 = vadd.f32 %v863, %v864
      %v866 = vrot.slane %v865, 1
      %v867 = vadd.f32 %v865, %v866
      %v868 = vrot.slane %v740, 4
      %v869 = vadd.f32 %v740, %v868
      %v870 = vrot.slane %v869, 2
      %v871 = vadd.f32 %v869, %v870
      %v872 = vrot.slane %v871, 1
      %v873 = vadd.f32 %v871, %v872
      %v874 = vrot.slane %v741, 4
      %v875 = vadd.f32 %v741, %v874
      %v876 = vrot.slane %v875, 2
      %v877 = vadd.f32 %v875, %v876
      %v878 = vrot.slane %v877, 1
      %v879 = vadd.f32 %v877, %v878
      %v880 = vrot.slane %v742, 4
      %v881 = vadd.f32 %v742, %v880
      %v882 = vrot.slane %v881, 2
      %v883 = vadd.f32 %v881, %v882
      %v884 = vrot.slane %v883, 1
      %v885 = vadd.f32 %v883, %v884
      %v886 = vrot.slane %v743, 4
      %v887 = vadd.f32 %v743, %v886
      %v888 = vrot.slane %v887, 2
      %v889 = vadd.f32 %v887, %v888
      %v890 = vrot.slane %v889, 1
      %v891 = vadd.f32 %v889, %v890
      %v892 = vrot.slane %v744, 4
      %v893 = vadd.f32 %v744, %v892
      %v894 = vrot.slane %v893, 2
      %v895 = vadd.f32 %v893, %v894
      %v896 = vrot.slane %v895, 1
      %v897 = vadd.f32 %v895, %v896
      %v898 = vrot.slane %v745, 4
      %v899 = vadd.f32 %v745, %v898
      %v900 = vrot.slane %v899, 2
      %v901 = vadd.f32 %v899, %v900
      %v902 = vrot.slane %v901, 1
      %v903 = vadd.f32 %v901, %v902
      %v904 = vrot.slane %v746, 4
      %v905 = vadd.f32 %v746, %v904
      %v906 = vrot.slane %v905, 2
      %v907 = vadd.f32 %v905, %v906
      %v908 = vrot.slane %v907, 1
      %v909 = vadd.f32 %v907, %v908
      %v910 = vrot.slane %v747, 4
      %v911 = vadd.f32 %v747, %v910
      %v912 = vrot.slane %v911, 2
      %v913 = vadd.f32 %v911, %v912
      %v914 = vrot.slane %v913, 1
      %v915 = vadd.f32 %v913, %v914
      %v916 = vrot.slane %v748, 4
      %v917 = vadd.f32 %v748, %v916
      %v918 = vrot.slane %v917, 2
      %v919 = vadd.f32 %v917, %v918
      %v920 = vrot.slane %v919, 1
      %v921 = vadd.f32 %v919, %v920
      %v922 = vrot.slane %v749, 4
      %v923 = vadd.f32 %v749, %v922
      %v924 = vrot.slane %v923, 2
      %v925 = vadd.f32 %v923, %v924
      %v926 = vrot.slane %v925, 1
      %v927 = vadd.f32 %v925, %v926
      %v928 = vrot.slane %v750, 4
      %v929 = vadd.f32 %v750, %v928
      %v930 = vrot.slane %v929, 2
      %v931 = vadd.f32 %v929, %v930
      %v932 = vrot.slane %v931, 1
      %v933 = vadd.f32 %v931, %v932
      %v934 = vrot.slane %v751, 4
      %v935 = vadd.f32 %v751, %v934
      %v936 = vrot.slane %v935, 2
      %v937 = vadd.f32 %v935, %v936
      %v938 = vrot.slane %v937, 1
      %v939 = vadd.f32 %v937, %v938
      %v940 = vrot.slane %v752, 4
      %v941 = vadd.f32 %v752, %v940
      %v942 = vrot.slane %v941, 2
      %v943 = vadd.f32 %v941, %v942
      %v944 = vrot.slane %v943, 1
      %v945 = vadd.f32 %v943, %v944
      %v946 = vrot.slane %v753, 4
      %v947 = vadd.f32 %v753, %v946
      %v948 = vrot.slane %v947, 2
      %v949 = vadd.f32 %v947, %v948
      %v950 = vrot.slane %v949, 1
      %v951 = vadd.f32 %v949, %v950
      %v952 = vrot.slane %v754, 4
      %v953 = vadd.f32 %v754, %v952
      %v954 = vrot.slane %v953, 2
      %v955 = vadd.f32 %v953, %v954
      %v956 = vrot.slane %v955, 1
      %v957 = vadd.f32 %v955, %v956
      %v958 = vrot.slane %v755, 4
      %v959 = vadd.f32 %v755, %v958
      %v960 = vrot.slane %v959, 2
      %v961 = vadd.f32 %v959, %v960
      %v962 = vrot.slane %v961, 1
      %v963 = vadd.f32 %v961, %v962
      %v964 = vrot.slane %v756, 4
      %v965 = vadd.f32 %v756, %v964
      %v966 = vrot.slane %v965, 2
      %v967 = vadd.f32 %v965, %v966
      %v968 = vrot.slane %v967, 1
      %v969 = vadd.f32 %v967, %v968
      %v970 = vrot.slane %v757, 4
      %v971 = vadd.f32 %v757, %v970
      %v972 = vrot.slane %v971, 2
      %v973 = vadd.f32 %v971, %v972
      %v974 = vrot.slane %v973, 1
      %v975 = vadd.f32 %v973, %v974
      %v976 = vrot.slane %v758, 4
      %v977 = vadd.f32 %v758, %v976
      %v978 = vrot.slane %v977, 2
      %v979 = vadd.f32 %v977, %v978
      %v980 = vrot.slane %v979, 1
      %v981 = vadd.f32 %v979, %v980
      %v982 = vrot.slane %v759, 4
      %v983 = vadd.f32 %v759, %v982
      %v984 = vrot.slane %v983, 2
      %v985 = vadd.f32 %v983, %v984
      %v986 = vrot.slane %v985, 1
      %v987 = vadd.f32 %v985, %v986
      %v988 = vrot.slane %v760, 4
      %v989 = vadd.f32 %v760, %v988
      %v990 = vrot.slane %v989, 2
      %v991 = vadd.f32 %v989, %v990
      %v992 = vrot.slane %v991, 1
      %v993 = vadd.f32 %v991, %v992
      %v994 = vrot.slane %v761, 4
      %v995 = vadd.f32 %v761, %v994
      %v996 = vrot.slane %v995, 2
      %v997 = vadd.f32 %v995, %v996
      %v998 = vrot.slane %v997, 1
      %v999 = vadd.f32 %v997, %v998
      %v1000 = vrot.slane %v762, 4
      %v1001 = vadd.f32 %v762, %v1000
      %v1002 = vrot.slane %v1001, 2
      %v1003 = vadd.f32 %v1001, %v1002
      %v1004 = vrot.slane %v1003, 1
      %v1005 = vadd.f32 %v1003, %v1004
      %v1006 = vrot.slane %v763, 4
      %v1007 = vadd.f32 %v763, %v1006
      %v1008 = vrot.slane %v1007, 2
      %v1009 = vadd.f32 %v1007, %v1008
      %v1010 = vrot.slane %v1009, 1
      %v1011 = vadd.f32 %v1009, %v1010
      %v1012 = vrot.slane %v764, 4
      %v1013 = vadd.f32 %v764, %v1012
      %v1014 = vrot.slane %v1013, 2
      %v1015 = vadd.f32 %v1013, %v1014
      %v1016 = vrot.slane %v1015, 1
      %v1017 = vadd.f32 %v1015, %v1016
      %v1018 = vrot.slane %v765, 4
      %v1019 = vadd.f32 %v765, %v1018
      %v1020 = vrot.slane %v1019, 2
      %v1021 = vadd.f32 %v1019, %v1020
      %v1022 = vrot.slane %v1021, 1
      %v1023 = vadd.f32 %v1021, %v1022
      %v1024 = vrot.slane %v766, 4
      %v1025 = vadd.f32 %v766, %v1024
      %v1026 = vrot.slane %v1025, 2
      %v1027 = vadd.f32 %v1025, %v1026
      %v1028 = vrot.slane %v1027, 1
      %v1029 = vadd.f32 %v1027, %v1028
      %v1030 = vrot.slane %v767, 4
      %v1031 = vadd.f32 %v767, %v1030
      %v1032 = vrot.slane %v1031, 2
      %v1033 = vadd.f32 %v1031, %v1032
      %v1034 = vrot.slane %v1033, 1
      %v1035 = vadd.f32 %v1033, %v1034
      %v1036 = vrot.slane %v768, 4
      %v1037 = vadd.f32 %v768, %v1036
      %v1038 = vrot.slane %v1037, 2
      %v1039 = vadd.f32 %v1037, %v1038
      %v1040 = vrot.slane %v1039, 1
      %v1041 = vadd.f32 %v1039, %v1040
      %v1042 = vrot.slane %v769, 4
      %v1043 = vadd.f32 %v769, %v1042
      %v1044 = vrot.slane %v1043, 2
      %v1045 = vadd.f32 %v1043, %v1044
      %v1046 = vrot.slane %v1045, 1
      %v1047 = vadd.f32 %v1045, %v1046
      %v1048 = vrot.slane %v770, 4
      %v1049 = vadd.f32 %v770, %v1048
      %v1050 = vrot.slane %v1049, 2
      %v1051 = vadd.f32 %v1049, %v1050
      %v1052 = vrot.slane %v1051, 1
      %v1053 = vadd.f32 %v1051, %v1052
      %v1054 = vrot.slane %v771, 4
      %v1055 = vadd.f32 %v771, %v1054
      %v1056 = vrot.slane %v1055, 2
      %v1057 = vadd.f32 %v1055, %v1056
      %v1058 = vrot.slane %v1057, 1
      %v1059 = vadd.f32 %v1057, %v1058
      %vm1108 = vcmask 1041409
      %v1109 = vsel %vm1108, %v813, %v777
      %vm1110 = vcmask 1042434
      %v1111 = vsel %vm1110, %v849, %v1109
      %vm1112 = vcmask 1043459
      %v1113 = vsel %vm1112, %v885, %v1111
      %vm1114 = vcmask 1044484
      %v1115 = vsel %vm1114, %v921, %v1113
      %vm1116 = vcmask 1045509
      %v1117 = vsel %vm1116, %v957, %v1115
      %vm1118 = vcmask 1046534
      %v1119 = vsel %vm1118, %v993, %v1117
      %vm1120 = vcmask 1047559
      %v1121 = vsel %vm1120, %v1029, %v1119
      %v1122 = vsel %vm1108, %v819, %v783
      %v1123 = vsel %vm1110, %v855, %v1122
      %v1124 = vsel %vm1112, %v891, %v1123
      %v1125 = vsel %vm1114, %v927, %v1124
      %v1126 = vsel %vm1116, %v963, %v1125
      %v1127 = vsel %vm1118, %v999, %v1126
      %v1128 = vsel %vm1120, %v1035, %v1127
      %v1129 = vsel %vm1108, %v825, %v789
      %v1130 = vsel %vm1110, %v861, %v1129
      %v1131 = vsel %vm1112, %v897, %v1130
      %v1132 = vsel %vm1114, %v933, %v1131
      %v1133 = vsel %vm1116, %v969, %v1132
      %v1134 = vsel %vm1118, %v1005, %v1133
      %v1135 = vsel %vm1120, %v1041, %v1134
      %v1136 = vsel %vm1108, %v831, %v795
      %v1137 = vsel %vm1110, %v867, %v1136
      %v1138 = vsel %vm1112, %v903, %v1137
      %v1139 = vsel %vm1114, %v939, %v1138
      %v1140 = vsel %vm1116, %v975, %v1139
      %v1141 = vsel %vm1118, %v1011, %v1140
      %v1142 = vsel %vm1120, %v1047, %v1141
      %v1143 = vsel %vm1108, %v837, %v801
      %v1144 = vsel %vm1110, %v873, %v1143
      %v1145 = vsel %vm1112, %v909, %v1144
      %v1146 = vsel %vm1114, %v945, %v1145
      %v1147 = vsel %vm1116, %v981, %v1146
      %v1148 = vsel %vm1118, %v1017, %v1147
      %v1149 = vsel %vm1120, %v1053, %v1148
      %v1150 = vsel %vm1108, %v843, %v807
      %v1151 = vsel %vm1110, %v879, %v1150
      %v1152 = vsel %vm1112, %v915, %v1151
      %v1153 = vsel %vm1114, %v951, %v1152
      %v1154 = vsel %vm1116, %v987, %v1153
      %v1155 = vsel %vm1118, %v1023, %v1154
      %v1156 = vsel %vm1120, %v1059, %v1155
      %v1163 = vadd.f32 %v694, %v1121
      %v1164 = vadd.f32 %v695, %v1128
      %v1165 = vadd.f32 %v696, %v1135
      %v1166 = vadd.f32 %v697, %v1142
      %v1167 = vadd.f32 %v698, %v1149
      %v1168 = vadd.f32 %v699, %v1156
      %1169 = vst [vmem:[#allocation2] sm:$0xff] %v1163
      %1170 = vst [vmem:[#allocation2 + $0x8] sm:$0xff] %v1164
      %1171 = vst [vmem:[#allocation2 + $0x10] sm:$0xff] %v1165
      %1172 = vst [vmem:[#allocation2 + $0x18] sm:$0xff] %v1166
      %1173 = vst [vmem:[#allocation2 + $0x20] sm:$0xff] %v1167
      %1174 = vst [vmem:[#allocation2 + $0x28] sm:$0xff] %v1168
      %v1175 = vld [vmem:[#allocation2] sm:$0xff]
      %v1176 = vld [vmem:[#allocation2 + $0x8] sm:$0xff]
      %v1177 = vld [vmem:[#allocation2 + $0x10] sm:$0xff]
      %v1178 = vld [vmem:[#allocation2 + $0x18] sm:$0xff]
      %v1179 = vld [vmem:[#allocation2 + $0x20] sm:$0xff]
      %v1180 = vld [vmem:[#allocation2 + $0x28] sm:$0xff]
      %v1181 = vmul.f32 %v1175, 0.125
      %v1182 = vmul.f32 %v1176, 0.125
      %v1183 = vmul.f32 %v1177, 0.125
      %v1184 = vmul.f32 %v1178, 0.125
      %v1185 = vmul.f32 %v1179, 0.125
      %v1186 = vmul.f32 %v1180, 0.125
      %v1187 = vld [vmem:[#allocation7] sm:$0xff]
      %v1188 = vld [vmem:[#allocation7 + $0x8] sm:$0xff]
      %v1189 = vld [vmem:[#allocation7 + $0x10] sm:$0xff]
      %v1190 = vld [vmem:[#allocation7 + $0x18] sm:$0xff]
      %v1191 = vld [vmem:[#allocation7 + $0x20] sm:$0xff]
      %v1192 = vld [vmem:[#allocation7 + $0x28] sm:$0xff]
      %v1193 = vld [vmem:[#allocation7 + $0x30] sm:$0xff]
      %v1194 = vld [vmem:[#allocation7 + $0x38] sm:$0xff]
      %v1195 = vld [vmem:[#allocation7 + $0x40] sm:$0xff]
      %v1196 = vld [vmem:[#allocation7 + $0x48] sm:$0xff]
      %v1197 = vld [vmem:[#allocation7 + $0x50] sm:$0xff]
      %v1198 = vld [vmem:[#allocation7 + $0x58] sm:$0xff]
      %v1199 = vld [vmem:[#allocation7 + $0x60] sm:$0xff]
      %v1200 = vld [vmem:[#allocation7 + $0x68] sm:$0xff]
      %v1201 = vld [vmem:[#allocation7 + $0x70] sm:$0xff]
      %v1202 = vld [vmem:[#allocation7 + $0x78] sm:$0xff]
      %v1203 = vld [vmem:[#allocation7 + $0x80] sm:$0xff]
      %v1204 = vld [vmem:[#allocation7 + $0x88] sm:$0xff]
      %v1205 = vld [vmem:[#allocation7 + $0x90] sm:$0xff]
      %v1206 = vld [vmem:[#allocation7 + $0x98] sm:$0xff]
      %v1207 = vld [vmem:[#allocation7 + $0xa0] sm:$0xff]
      %v1208 = vld [vmem:[#allocation7 + $0xa8] sm:$0xff]
      %v1209 = vld [vmem:[#allocation7 + $0xb0] sm:$0xff]
      %v1210 = vld [vmem:[#allocation7 + $0xb8] sm:$0xff]
      %v1211 = vld [vmem:[#allocation7 + $0xc0] sm:$0xff]
      %v1212 = vld [vmem:[#allocation7 + $0xc8] sm:$0xff]
      %v1213 = vld [vmem:[#allocation7 + $0xd0] sm:$0xff]
      %v1214 = vld [vmem:[#allocation7 + $0xd8] sm:$0xff]
      %v1215 = vld [vmem:[#allocation7 + $0xe0] sm:$0xff]
      %v1216 = vld [vmem:[#allocation7 + $0xe8] sm:$0xff]
      %v1217 = vld [vmem:[#allocation7 + $0xf0] sm:$0xff]
      %v1218 = vld [vmem:[#allocation7 + $0xf8] sm:$0xff]
      %v1219 = vld [vmem:[#allocation7 + $0x100] sm:$0xff]
      %v1220 = vld [vmem:[#allocation7 + $0x108] sm:$0xff]
      %v1221 = vld [vmem:[#allocation7 + $0x110] sm:$0xff]
      %v1222 = vld [vmem:[#allocation7 + $0x118] sm:$0xff]
      %v1223 = vld [vmem:[#allocation7 + $0x120] sm:$0xff]
      %v1224 = vld [vmem:[#allocation7 + $0x128] sm:$0xff]
      %v1225 = vld [vmem:[#allocation7 + $0x130] sm:$0xff]
      %v1226 = vld [vmem:[#allocation7 + $0x138] sm:$0xff]
      %v1227 = vld [vmem:[#allocation7 + $0x140] sm:$0xff]
      %v1228 = vld [vmem:[#allocation7 + $0x148] sm:$0xff]
      %v1229 = vld [vmem:[#allocation7 + $0x150] sm:$0xff]
      %v1230 = vld [vmem:[#allocation7 + $0x158] sm:$0xff]
      %v1231 = vld [vmem:[#allocation7 + $0x160] sm:$0xff]
      %v1232 = vld [vmem:[#allocation7 + $0x168] sm:$0xff]
      %v1233 = vld [vmem:[#allocation7 + $0x170] sm:$0xff]
      %v1234 = vld [vmem:[#allocation7 + $0x178] sm:$0xff]
      %v1235 = vld [vmem:[#allocation7 + $0x180] sm:$0xff]
      %v1236 = vld [vmem:[#allocation7 + $0x188] sm:$0xff]
      %v1237 = vld [vmem:[#allocation7 + $0x190] sm:$0xff]
      %v1238 = vld [vmem:[#allocation7 + $0x198] sm:$0xff]
      %v1239 = vld [vmem:[#allocation7 + $0x1a0] sm:$0xff]
      %v1240 = vld [vmem:[#allocation7 + $0x1a8] sm:$0xff]
      %v1241 = vld [vmem:[#allocation7 + $0x1b0] sm:$0xff]
      %v1242 = vld [vmem:[#allocation7 + $0x1b8] sm:$0xff]
      %v1243 = vld [vmem:[#allocation7 + $0x1c0] sm:$0xff]
      %v1244 = vld [vmem:[#allocation7 + $0x1c8] sm:$0xff]
      %v1245 = vld [vmem:[#allocation7 + $0x1d0] sm:$0xff]
      %v1246 = vld [vmem:[#allocation7 + $0x1d8] sm:$0xff]
      %v1247 = vld [vmem:[#allocation7 + $0x1e0] sm:$0xff]
      %v1248 = vld [vmem:[#allocation7 + $0x1e8] sm:$0xff]
      %v1249 = vld [vmem:[#allocation7 + $0x1f0] sm:$0xff]
      %v1250 = vld [vmem:[#allocation7 + $0x1f8] sm:$0xff]
      %v1251 = vld [vmem:[#allocation7 + $0x200] sm:$0xff]
      %v1252 = vld [vmem:[#allocation7 + $0x208] sm:$0xff]
      %v1253 = vld [vmem:[#allocation7 + $0x210] sm:$0xff]
      %v1254 = vld [vmem:[#allocation7 + $0x218] sm:$0xff]
      %v1255 = vld [vmem:[#allocation7 + $0x220] sm:$0xff]
      %v1256 = vld [vmem:[#allocation7 + $0x228] sm:$0xff]
      %v1257 = vld [vmem:[#allocation7 + $0x230] sm:$0xff]
      %v1258 = vld [vmem:[#allocation7 + $0x238] sm:$0xff]
      %v1259 = vld [vmem:[#allocation7 + $0x240] sm:$0xff]
      %v1260 = vld [vmem:[#allocation7 + $0x248] sm:$0xff]
      %v1261 = vld [vmem:[#allocation7 + $0x250] sm:$0xff]
      %v1262 = vld [vmem:[#allocation7 + $0x258] sm:$0xff]
      %v1263 = vld [vmem:[#allocation7 + $0x260] sm:$0xff]
      %v1264 = vld [vmem:[#allocation7 + $0x268] sm:$0xff]
      %v1265 = vld [vmem:[#allocation7 + $0x270] sm:$0xff]
      %v1266 = vld [vmem:[#allocation7 + $0x278] sm:$0xff]
      %v1267 = vld [vmem:[#allocation7 + $0x280] sm:$0xff]
      %v1268 = vld [vmem:[#allocation7 + $0x288] sm:$0xff]
      %v1269 = vld [vmem:[#allocation7 + $0x290] sm:$0xff]
      %v1270 = vld [vmem:[#allocation7 + $0x298] sm:$0xff]
      %v1271 = vld [vmem:[#allocation7 + $0x2a0] sm:$0xff]
      %v1272 = vld [vmem:[#allocation7 + $0x2a8] sm:$0xff]
      %v1273 = vld [vmem:[#allocation7 + $0x2b0] sm:$0xff]
      %v1274 = vld [vmem:[#allocation7 + $0x2b8] sm:$0xff]
      %v1275 = vld [vmem:[#allocation7 + $0x2c0] sm:$0xff]
      %v1276 = vld [vmem:[#allocation7 + $0x2c8] sm:$0xff]
      %v1277 = vld [vmem:[#allocation7 + $0x2d0] sm:$0xff]
      %v1278 = vld [vmem:[#allocation7 + $0x2d8] sm:$0xff]
      %v1279 = vld [vmem:[#allocation7 + $0x2e0] sm:$0xff]
      %v1280 = vld [vmem:[#allocation7 + $0x2e8] sm:$0xff]
      %v1281 = vld [vmem:[#allocation7 + $0x2f0] sm:$0xff]
      %v1282 = vld [vmem:[#allocation7 + $0x2f8] sm:$0xff]
      %v1283 = vld [vmem:[#allocation7 + $0x300] sm:$0xff]
      %v1284 = vld [vmem:[#allocation7 + $0x308] sm:$0xff]
      %v1285 = vld [vmem:[#allocation7 + $0x310] sm:$0xff]
      %v1286 = vld [vmem:[#allocation7 + $0x318] sm:$0xff]
      %v1287 = vld [vmem:[#allocation7 + $0x320] sm:$0xff]
      %v1288 = vld [vmem:[#allocation7 + $0x328] sm:$0xff]
      %v1289 = vld [vmem:[#allocation7 + $0x330] sm:$0xff]
      %v1290 = vld [vmem:[#allocation7 + $0x338] sm:$0xff]
      %v1291 = vld [vmem:[#allocation7 + $0x340] sm:$0xff]
      %v1292 = vld [vmem:[#allocation7 + $0x348] sm:$0xff]
      %v1293 = vld [vmem:[#allocation7 + $0x350] sm:$0xff]
      %v1294 = vld [vmem:[#allocation7 + $0x358] sm:$0xff]
      %v1295 = vld [vmem:[#allocation7 + $0x360] sm:$0xff]
      %v1296 = vld [vmem:[#allocation7 + $0x368] sm:$0xff]
      %v1297 = vld [vmem:[#allocation7 + $0x370] sm:$0xff]
      %v1298 = vld [vmem:[#allocation7 + $0x378] sm:$0xff]
      %v1299 = vld [vmem:[#allocation7 + $0x380] sm:$0xff]
      %v1300 = vld [vmem:[#allocation7 + $0x388] sm:$0xff]
      %v1301 = vld [vmem:[#allocation7 + $0x390] sm:$0xff]
      %v1302 = vld [vmem:[#allocation7 + $0x398] sm:$0xff]
      %v1303 = vld [vmem:[#allocation7 + $0x3a0] sm:$0xff]
      %v1304 = vld [vmem:[#allocation7 + $0x3a8] sm:$0xff]
      %v1305 = vld [vmem:[#allocation7 + $0x3b0] sm:$0xff]
      %v1306 = vld [vmem:[#allocation7 + $0x3b8] sm:$0xff]
      %v1307 = vld [vmem:[#allocation7 + $0x3c0] sm:$0xff]
      %v1308 = vld [vmem:[#allocation7 + $0x3c8] sm:$0xff]
      %v1309 = vld [vmem:[#allocation7 + $0x3d0] sm:$0xff]
      %v1310 = vld [vmem:[#allocation7 + $0x3d8] sm:$0xff]
      %v1311 = vld [vmem:[#allocation7 + $0x3e0] sm:$0xff]
      %v1312 = vld [vmem:[#allocation7 + $0x3e8] sm:$0xff]
      %v1313 = vld [vmem:[#allocation7 + $0x3f0] sm:$0xff]
      %v1314 = vld [vmem:[#allocation7 + $0x3f8] sm:$0xff]
      %v1315 = vld [vmem:[#allocation7 + $0x400] sm:$0xff]
      %v1316 = vld [vmem:[#allocation7 + $0x408] sm:$0xff]
      %v1317 = vld [vmem:[#allocation7 + $0x410] sm:$0xff]
      %v1318 = vld [vmem:[#allocation7 + $0x418] sm:$0xff]
      %v1319 = vld [vmem:[#allocation7 + $0x420] sm:$0xff]
      %v1320 = vld [vmem:[#allocation7 + $0x428] sm:$0xff]
      %v1321 = vld [vmem:[#allocation7 + $0x430] sm:$0xff]
      %v1322 = vld [vmem:[#allocation7 + $0x438] sm:$0xff]
      %v1323 = vld [vmem:[#allocation7 + $0x440] sm:$0xff]
      %v1324 = vld [vmem:[#allocation7 + $0x448] sm:$0xff]
      %v1325 = vld [vmem:[#allocation7 + $0x450] sm:$0xff]
      %v1326 = vld [vmem:[#allocation7 + $0x458] sm:$0xff]
      %v1327 = vld [vmem:[#allocation7 + $0x460] sm:$0xff]
      %v1328 = vld [vmem:[#allocation7 + $0x468] sm:$0xff]
      %v1329 = vld [vmem:[#allocation7 + $0x470] sm:$0xff]
      %v1330 = vld [vmem:[#allocation7 + $0x478] sm:$0xff]
      %v1331 = vld [vmem:[#allocation7 + $0x480] sm:$0xff]
      %v1332 = vld [vmem:[#allocation7 + $0x488] sm:$0xff]
      %v1333 = vld [vmem:[#allocation7 + $0x490] sm:$0xff]
      %v1334 = vld [vmem:[#allocation7 + $0x498] sm:$0xff]
      %v1335 = vld [vmem:[#allocation7 + $0x4a0] sm:$0xff]
      %v1336 = vld [vmem:[#allocation7 + $0x4a8] sm:$0xff]
      %v1337 = vld [vmem:[#allocation7 + $0x4b0] sm:$0xff]
      %v1338 = vld [vmem:[#allocation7 + $0x4b8] sm:$0xff]
      %v1339 = vld [vmem:[#allocation7 + $0x4c0] sm:$0xff]
      %v1340 = vld [vmem:[#allocation7 + $0x4c8] sm:$0xff]
      %v1341 = vld [vmem:[#allocation7 + $0x4d0] sm:$0xff]
      %v1342 = vld [vmem:[#allocation7 + $0x4d8] sm:$0xff]
      %v1343 = vld [vmem:[#allocation7 + $0x4e0] sm:$0xff]
      %v1344 = vld [vmem:[#allocation7 + $0x4e8] sm:$0xff]
      %v1345 = vld [vmem:[#allocation7 + $0x4f0] sm:$0xff]
      %v1346 = vld [vmem:[#allocation7 + $0x4f8] sm:$0xff]
      %v1347 = vld [vmem:[#allocation7 + $0x500] sm:$0xff]
      %v1348 = vld [vmem:[#allocation7 + $0x508] sm:$0xff]
      %v1349 = vld [vmem:[#allocation7 + $0x510] sm:$0xff]
      %v1350 = vld [vmem:[#allocation7 + $0x518] sm:$0xff]
      %v1351 = vld [vmem:[#allocation7 + $0x520] sm:$0xff]
      %v1352 = vld [vmem:[#allocation7 + $0x528] sm:$0xff]
      %v1353 = vld [vmem:[#allocation7 + $0x530] sm:$0xff]
      %v1354 = vld [vmem:[#allocation7 + $0x538] sm:$0xff]
      %v1355 = vld [vmem:[#allocation7 + $0x540] sm:$0xff]
      %v1356 = vld [vmem:[#allocation7 + $0x548] sm:$0xff]
      %v1357 = vld [vmem:[#allocation7 + $0x550] sm:$0xff]
      %v1358 = vld [vmem:[#allocation7 + $0x558] sm:$0xff]
      %v1359 = vld [vmem:[#allocation7 + $0x560] sm:$0xff]
      %v1360 = vld [vmem:[#allocation7 + $0x568] sm:$0xff]
      %v1361 = vld [vmem:[#allocation7 + $0x570] sm:$0xff]
      %v1362 = vld [vmem:[#allocation7 + $0x578] sm:$0xff]
      %v1363 = vld [vmem:[#allocation7 + $0x580] sm:$0xff]
      %v1364 = vld [vmem:[#allocation7 + $0x588] sm:$0xff]
      %v1365 = vld [vmem:[#allocation7 + $0x590] sm:$0xff]
      %v1366 = vld [vmem:[#allocation7 + $0x598] sm:$0xff]
      %v1367 = vld [vmem:[#allocation7 + $0x5a0] sm:$0xff]
      %v1368 = vld [vmem:[#allocation7 + $0x5a8] sm:$0xff]
      %v1369 = vld [vmem:[#allocation7 + $0x5b0] sm:$0xff]
      %v1370 = vld [vmem:[#allocation7 + $0x5b8] sm:$0xff]
      %v1371 = vld [vmem:[#allocation7 + $0x5c0] sm:$0xff]
      %v1372 = vld [vmem:[#allocation7 + $0x5c8] sm:$0xff]
      %v1373 = vld [vmem:[#allocation7 + $0x5d0] sm:$0xff]
      %v1374 = vld [vmem:[#allocation7 + $0x5d8] sm:$0xff]
      %v1375 = vld [vmem:[#allocation7 + $0x5e0] sm:$0xff]
      %v1376 = vld [vmem:[#allocation7 + $0x5e8] sm:$0xff]
      %v1377 = vld [vmem:[#allocation7 + $0x5f0] sm:$0xff]
      %v1378 = vld [vmem:[#allocation7 + $0x5f8] sm:$0xff]
      %v1379 = vld [vmem:[%s2] sm:$0x3]
      %v1381 = vlaneseq
      %v1382 = vshrl.u32 %v1381, 7
      %v1383 = vsub.s32 0, %v1382
      %v1384 = vrot.slane %v1379, %v1383
      %v1385 = vlaneseq
      %v1386 = vshrl.u32 %v1385, 7
      %v1387 = vsub.s32 1, %v1386
      %v1388 = vrot.slane %v1379, %v1387
      %1391 = vmatprep.subr.mxu0 %v1188
      %1392 = vmatpush1.msra.mxu0 %v1187
      %1393 = vmatprep.subr.mxu0 %v1190
      %1394 = vmatpush1.msra.mxu0 %v1189
      %1395 = vmatprep.subr.mxu0 %v1192
      %1396 = vmatpush1.msra.mxu0 %v1191
      %1397 = vmatprep.subr.mxu0 %v1194
      %1398 = vmatpush1.msra.mxu0 %v1193
      %1399 = vmatprep.subr.mxu0 %v1196
      %1400 = vmatpush1.msra.mxu0 %v1195
      %1401 = vmatprep.subr.mxu0 %v1198
      %1402 = vmatpush1.msra.mxu0 %v1197
      %1403 = vmatprep.subr.mxu0 %v1200
      %1404 = vmatpush1.msra.mxu0 %v1199
      %1405 = vmatprep.subr.mxu0 %v1202
      %1406 = vmatpush1.msra.mxu0 %v1201
      %1407 = vmatprep.subr.mxu0 %v1204
      %1408 = vmatpush1.msra.mxu0 %v1203
      %1409 = vmatprep.subr.mxu0 %v1206
      %1410 = vmatpush1.msra.mxu0 %v1205
      %1411 = vmatprep.subr.mxu0 %v1208
      %1412 = vmatpush1.msra.mxu0 %v1207
      %1413 = vmatprep.subr.mxu0 %v1210
      %1414 = vmatpush1.msra.mxu0 %v1209
      %1415 = vmatprep.subr.mxu0 %v1212
      %1416 = vmatpush1.msra.mxu0 %v1211
      %1417 = vmatprep.subr.mxu0 %v1214
      %1418 = vmatpush1.msra.mxu0 %v1213
      %1419 = vmatprep.subr.mxu0 %v1216
      %1420 = vmatpush1.msra.mxu0 %v1215
      %1421 = vmatprep.subr.mxu0 %v1218
      %1422 = vmatpush1.msra.mxu0 %v1217
      %1423 = vmatprep.subr.mxu0 %v1220
      %1424 = vmatpush1.msra.mxu0 %v1219
      %1425 = vmatprep.subr.mxu0 %v1222
      %1426 = vmatpush1.msra.mxu0 %v1221
      %1427 = vmatprep.subr.mxu0 %v1224
      %1428 = vmatpush1.msra.mxu0 %v1223
      %1429 = vmatprep.subr.mxu0 %v1226
      %1430 = vmatpush1.msra.mxu0 %v1225
      %1431 = vmatprep.subr.mxu0 %v1228
      %1432 = vmatpush1.msra.mxu0 %v1227
      %1433 = vmatprep.subr.mxu0 %v1230
      %1434 = vmatpush1.msra.mxu0 %v1229
      %1435 = vmatprep.subr.mxu0 %v1232
      %1436 = vmatpush1.msra.mxu0 %v1231
      %1437 = vmatprep.subr.mxu0 %v1234
      %1438 = vmatpush1.msra.mxu0 %v1233
      %1439 = vmatprep.subr.mxu0 %v1236
      %1440 = vmatpush1.msra.mxu0 %v1235
      %1441 = vmatprep.subr.mxu0 %v1238
      %1442 = vmatpush1.msra.mxu0 %v1237
      %1443 = vmatprep.subr.mxu0 %v1240
      %1444 = vmatpush1.msra.mxu0 %v1239
      %1445 = vmatprep.subr.mxu0 %v1242
      %1446 = vmatpush1.msra.mxu0 %v1241
      %1447 = vmatprep.subr.mxu0 %v1244
      %1448 = vmatpush1.msra.mxu0 %v1243
      %1449 = vmatprep.subr.mxu0 %v1246
      %1450 = vmatpush1.msra.mxu0 %v1245
      %1451 = vmatprep.subr.mxu0 %v1248
      %1452 = vmatpush1.msra.mxu0 %v1247
      %1453 = vmatprep.subr.mxu0 %v1250
      %1454 = vmatpush1.msra.mxu0 %v1249
      %1455 = vmatprep.mubr.f32.mxu0 %v1182
      %1456 = vmatmul.mubr.f32.gmra.mrb[0].mxu0 %v1181
      %v1457 = vpop.f32.mrb[0].mxu0
      %v1458 = vadd.f32 %v1384, %v1457
      %v1459 = vpop.f32.mrb[0].mxu0
      %v1460 = vadd.f32 %v1388, %v1459
      %1461 = vdwg.mxu0
      %1462 = vmatprep.subr.mxu0 %v1252
      %1463 = vmatpush1.msra.mxu0 %v1251
      %1464 = vmatprep.subr.mxu0 %v1254
      %1465 = vmatpush1.msra.mxu0 %v1253
      %1466 = vmatprep.subr.mxu0 %v1256
      %1467 = vmatpush1.msra.mxu0 %v1255
      %1468 = vmatprep.subr.mxu0 %v1258
      %1469 = vmatpush1.msra.mxu0 %v1257
      %1470 = vmatprep.subr.mxu0 %v1260
      %1471 = vmatpush1.msra.mxu0 %v1259
      %1472 = vmatprep.subr.mxu0 %v1262
      %1473 = vmatpush1.msra.mxu0 %v1261
      %1474 = vmatprep.subr.mxu0 %v1264
      %1475 = vmatpush1.msra.mxu0 %v1263
      %1476 = vmatprep.subr.mxu0 %v1266
      %1477 = vmatpush1.msra.mxu0 %v1265
      %1478 = vmatprep.subr.mxu0 %v1268
      %1479 = vmatpush1.msra.mxu0 %v1267
      %1480 = vmatprep.subr.mxu0 %v1270
      %1481 = vmatpush1.msra.mxu0 %v1269
      %1482 = vmatprep.subr.mxu0 %v1272
      %1483 = vmatpush1.msra.mxu0 %v1271
      %1484 = vmatprep.subr.mxu0 %v1274
      %1485 = vmatpush1.msra.mxu0 %v1273
      %1486 = vmatprep.subr.mxu0 %v1276
      %1487 = vmatpush1.msra.mxu0 %v1275
      %1488 = vmatprep.subr.mxu0 %v1278
      %1489 = vmatpush1.msra.mxu0 %v1277
      %1490 = vmatprep.subr.mxu0 %v1280
      %1491 = vmatpush1.msra.mxu0 %v1279
      %1492 = vmatprep.subr.mxu0 %v1282
      %1493 = vmatpush1.msra.mxu0 %v1281
      %1494 = vmatprep.subr.mxu0 %v1284
      %1495 = vmatpush1.msra.mxu0 %v1283
      %1496 = vmatprep.subr.mxu0 %v1286
      %1497 = vmatpush1.msra.mxu0 %v1285
      %1498 = vmatprep.subr.mxu0 %v1288
      %1499 = vmatpush1.msra.mxu0 %v1287
      %1500 = vmatprep.subr.mxu0 %v1290
      %1501 = vmatpush1.msra.mxu0 %v1289
      %1502 = vmatprep.subr.mxu0 %v1292
      %1503 = vmatpush1.msra.mxu0 %v1291
      %1504 = vmatprep.subr.mxu0 %v1294
      %1505 = vmatpush1.msra.mxu0 %v1293
      %1506 = vmatprep.subr.mxu0 %v1296
      %1507 = vmatpush1.msra.mxu0 %v1295
      %1508 = vmatprep.subr.mxu0 %v1298
      %1509 = vmatpush1.msra.mxu0 %v1297
      %1510 = vmatprep.subr.mxu0 %v1300
      %1511 = vmatpush1.msra.mxu0 %v1299
      %1512 = vmatprep.subr.mxu0 %v1302
      %1513 = vmatpush1.msra.mxu0 %v1301
      %1514 = vmatprep.subr.mxu0 %v1304
      %1515 = vmatpush1.msra.mxu0 %v1303
      %1516 = vmatprep.subr.mxu0 %v1306
      %1517 = vmatpush1.msra.mxu0 %v1305
      %1518 = vmatprep.subr.mxu0 %v1308
      %1519 = vmatpush1.msra.mxu0 %v1307
      %1520 = vmatprep.subr.mxu0 %v1310
      %1521 = vmatpush1.msra.mxu0 %v1309
      %1522 = vmatprep.subr.mxu0 %v1312
      %1523 = vmatpush1.msra.mxu0 %v1311
      %1524 = vmatprep.subr.mxu0 %v1314
      %1525 = vmatpush1.msra.mxu0 %v1313
      %1526 = vmatprep.mubr.f32.mxu0 %v1184
      %1527 = vmatmul.mubr.f32.gmra.mrb[0].mxu0 %v1183
      %v1528 = vpop.f32.mrb[0].mxu0
      %v1529 = vadd.f32 %v1458, %v1528
      %v1530 = vpop.f32.mrb[0].mxu0
      %v1531 = vadd.f32 %v1460, %v1530
      %1532 = vdwg.mxu0
      %1533 = vmatprep.subr.mxu0 %v1316
      %1534 = vmatpush1.msra.mxu0 %v1315
      %1535 = vmatprep.subr.mxu0 %v1318
      %1536 = vmatpush1.msra.mxu0 %v1317
      %1537 = vmatprep.subr.mxu0 %v1320
      %1538 = vmatpush1.msra.mxu0 %v1319
      %1539 = vmatprep.subr.mxu0 %v1322
      %1540 = vmatpush1.msra.mxu0 %v1321
      %1541 = vmatprep.subr.mxu0 %v1324
      %1542 = vmatpush1.msra.mxu0 %v1323
      %1543 = vmatprep.subr.mxu0 %v1326
      %1544 = vmatpush1.msra.mxu0 %v1325
      %1545 = vmatprep.subr.mxu0 %v1328
      %1546 = vmatpush1.msra.mxu0 %v1327
      %1547 = vmatprep.subr.mxu0 %v1330
      %1548 = vmatpush1.msra.mxu0 %v1329
      %1549 = vmatprep.subr.mxu0 %v1332
      %1550 = vmatpush1.msra.mxu0 %v1331
      %1551 = vmatprep.subr.mxu0 %v1334
      %1552 = vmatpush1.msra.mxu0 %v1333
      %1553 = vmatprep.subr.mxu0 %v1336
      %1554 = vmatpush1.msra.mxu0 %v1335
      %1555 = vmatprep.subr.mxu0 %v1338
      %1556 = vmatpush1.msra.mxu0 %v1337
      %1557 = vmatprep.subr.mxu0 %v1340
      %1558 = vmatpush1.msra.mxu0 %v1339
      %1559 = vmatprep.subr.mxu0 %v1342
      %1560 = vmatpush1.msra.mxu0 %v1341
      %1561 = vmatprep.subr.mxu0 %v1344
      %1562 = vmatpush1.msra.mxu0 %v1343
      %1563 = vmatprep.subr.mxu0 %v1346
      %1564 = vmatpush1.msra.mxu0 %v1345
      %1565 = vmatprep.subr.mxu0 %v1348
      %1566 = vmatpush1.msra.mxu0 %v1347
      %1567 = vmatprep.subr.mxu0 %v1350
      %1568 = vmatpush1.msra.mxu0 %v1349
      %1569 = vmatprep.subr.mxu0 %v1352
      %1570 = vmatpush1.msra.mxu0 %v1351
      %1571 = vmatprep.subr.mxu0 %v1354
      %1572 = vmatpush1.msra.mxu0 %v1353
      %1573 = vmatprep.subr.mxu0 %v1356
      %1574 = vmatpush1.msra.mxu0 %v1355
      %1575 = vmatprep.subr.mxu0 %v1358
      %1576 = vmatpush1.msra.mxu0 %v1357
      %1577 = vmatprep.subr.mxu0 %v1360
      %1578 = vmatpush1.msra.mxu0 %v1359
      %1579 = vmatprep.subr.mxu0 %v1362
      %1580 = vmatpush1.msra.mxu0 %v1361
      %1581 = vmatprep.subr.mxu0 %v1364
      %1582 = vmatpush1.msra.mxu0 %v1363
      %1583 = vmatprep.subr.mxu0 %v1366
      %1584 = vmatpush1.msra.mxu0 %v1365
      %1585 = vmatprep.subr.mxu0 %v1368
      %1586 = vmatpush1.msra.mxu0 %v1367
      %1587 = vmatprep.subr.mxu0 %v1370
      %1588 = vmatpush1.msra.mxu0 %v1369
      %1589 = vmatprep.subr.mxu0 %v1372
      %1590 = vmatpush1.msra.mxu0 %v1371
      %1591 = vmatprep.subr.mxu0 %v1374
      %1592 = vmatpush1.msra.mxu0 %v1373
      %1593 = vmatprep.subr.mxu0 %v1376
      %1594 = vmatpush1.msra.mxu0 %v1375
      %1595 = vmatprep.subr.mxu0 %v1378
      %1596 = vmatpush1.msra.mxu0 %v1377
      %1597 = vmatprep.mubr.f32.mxu0 %v1186
      %1598 = vmatmul.mubr.f32.gmra.mrb[0].mxu0 %v1185
      %v1599 = vpop.f32.mrb[0].mxu0
      %v1600 = vadd.f32 %v1529, %v1599
      %v1601 = vpop.f32.mrb[0].mxu0
      %v1602 = vadd.f32 %v1531, %v1601
      %1603 = vdwg.mxu0
      %v1604 = vmax.f32 %v1600, 0.0
      %v1605 = vmax.f32 %v1602, 0.0
      %v1606 = vld [vmem:[%s3] sm:$0x3]
      %v1608 = vlaneseq
      %v1609 = vshrl.u32 %v1608, 7
      %v1610 = vsub.s32 0, %v1609
      %v1611 = vrot.slane %v1606, %v1610
      %v1612 = vlaneseq
      %v1613 = vshrl.u32 %v1612, 7
      %v1614 = vsub.s32 1, %v1613
      %v1615 = vrot.slane %v1606, %v1614
      %v1618 = vmul.f32 %v1604, %v1611
      %v1619 = vmul.f32 %v1605, %v1615
      %v1620 = vadd.f32 %v1618, %v1619
      %1621 = vadd.xlane.f32.xlu0 %v1620
      %v1622 = vpop.xlane.xlu0 %1621
      %v1623 = vld [vmem:[#allocation3] sm:$0x1]
      %v1625 = vlaneseq
      %v1626 = vshrl.u32 %v1625, 7
      %v1627 = vsub.s32 0, %v1626
      %v1628 = vrot.slane %v1623, %v1627
      %v1630 = vadd.f32 %v1622, %v1628
      %v1631 = vxor.u32 %v1630, 2147483648
      %v1632 = vmul.f32 %v1631, 1.442695
      %v1633 = vpow.pop %v1632
      %v1634 = vadd.f32 %v1633, 1.0
      %v1635 = vrcp.pop %v1634
      %v1636 = vmul.f32 1.0, %v1635
      %1638 = vset.pattern.permute.xlu0 0
      %1639 = vperm.xlu0 %1638, %v1636
      %v1640 = vpop.permute.xlu0 %1639
      %1642 = vst [vmem:[#allocation9] sm:$0xff] %v1640
    $region41: #{tpu_custom_call.1} parent=1 // pred_fallthru
      _
    // Predicated region
    $region42: #{tpu_custom_call.1} parent=1 // pred_check
      _
    $region43: #{tpu_custom_call.1} parent=1 // pred_check_branch
      %1644 = sbr.rel (0) target = $region45
    $region44: #{tpu_custom_call.1} parent=1 // pred_region
      %s1646 = ssub.s32 128, 32
      %1647 = vsyncadd [#allocation6], %s1646
      %s1648 = sshll.u32 [#allocation9], 4
      %s1649 = int_to_ptr.vmem [resolvable:$true] %s1648
      %1654 = dma.vmem_to_hbm [thread:$0]  %s1649, 32, %s5, [#allocation6], 32, 32, 2
    $region45: #{tpu_custom_call.1} parent=1 // pred_fallthru
      _
    // Predicated region
    $region46: #{tpu_custom_call.1} parent=1 // pred_check
      _
    $region47: #{tpu_custom_call.1} parent=1 // pred_check_branch
      %1656 = sbr.rel (0) target = $region49
    $region48: #{tpu_custom_call.1} parent=1 // pred_region
      %1657 = dma.done [#allocation6], 128
    $region49: #{tpu_custom_call.1} parent=1 // pred_fallthru
      _
    %1658 = vsyncpa [#allocation5], 1
    %1659 = vsyncpa [#allocation8], 1
    %1660 = vsyncpa [#allocation6], 1

</llo_original>
